<compile_context>
chip_gen: v7x
topology: tpu7x:2x2x1
jax: 0.10.0
libtpu: 0.0.40
codegen_flags: <defaults>
</compile_context>

<pallas_src>
import jax
import jax.numpy as jnp
from jax.experimental import pallas as pl
from jax.experimental.pallas import tpu as pltpu

LEAKY_SLOPE = 0.2
BN_EPS = 1e-5
DEFAULT_TILE_R = 256          # rows per GEMM grid step (multiple of 16 for bf16 packing)
_LANE = 128


def _round_up(x, m):
    return (x + m - 1) // m * m


def _detect_vmem_capacity():
    try:
        return int(pltpu.get_tpu_info().vmem_capacity_bytes)
    except Exception:
        return 64 << 20        # conservative (v7x-sized) fallback

_VMEM_CAP = _detect_vmem_capacity()
_SMALL_VMEM = _VMEM_CAP <= (64 << 20)       # v7x: 64 MiB per TensorCore


def _vmem_limit(nbytes):
    # `nbytes` already accounts for per-operand buffering; add a small fixed
    # margin for compiler scratch instead of another 2x hedge.
    cap = (40 << 20) if _SMALL_VMEM else (96 << 20)
    return int(min(max(nbytes + (4 << 20), 8 << 20), cap))


def _fused_bn_z_budget():
    # VMEM scratch budget for keeping the whole BN pre-activation z resident.
    return (20 << 20) if _SMALL_VMEM else (48 << 20)


def _row_tile(r, cap=DEFAULT_TILE_R, split_for_megacore=False):
    """Pick a row tile.  `cap` must be a multiple of 16 (bf16 sublane packing)."""
    if split_for_megacore and _SMALL_VMEM and r >= 32:
        # v7x has 2 TensorCores: make sure a "parallel" grid has >= 2 steps.
        cap = min(cap, _round_up((r + 1) // 2, 16))
    if cap >= r:
        return r               # single full-extent block (exempt from (8,128) rule)
    return cap


def _const_spec(shape):
    """BlockSpec for an operand whose block never changes across the grid;
    single-buffered so the second pipeline buffer's VMEM is not wasted."""
    zeros = (0,) * len(shape)

    def idx(*_):
        return zeros

    try:
        return pl.BlockSpec(shape, idx, pipeline_mode=pl.Buffered(1))
    except Exception:          # older BlockSpec signature: plain double-buffering
        return pl.BlockSpec(shape, idx)


# ------------------------------ Pallas kernels ------------------------------ #
def _gemm_bias_leaky_kernel(p_ref, w_ref, b_ref, o_ref):
    # p: (TR, K) bf16   w: (K, C) bf16   b: (1, C) f32   o: (TR, C) bf16
    z = jnp.dot(p_ref[...], w_ref[...], preferred_element_type=jnp.float32)
    z = z + b_ref[...]
    o_ref[...] = jnp.where(z >= 0, z, LEAKY_SLOPE * z).astype(o_ref.dtype)


def _gemm_bias_sigmoid_kernel(p_ref, w_ref, b_ref, o_ref):
    # Final Cout==1 layer routed through the MXU with a lane-dense (TR, 128)
    # output (only column 0 is live); exact (non-approx) sigmoid.
    z = jnp.dot(p_ref[...], w_ref[...], preferred_element_type=jnp.float32)
    z = z + b_ref[...]
    o_ref[...] = (1.0 / (1.0 + jnp.exp(-z))).astype(o_ref.dtype)


def _affine_leaky_kernel(z_ref, s_ref, t_ref, o_ref):
    zn = z_ref[...] * s_ref[...] + t_ref[...]
    o_ref[...] = jnp.where(zn >= 0, zn, LEAKY_SLOPE * zn).astype(o_ref.dtype)


def _make_gemm_stats_kernel(rows_total, tile_r):
    """Two-pass BN fallback, pass 1: GEMM + per-tile masked partial stats."""
    def kernel(p_ref, w_ref, z_ref, stats_ref):
        i = pl.program_id(0)
        z = jnp.dot(p_ref[...], w_ref[...], preferred_element_type=jnp.float32)
        z_ref[...] = z
        # Garbage rows of a partial last tile are masked out of the statistics.
        row = jax.lax.broadcasted_iota(jnp.int32, (tile_r, 1), 0) + i * tile_r
        zm = jnp.where(row < rows_total, z, 0.0)
        # Direct sublane stores (no concatenate/reshape relayout).
        stats_ref[0, 0:1, :] = jnp.sum(zm, axis=0, keepdims=True)
        stats_ref[0, 1:2, :] = jnp.sum(zm * zm, axis=0, keepdims=True)
    return kernel


def _make_fused_bn_kernel(rows_total, tile_r, grid_n):
    """Single-call BN layer: phase 0 = GEMM into a resident VMEM z scratch +
    running sum / sum-of-squares; phase 1 = finalize scale/shift once, then
    affine + LeakyReLU per tile."""
    inv_n = 1.0 / float(rows_total)

    def kernel(p_ref, w_ref, g_ref, b_ref, o_ref, z_scr, stats_scr, ss_scr):
        ph = pl.program_id(0)          # 0: GEMM + stats    1: affine + lrelu
        i = pl.program_id(1)

        @pl.when(ph == 0)
        def _gemm_phase():
            @pl.when(i == 0)
            def _init():
                stats_scr[...] = jnp.zeros_like(stats_scr)

            z = jnp.dot(p_ref[...], w_ref[...], preferred_element_type=jnp.float32)
            z_scr[i] = z
            row = jax.lax.broadcasted_iota(jnp.int32, (tile_r, 1), 0) + i * tile_r
            zm = jnp.where(row < rows_total, z, 0.0)
            stats_scr[0:1, :] = stats_scr[0:1, :] + jnp.sum(zm, axis=0, keepdims=True)
            stats_scr[1:2, :] = stats_scr[1:2, :] + jnp.sum(zm * zm, axis=0, keepdims=True)

        @pl.when(ph == 1)
        def _affine_phase():
            @pl.when(i == 0)
            def _finalize():
                mean = stats_scr[0:1, :] * inv_n
                var = jnp.maximum(stats_scr[1:2, :] * inv_n - mean * mean, 0.0)
                scale = g_ref[...] * jax.lax.rsqrt(var + BN_EPS)
                ss_scr[0:1, :] = scale
                ss_scr[1:2, :] = b_ref[...] - mean * scale

            zn = z_scr[i] * ss_scr[0:1, :] + ss_scr[1:2, :]
            o_ref[...] = jnp.where(zn >= 0, zn, LEAKY_SLOPE * zn).astype(o_ref.dtype)

    return kernel


# ------------------------------- host glue --------------------------------- #
def _pad_channels(x, c_to):
    c = x.shape[-1]
    if c == c_to:
        return x
    return jnp.pad(x, ((0, 0), (0, 0), (0, 0), (0, c_to - c)))


def _im2col_nhwc(x, k, stride, pad):
    """x: (N, H, W, C) -> patches (N*OH*OW, k*k*C), column order (kh, kw, c)."""
    N, H, W, C = x.shape
    xp = jnp.pad(x, ((0, 0), (pad, pad), (pad, pad), (0, 0)))
    OH = (H + 2 * pad - k) // stride + 1
    OW = (W + 2 * pad - k) // stride + 1
    cols = []
    for i in range(k):
        for j in range(k):
            cols.append(xp[:, i:i + stride * OH:stride, j:j + stride * OW:stride, :])
    p = jnp.stack(cols, axis=3).reshape(N * OH * OW, k * k * C)
    return p, OH, OW


def _prep_weight(w, cin_pad):
    """(Cout, Cin, k, k) -> (k*k*cin_pad, Cout) matching the (kh, kw, c) patch order."""
    Cout, Cin, k, _ = w.shape
    w = jnp.transpose(w, (2, 3, 1, 0))                 # (k, k, Cin, Cout)
    w = jnp.pad(w, ((0, 0), (0, 0), (0, cin_pad - Cin), (0, 0)))
    return w.reshape(k * k * cin_pad, Cout)


def _conv_setup(x, weight, stride, pad):
    """bf16 activation with channels padded to a multiple of 8 (so K = 16*C is
    automatically a multiple of 128), im2col patches, lane-padded bf16 weight."""
    k = weight.shape[2]
    Cout = weight.shape[0]
    c8 = _round_up(x.shape[-1], 8)
    xq = _pad_channels(x.astype(jnp.bfloat16), c8)
    p, OH, OW = _im2col_nhwc(xq, k, stride, pad)
    R, K = p.shape
    assert K % _LANE == 0
    C_pad = _round_up(Cout, _LANE)
    w2 = jnp.pad(_prep_weight(weight, c8), ((0, 0), (0, C_pad - Cout)))
    return p, w2.astype(jnp.bfloat16), OH, OW, R, K, Cout, C_pad


# ------------------------------- conv layers -------------------------------- #
def conv_bias_leaky(x, weight, bias, *, stride, pad):
    """Conv2d(k=4, bias=True) + LeakyReLU(0.2).  NHWC in -> NHWC bf16 out."""
    N = x.shape[0]
    p, w2, OH, OW, R, K, Cout, C_pad = _conv_setup(x, weight, stride, pad)
    b2 = jnp.pad(bias, (0, C_pad - Cout)).reshape(1, C_pad).astype(jnp.float32)
    tile_r = _row_tile(R, split_for_megacore=True)
    grid_n = pl.cdiv(R, tile_r)
    vmem = _vmem_limit(2 * tile_r * K * 2 + 2 * K * C_pad * 2
                       + 2 * C_pad * 4 + 2 * tile_r * C_pad * 2)
    out = pl.pallas_call(
        _gemm_bias_leaky_kernel,
        out_shape=jax.ShapeDtypeStruct((R, C_pad), jnp.bfloat16),
        grid=(grid_n,),
        in_specs=[pl.BlockSpec((tile_r, K), lambda i: (i, 0)),
                  _const_spec((K, C_pad)),
                  _const_spec((1, C_pad))],
        out_specs=pl.BlockSpec((tile_r, C_pad), lambda i: (i, 0)),
        compiler_params=pltpu.CompilerParams(
            dimension_semantics=("parallel",), vmem_limit_bytes=vmem),
        cost_estimate=pl.CostEstimate(
            flops=2 * R * K * C_pad, transcendentals=0,
            bytes_accessed=R * K * 2 + K * C_pad * 2 + R * C_pad * 2),
    )(p, w2, b2)
    return out[:, :Cout].reshape(N, OH, OW, Cout)


def _bn_fused_call(p, w2, g2, b2, R, K, C_pad, tile_r, grid_n):
    kernel = _make_fused_bn_kernel(R, tile_r, grid_n)
    vmem = _vmem_limit(2 * tile_r * K * 2 + 2 * K * C_pad * 2 + 4 * C_pad * 4
                       + grid_n * tile_r * C_pad * 4
                       + 2 * tile_r * C_pad * 2 + 4 * C_pad * 4)
    return pl.pallas_call(
        kernel,
        out_shape=jax.ShapeDtypeStruct((R, C_pad), jnp.bfloat16),
        grid=(2, grid_n),
        in_specs=[
            # Phase 0 walks the row tiles; phase 1 keeps the last index so the
            # patch block is not re-fetched while the affine phase runs.
            pl.BlockSpec((tile_r, K),
                         lambda ph, i: (i * (1 - ph) + (grid_n - 1) * ph, 0)),
            _const_spec((K, C_pad)),
            _const_spec((1, C_pad)),
            _const_spec((1, C_pad)),
        ],
        # Output blocks are only written (and only become valid) in phase 1.
        out_specs=pl.BlockSpec((tile_r, C_pad), lambda ph, i: (i * ph, 0)),
        scratch_shapes=[pltpu.VMEM((grid_n, tile_r, C_pad), jnp.float32),  # z
                        pltpu.VMEM((2, C_pad), jnp.float32),               # stats
                        pltpu.VMEM((2, C_pad), jnp.float32)],              # scale/shift
        compiler_params=pltpu.CompilerParams(
            dimension_semantics=("arbitrary", "arbitrary"),
            vmem_limit_bytes=vmem),
        cost_estimate=pl.CostEstimate(
            flops=2 * R * K * C_pad + 8 * R * C_pad, transcendentals=0,
            bytes_accessed=R * K * 2 + K * C_pad * 2 + R * C_pad * 2),
    )(p, w2, g2, b2)


def _bn_two_pass_call(p, w2, g2, b2, R, K, C_pad, tile_r, grid_n):
    # Fallback when z does not fit VMEM.  Statistics are computed from the
    # in-register f32 z; the stored z copy is kept f32 so the normalized
    # output stays bit-comparable with the f32 reference.
    kernel1 = _make_gemm_stats_kernel(R, tile_r)
    vmem1 = _vmem_limit(2 * tile_r * K * 2 + 2 * K * C_pad * 2
                        + 2 * tile_r * C_pad * 4 + 2 * 2 * C_pad * 4)
    z, part = pl.pallas_call(
        kernel1,
        out_shape=(jax.ShapeDtypeStruct((R, C_pad), jnp.float32),
                   jax.ShapeDtypeStruct((grid_n, 2, C_pad), jnp.float32)),
        grid=(grid_n,),
        in_specs=[pl.BlockSpec((tile_r, K), lambda i: (i, 0)),
                  _const_spec((K, C_pad))],
        out_specs=(pl.BlockSpec((tile_r, C_pad), lambda i: (i, 0)),
                   pl.BlockSpec((1, 2, C_pad), lambda i: (i, 0, 0))),
        compiler_params=pltpu.CompilerParams(
            dimension_semantics=("parallel",), vmem_limit_bytes=vmem1),
        cost_estimate=pl.CostEstimate(
            flops=2 * R * K * C_pad, transcendentals=0,
            bytes_accessed=R * K * 2 + K * C_pad * 2 + R * C_pad * 4
            + grid_n * 2 * C_pad * 4),
    )(p, w2)

    sums = jnp.sum(part, axis=0)                       # (2, C_pad)
    mean = sums[0] / jnp.float32(R)
    var = jnp.maximum(sums[1] / jnp.float32(R) - mean * mean, 0.0)
    scale = g2[0] * jax.lax.rsqrt(var + BN_EPS)
    shift = b2[0] - mean * scale

    # Memory-bound affine pass: much larger row tile (review: tile sweep).
    tile2 = _row_tile(R, cap=1024, split_for_megacore=True)
    grid2 = pl.cdiv(R, tile2)
    vmem2 = _vmem_limit(2 * tile2 * C_pad * 4 + 2 * tile2 * C_pad * 2
                        + 4 * C_pad * 4)
    return pl.pallas_call(
        _affine_leaky_kernel,
        out_shape=jax.ShapeDtypeStruct((R, C_pad), jnp.bfloat16),
        grid=(grid2,),
        in_specs=[pl.BlockSpec((tile2, C_pad), lambda i: (i, 0)),
                  _const_spec((1, C_pad)),
                  _const_spec((1, C_pad))],
        out_specs=pl.BlockSpec((tile2, C_pad), lambda i: (i, 0)),
        compiler_params=pltpu.CompilerParams(
            dimension_semantics=("parallel",), vmem_limit_bytes=vmem2),
        cost_estimate=pl.CostEstimate(
            flops=3 * R * C_pad, transcendentals=0,
            bytes_accessed=R * C_pad * 4 + R * C_pad * 2),
    )(z, scale.reshape(1, C_pad), shift.reshape(1, C_pad))


def conv_bn_leaky(x, weight, gamma, beta, *, stride, pad):
    """Conv2d(k=4, bias=False) + BatchNorm2d (training-mode batch statistics)
    + LeakyReLU(0.2).  Single fused pallas_call when z fits VMEM, else 2-pass."""
    N = x.shape[0]
    p, w2, OH, OW, R, K, Cout, C_pad = _conv_setup(x, weight, stride, pad)
    g2 = jnp.pad(gamma, (0, C_pad - Cout), constant_values=1.0)
    g2 = g2.reshape(1, C_pad).astype(jnp.float32)
    b2 = jnp.pad(beta, (0, C_pad - Cout)).reshape(1, C_pad).astype(jnp.float32)

    tile_r = _row_tile(R)
    grid_n = pl.cdiv(R, tile_r)
    z_bytes = grid_n * tile_r * C_pad * 4
    if z_bytes <= _fused_bn_z_budget():
        out = _bn_fused_call(p, w2, g2, b2, R, K, C_pad, tile_r, grid_n)
    else:
        out = _bn_two_pass_call(p, w2, g2, b2, R, K, C_pad, tile_r, grid_n)
    return out[:, :Cout].reshape(N, OH, OW, Cout)


def conv_sigmoid(x, weight, bias, *, stride, pad):
    """Conv2d(k=4, Cout=1, bias=True) + Sigmoid via the MXU; lane-dense output."""
    N = x.shape[0]
    p, w2, OH, OW, R, K, Cout, C_pad = _conv_setup(x, weight, stride, pad)
    b2 = jnp.pad(bias, (0, C_pad - Cout)).reshape(1, C_pad).astype(jnp.float32)
    tile_r = _row_tile(R, split_for_megacore=True)
    grid_n = pl.cdiv(R, tile_r)
    vmem = _vmem_limit(2 * tile_r * K * 2 + 2 * K * C_pad * 2
                       + 2 * C_pad * 4 + 2 * tile_r * C_pad * 4)
    out = pl.pallas_call(
        _gemm_bias_sigmoid_kernel,
        out_shape=jax.ShapeDtypeStruct((R, C_pad), jnp.float32),
        grid=(grid_n,),
        in_specs=[pl.BlockSpec((tile_r, K), lambda i: (i, 0)),
                  _const_spec((K, C_pad)),
                  _const_spec((1, C_pad))],
        out_specs=pl.BlockSpec((tile_r, C_pad), lambda i: (i, 0)),
        compiler_params=pltpu.CompilerParams(
            dimension_semantics=("parallel",), vmem_limit_bytes=vmem),
        cost_estimate=pl.CostEstimate(
            flops=2 * R * K * C_pad, transcendentals=R * C_pad,
            bytes_accessed=R * K * 2 + K * C_pad * 2 + R * C_pad * 4),
    )(p, w2, b2)
    return out[:, :Cout].reshape(N, OH, OW, Cout)


# ---------------------------- model definition ----------------------------- #
def init_params(key, in_channels=6, features=8):
    ks = jax.random.split(key, 14)
    f = features

    def conv_w(k, co, ci):
        return 0.05 * jax.random.normal(k, (co, ci, 4, 4), jnp.float32)

    return {
        "l1_w": conv_w(ks[0], f, in_channels),
        "l1_b": 0.05 * jax.random.normal(ks[1], (f,), jnp.float32),
        "l2_w": conv_w(ks[2], 2 * f, f),
        "l2_g": 1.0 + 0.1 * jax.random.normal(ks[3], (2 * f,), jnp.float32),
        "l2_be": 0.1 * jax.random.normal(ks[4], (2 * f,), jnp.float32),
        "l3_w": conv_w(ks[5], 4 * f, 2 * f),
        "l3_g": 1.0 + 0.1 * jax.random.normal(ks[6], (4 * f,), jnp.float32),
        "l3_be": 0.1 * jax.random.normal(ks[7], (4 * f,), jnp.float32),
        "l4_w": conv_w(ks[8], 8 * f, 4 * f),
        "l4_g": 1.0 + 0.1 * jax.random.normal(ks[9], (8 * f,), jnp.float32),
        "l4_be": 0.1 * jax.random.normal(ks[10], (8 * f,), jnp.float32),
        "l5_w": conv_w(ks[11], 1, 8 * f),
        "l5_b": 0.05 * jax.random.normal(ks[12], (1,), jnp.float32),
    }


def patch_discriminator(params, x, y):
    """x, y: NCHW float32 (PyTorch layout).  Returns NCHW sigmoid patch map."""
    h = jnp.concatenate([x, y], axis=1)
    h = jnp.transpose(h, (0, 2, 3, 1))                        # NCHW -> NHWC, once
    h = conv_bias_leaky(h, params["l1_w"], params["l1_b"], stride=2, pad=1)
    h = conv_bn_leaky(h, params["l2_w"], params["l2_g"], params["l2_be"], stride=2, pad=1)
    h = conv_bn_leaky(h, params["l3_w"], params["l3_g"], params["l3_be"], stride=2, pad=1)
    h = conv_bn_leaky(h, params["l4_w"], params["l4_g"], params["l4_be"], stride=1, pad=1)
    h = conv_sigmoid(h, params["l5_w"], params["l5_b"], stride=1, pad=1)
    return jnp.transpose(h, (0, 3, 1, 2))                     # NHWC -> NCHW, once


# --------------------------- pure-JAX reference ----------------------------- #
# Mirrors the kernel's precision policy (bf16 conv operands, f32 accumulation,
# f32 BN / activation math) so the comparison is apples-to-apples.
def _ref_conv(x, w, b, stride, pad):
    x = x.astype(jnp.bfloat16)
    w = w.astype(jnp.bfloat16)
    out = jax.lax.conv_general_dilated(
        x, w, (stride, stride), [(pad, pad), (pad, pad)],
        dimension_numbers=("NCHW", "OIHW", "NCHW"),
        preferred_element_type=jnp.float32)
    if b is not None:
        out = out + b.reshape(1, -1, 1, 1)
    return out


def _ref_bn(h, g, be):
    m = jnp.mean(h, axis=(0, 2, 3), keepdims=True)
    v = jnp.mean(jnp.square(h - m), axis=(0, 2, 3), keepdims=True)
    return (h - m) / jnp.sqrt(v + BN_EPS) * g.reshape(1, -1, 1, 1) + be.reshape(1, -1, 1, 1)


def _lrelu(h):
    return jnp.where(h >= 0, h, LEAKY_SLOPE * h)


def ref_forward(params, x, y):
    h = jnp.concatenate([x, y], axis=1)
    h = _lrelu(_ref_conv(h, params["l1_w"], params["l1_b"], 2, 1))
    h = _lrelu(_ref_bn(_ref_conv(h, params["l2_w"], None, 2, 1),
                       params["l2_g"], params["l2_be"]))
    h = _lrelu(_ref_bn(_ref_conv(h, params["l3_w"], None, 2, 1),
                       params["l3_g"], params["l3_be"]))
    h = _lrelu(_ref_bn(_ref_conv(h, params["l4_w"], None, 1, 1),
                       params["l4_g"], params["l4_be"]))
    h = jax.nn.sigmoid(_ref_conv(h, params["l5_w"], params["l5_b"], 1, 1))
    return h


# ----------------------------------- main ----------------------------------- #
if __name__ == "__main__":
    key = jax.random.PRNGKey(0)
    kx, ky, kp = jax.random.split(key, 3)

    N, C, H, W = 2, 3, 64, 64          # x and y each 3 channels -> 6 concatenated
    FEATURES = 8                       # small "features" for a quick synthetic run

    x = jax.random.normal(kx, (N, C, H, W), jnp.float32)
    y = jax.random.normal(ky, (N, C, H, W), jnp.float32)
    params = init_params(kp, in_channels=2 * C, features=FEATURES)

    fwd = jax.jit(patch_discriminator)
    out = jax.block_until_ready(fwd(params, x, y))
    ref = jax.block_until_ready(jax.jit(ref_forward)(params, x, y))

    # 64 -> 32 -> 16 -> 8 -> 7 -> 6 spatial
    assert out.shape == (N, 1, 6, 6), out.shape
    err = float(jnp.max(jnp.abs(out - ref)))
    assert jnp.allclose(out, ref, rtol=2e-3, atol=2e-3), f"max abs err {err}"
    print("KERNEL_OK")
</pallas_src>

<mosaic_0001>
module attributes {stable_mosaic.version = 11 : i64} {
  func.func @_gemm_bias_leaky_kernel(%arg0: i32, %arg1: memref<256x128xbf16, #tpu.memory_space<vmem>>, %arg2: memref<128x128xbf16, #tpu.memory_space<vmem>>, %arg3: memref<1x128xf32, #tpu.memory_space<vmem>>, %arg4: memref<256x128xbf16, #tpu.memory_space<vmem>>) attributes {dimension_semantics = [#tpu.dimension_semantics<parallel>], iteration_bounds = array<i64: 8>, scalar_prefetch = 0 : i64, scratch_operands = 0 : i64, tpu.core_type = #tpu.core_type<tc>, window_params = [{transform_indices = @transform_0, window_bounds = array<i64: 256, 128>}, {pipeline_mode = #tpu.pipeline_mode<synchronous>, transform_indices = @transform_1, window_bounds = array<i64: 128, 128>}, {pipeline_mode = #tpu.pipeline_mode<synchronous>, transform_indices = @transform_2, window_bounds = array<i64: 1, 128>}, {transform_indices = @transform_3, window_bounds = array<i64: 256, 128>}]} {
    %c0 = arith.constant 0 : index
    %c0_0 = arith.constant 0 : index
    %0 = vector.load %arg1[%c0, %c0_0] : memref<256x128xbf16, #tpu.memory_space<vmem>>, vector<256x128xbf16>
    %c0_1 = arith.constant 0 : index
    %c0_2 = arith.constant 0 : index
    %1 = vector.load %arg2[%c0_1, %c0_2] : memref<128x128xbf16, #tpu.memory_space<vmem>>, vector<128x128xbf16>
    %cst = arith.constant dense<0.000000e+00> : vector<256x128xf32>
    %2 = tpu.matmul %0, %1, %cst {dimension_numbers = #tpu.dot_dimension_numbers<[1], [0], [0], [1], [0, 0, 1, 1], [], []>} : vector<256x128xbf16>, vector<128x128xbf16>, vector<256x128xf32> -> vector<256x128xf32>
    %c0_3 = arith.constant 0 : index
    %c0_4 = arith.constant 0 : index
    %3 = vector.load %arg3[%c0_3, %c0_4] : memref<1x128xf32, #tpu.memory_space<vmem>>, vector<1x128xf32>
    %4 = vector.broadcast %3 : vector<1x128xf32> to vector<256x128xf32>
    %5 = arith.addf %2, %4 : vector<256x128xf32>
    %cst_5 = arith.constant 0.000000e+00 : f32
    %6 = vector.broadcast %cst_5 : f32 to vector<256x128xf32>
    %7 = arith.cmpf oge, %5, %6 : vector<256x128xf32>
    %cst_6 = arith.constant 2.000000e-01 : f32
    %8 = vector.broadcast %cst_6 : f32 to vector<256x128xf32>
    %9 = arith.mulf %8, %5 : vector<256x128xf32>
    %10 = arith.select %7, %5, %9 : vector<256x128xi1>, vector<256x128xf32>
    %11 = arith.truncf %10 : vector<256x128xf32> to vector<256x128xbf16>
    %c0_7 = arith.constant 0 : index
    %c0_8 = arith.constant 0 : index
    %12 = vector.load %arg4[%c0_7, %c0_8] : memref<256x128xbf16, #tpu.memory_space<vmem>>, vector<256x128xbf16>
    tpu.vector_store %arg4[%c0_7, %c0_8], %11 {strides = array<i32>} : memref<256x128xbf16, #tpu.memory_space<vmem>>, vector<256x128xbf16>,
    return
  }
  func.func @transform_0(%arg0: i32) -> (i32, i32) {
    %c0_i32 = arith.constant 0 : i32
    %c0_i32_0 = arith.constant 0 : i32
    return %arg0, %c0_i32 : i32, i32
  }
  func.func @transform_1(%arg0: i32) -> (i32, i32) {
    %c0_i32 = arith.constant 0 : i32
    %c0_i32_0 = arith.constant 0 : i32
    %c0_i32_1 = arith.constant 0 : i32
    return %c0_i32, %c0_i32_0 : i32, i32
  }
  func.func @transform_2(%arg0: i32) -> (i32, i32) {
    %c0_i32 = arith.constant 0 : i32
    %c0_i32_0 = arith.constant 0 : i32
    %c0_i32_1 = arith.constant 0 : i32
    return %c0_i32, %c0_i32_0 : i32, i32
  }
  func.func @transform_3(%arg0: i32) -> (i32, i32) {
    %c0_i32 = arith.constant 0 : i32
    %c0_i32_0 = arith.constant 0 : i32
    return %arg0, %c0_i32 : i32, i32
  }
}

module attributes {stable_mosaic.version = 11 : i64} {
  func.func @kernel(%arg0: i32, %arg1: i32, %arg2: memref<256x128xbf16, #tpu.memory_space<vmem>>, %arg3: memref<128x128xbf16, #tpu.memory_space<vmem>>, %arg4: memref<1x128xf32, #tpu.memory_space<vmem>>, %arg5: memref<1x128xf32, #tpu.memory_space<vmem>>, %arg6: memref<256x128xbf16, #tpu.memory_space<vmem>>, %arg7: memref<2x256x128xf32, #tpu.memory_space<vmem>>, %arg8: memref<2x128xf32, #tpu.memory_space<vmem>>, %arg9: memref<2x128xf32, #tpu.memory_space<vmem>>) attributes {dimension_semantics = [#tpu.dimension_semantics<arbitrary>, #tpu.dimension_semantics<arbitrary>], iteration_bounds = array<i64: 2, 2>, scalar_prefetch = 0 : i64, scratch_operands = 3 : i64, tpu.core_type = #tpu.core_type<tc>, window_params = [{transform_indices = @transform_0, window_bounds = array<i64: 256, 128>}, {pipeline_mode = #tpu.pipeline_mode<synchronous>, transform_indices = @transform_1, window_bounds = array<i64: 128, 128>}, {pipeline_mode = #tpu.pipeline_mode<synchronous>, transform_indices = @transform_2, window_bounds = array<i64: 1, 128>}, {pipeline_mode = #tpu.pipeline_mode<synchronous>, transform_indices = @transform_3, window_bounds = array<i64: 1, 128>}, {transform_indices = @transform_4, window_bounds = array<i64: 256, 128>}]} {
    %c0_i32 = arith.constant 0 : i32
    %0 = arith.cmpi eq, %arg0, %c0_i32 : i32
    %1 = arith.extui %0 : i1 to i32
    %c0_i32_0 = arith.constant 0 : i32
    %2 = arith.cmpi ne, %1, %c0_i32_0 : i32
    scf.if %2 {
      %c0_i32_2 = arith.constant 0 : i32
      %6 = arith.cmpi eq, %arg1, %c0_i32_2 : i32
      %7 = arith.extui %6 : i1 to i32
      %c0_i32_3 = arith.constant 0 : i32
      %8 = arith.cmpi ne, %7, %c0_i32_3 : i32
      scf.if %8 {
        %cst_19 = arith.constant 0.000000e+00 : f32
        %37 = vector.broadcast %cst_19 : f32 to vector<2x128xf32>
        %c0_20 = arith.constant 0 : index
        %c0_21 = arith.constant 0 : index
        %38 = vector.load %arg8[%c0_20, %c0_21] : memref<2x128xf32, #tpu.memory_space<vmem>>, vector<2x128xf32>
        tpu.vector_store %arg8[%c0_20, %c0_21], %37 {strides = array<i32>} : memref<2x128xf32, #tpu.memory_space<vmem>>, vector<2x128xf32>,
      } else {
      }
      %c0 = arith.constant 0 : index
      %c0_4 = arith.constant 0 : index
      %9 = vector.load %arg2[%c0, %c0_4] : memref<256x128xbf16, #tpu.memory_space<vmem>>, vector<256x128xbf16>
      %c0_5 = arith.constant 0 : index
      %c0_6 = arith.constant 0 : index
      %10 = vector.load %arg3[%c0_5, %c0_6] : memref<128x128xbf16, #tpu.memory_space<vmem>>, vector<128x128xbf16>
      %cst = arith.constant dense<0.000000e+00> : vector<256x128xf32>
      %11 = tpu.matmul %9, %10, %cst {dimension_numbers = #tpu.dot_dimension_numbers<[1], [0], [0], [1], [0, 0, 1, 1], [], []>} : vector<256x128xbf16>, vector<128x128xbf16>, vector<256x128xf32> -> vector<256x128xf32>
      %12 = arith.index_cast %arg1 : i32 to index
      %c0_7 = arith.constant 0 : index
      %c0_8 = arith.constant 0 : index
      %13 = vector.load %arg7[%12, %c0_7, %c0_8] : memref<2x256x128xf32, #tpu.memory_space<vmem>>, vector<1x256x128xf32>
      %14 = vector.shape_cast %13 : vector<1x256x128xf32> to vector<256x128xf32>
      %15 = vector.shape_cast %11 : vector<256x128xf32> to vector<1x256x128xf32>
      tpu.vector_store %arg7[%12, %c0_7, %c0_8], %15 {strides = array<i32>} : memref<2x256x128xf32, #tpu.memory_space<vmem>>, vector<1x256x128xf32>,
      %16 = tpu.iota {dimensions = array<i32: 0>} : vector<256x1xi32>
      %c256_i32 = arith.constant 256 : i32
      %17 = arith.muli %arg1, %c256_i32 : i32
      %18 = vector.broadcast %17 : i32 to vector<256x1xi32>
      %19 = arith.addi %16, %18 : vector<256x1xi32>
      %c512_i32 = arith.constant 512 : i32
      %20 = vector.broadcast %c512_i32 : i32 to vector<256x1xi32>
      %21 = arith.cmpi slt, %19, %20 : vector<256x1xi32>
      %cst_9 = arith.constant 0.000000e+00 : f32
      %22 = vector.shape_cast %21 : vector<256x1xi1> to vector<256x1xi1>
      %23 = vector.broadcast %22 : vector<256x1xi1> to vector<256x128xi1>
      %24 = vector.broadcast %cst_9 : f32 to vector<256x128xf32>
      %25 = arith.select %23, %11, %24 : vector<256x128xi1>, vector<256x128xf32>
      %c0_10 = arith.constant 0 : index
      %c0_11 = arith.constant 0 : index
      %26 = vector.load %arg8[%c0_10, %c0_11] : memref<2x128xf32, #tpu.memory_space<vmem>>, vector<1x128xf32>
      %cst_12 = arith.constant dense<0.000000e+00> : vector<128xf32>
      %27 = vector.multi_reduction <add>, %25, %cst_12 [0] : vector<256x128xf32> to vector<128xf32>
      %28 = vector.shape_cast %27 : vector<128xf32> to vector<1x128xf32>
      %29 = arith.addf %26, %28 : vector<1x128xf32>
      %c0_13 = arith.constant 0 : index
      %c0_14 = arith.constant 0 : index
      %30 = vector.load %arg8[%c0_13, %c0_14] : memref<2x128xf32, #tpu.memory_space<vmem>>, vector<1x128xf32>
      tpu.vector_store %arg8[%c0_13, %c0_14], %29 {strides = array<i32>} : memref<2x128xf32, #tpu.memory_space<vmem>>, vector<1x128xf32>,
      %c1 = arith.constant 1 : index
      %c0_15 = arith.constant 0 : index
      %31 = vector.load %arg8[%c1, %c0_15] : memref<2x128xf32, #tpu.memory_space<vmem>>, vector<1x128xf32>
      %32 = arith.mulf %25, %25 : vector<256x128xf32>
      %cst_16 = arith.constant dense<0.000000e+00> : vector<128xf32>
      %33 = vector.multi_reduction <add>, %32, %cst_16 [0] : vector<256x128xf32> to vector<128xf32>
      %34 = vector.shape_cast %33 : vector<128xf32> to vector<1x128xf32>
      %35 = arith.addf %31, %34 : vector<1x128xf32>
      %c1_17 = arith.constant 1 : index
      %c0_18 = arith.constant 0 : index
      %36 = vector.load %arg8[%c1_17, %c0_18] : memref<2x128xf32, #tpu.memory_space<vmem>>, vector<1x128xf32>
      tpu.vector_store %arg8[%c1_17, %c0_18], %35 {strides = array<i32>} : memref<2x128xf32, #tpu.memory_space<vmem>>, vector<1x128xf32>,
    } else {
    }
    %c1_i32 = arith.constant 1 : i32
    %3 = arith.cmpi eq, %arg0, %c1_i32 : i32
    %4 = arith.extui %3 : i1 to i32
    %c0_i32_1 = arith.constant 0 : i32
    %5 = arith.cmpi ne, %4, %c0_i32_1 : i32
    scf.if %5 {
      %c0_i32_2 = arith.constant 0 : i32
      %6 = arith.cmpi eq, %arg1, %c0_i32_2 : i32
      %7 = arith.extui %6 : i1 to i32
      %c0_i32_3 = arith.constant 0 : i32
      %8 = arith.cmpi ne, %7, %c0_i32_3 : i32
      scf.if %8 {
        %c0_11 = arith.constant 0 : index
        %c0_12 = arith.constant 0 : index
        %25 = vector.load %arg8[%c0_11, %c0_12] : memref<2x128xf32, #tpu.memory_space<vmem>>, vector<1x128xf32>
        %cst_13 = arith.constant 0.001953125 : f32
        %26 = vector.broadcast %cst_13 : f32 to vector<1x128xf32>
        %27 = arith.mulf %25, %26 : vector<1x128xf32>
        %c1_14 = arith.constant 1 : index
        %c0_15 = arith.constant 0 : index
        %28 = vector.load %arg8[%c1_14, %c0_15] : memref<2x128xf32, #tpu.memory_space<vmem>>, vector<1x128xf32>
        %cst_16 = arith.constant 0.001953125 : f32
        %29 = vector.broadcast %cst_16 : f32 to vector<1x128xf32>
        %30 = arith.mulf %28, %29 : vector<1x128xf32>
        %31 = arith.mulf %27, %27 : vector<1x128xf32>
        %32 = arith.subf %30, %31 : vector<1x128xf32>
        %cst_17 = arith.constant 0.000000e+00 : f32
        %33 = vector.broadcast %cst_17 : f32 to vector<1x128xf32>
        %34 = arith.maximumf %32, %33 : vector<1x128xf32>
        %c0_18 = arith.constant 0 : index
        %c0_19 = arith.constant 0 : index
        %35 = vector.load %arg4[%c0_18, %c0_19] : memref<1x128xf32, #tpu.memory_space<vmem>>, vector<1x128xf32>
        %cst_20 = arith.constant 9.99999974E-6 : f32
        %36 = vector.broadcast %cst_20 : f32 to vector<1x128xf32>
        %37 = arith.addf %34, %36 : vector<1x128xf32>
        %38 = math.rsqrt %37 : vector<1x128xf32>
        %39 = arith.mulf %35, %38 : vector<1x128xf32>
        %c0_21 = arith.constant 0 : index
        %c0_22 = arith.constant 0 : index
        %40 = vector.load %arg9[%c0_21, %c0_22] : memref<2x128xf32, #tpu.memory_space<vmem>>, vector<1x128xf32>
        tpu.vector_store %arg9[%c0_21, %c0_22], %39 {strides = array<i32>} : memref<2x128xf32, #tpu.memory_space<vmem>>, vector<1x128xf32>,
        %c0_23 = arith.constant 0 : index
        %c0_24 = arith.constant 0 : index
        %41 = vector.load %arg5[%c0_23, %c0_24] : memref<1x128xf32, #tpu.memory_space<vmem>>, vector<1x128xf32>
        %42 = arith.mulf %27, %39 : vector<1x128xf32>
        %43 = arith.subf %41, %42 : vector<1x128xf32>
        %c1_25 = arith.constant 1 : index
        %c0_26 = arith.constant 0 : index
        %44 = vector.load %arg9[%c1_25, %c0_26] : memref<2x128xf32, #tpu.memory_space<vmem>>, vector<1x128xf32>
        tpu.vector_store %arg9[%c1_25, %c0_26], %43 {strides = array<i32>} : memref<2x128xf32, #tpu.memory_space<vmem>>, vector<1x128xf32>,
      } else {
      }
      %9 = arith.index_cast %arg1 : i32 to index
      %c0 = arith.constant 0 : index
      %c0_4 = arith.constant 0 : index
      %10 = vector.load %arg7[%9, %c0, %c0_4] : memref<2x256x128xf32, #tpu.memory_space<vmem>>, vector<1x256x128xf32>
      %11 = vector.shape_cast %10 : vector<1x256x128xf32> to vector<256x128xf32>
      %c0_5 = arith.constant 0 : index
      %c0_6 = arith.constant 0 : index
      %12 = vector.load %arg9[%c0_5, %c0_6] : memref<2x128xf32, #tpu.memory_space<vmem>>, vector<1x128xf32>
      %13 = vector.broadcast %12 : vector<1x128xf32> to vector<256x128xf32>
      %14 = arith.mulf %11, %13 : vector<256x128xf32>
      %c1 = arith.constant 1 : index
      %c0_7 = arith.constant 0 : index
      %15 = vector.load %arg9[%c1, %c0_7] : memref<2x128xf32, #tpu.memory_space<vmem>>, vector<1x128xf32>
      %16 = vector.broadcast %15 : vector<1x128xf32> to vector<256x128xf32>
      %17 = arith.addf %14, %16 : vector<256x128xf32>
      %cst = arith.constant 0.000000e+00 : f32
      %18 = vector.broadcast %cst : f32 to vector<256x128xf32>
      %19 = arith.cmpf oge, %17, %18 : vector<256x128xf32>
      %cst_8 = arith.constant 2.000000e-01 : f32
      %20 = vector.broadcast %cst_8 : f32 to vector<256x128xf32>
      %21 = arith.mulf %20, %17 : vector<256x128xf32>
      %22 = arith.select %19, %17, %21 : vector<256x128xi1>, vector<256x128xf32>
      %23 = arith.truncf %22 : vector<256x128xf32> to vector<256x128xbf16>
      %c0_9 = arith.constant 0 : index
      %c0_10 = arith.constant 0 : index
      %24 = vector.load %arg6[%c0_9, %c0_10] : memref<256x128xbf16, #tpu.memory_space<vmem>>, vector<256x128xbf16>
      tpu.vector_store %arg6[%c0_9, %c0_10], %23 {strides = array<i32>} : memref<256x128xbf16, #tpu.memory_space<vmem>>, vector<256x128xbf16>,
    } else {
    }
    return
  }
  func.func @transform_0(%arg0: i32, %arg1: i32) -> (i32, i32) {
    %c1_i32 = arith.constant 1 : i32
    %0 = arith.subi %c1_i32, %arg0 : i32
    %1 = arith.muli %arg1, %0 : i32
    %c1_i32_0 = arith.constant 1 : i32
    %2 = arith.muli %c1_i32_0, %arg0 : i32
    %3 = arith.addi %1, %2 : i32
    %c0_i32 = arith.constant 0 : i32
    %c0_i32_1 = arith.constant 0 : i32
    return %3, %c0_i32 : i32, i32
  }
  func.func @transform_1(%arg0: i32, %arg1: i32) -> (i32, i32) {
    %c0_i32 = arith.constant 0 : i32
    %c0_i32_0 = arith.constant 0 : i32
    %c0_i32_1 = arith.constant 0 : i32
    return %c0_i32, %c0_i32_0 : i32, i32
  }
  func.func @transform_2(%arg0: i32, %arg1: i32) -> (i32, i32) {
    %c0_i32 = arith.constant 0 : i32
    %c0_i32_0 = arith.constant 0 : i32
    %c0_i32_1 = arith.constant 0 : i32
    return %c0_i32, %c0_i32_0 : i32, i32
  }
  func.func @transform_3(%arg0: i32, %arg1: i32) -> (i32, i32) {
    %c0_i32 = arith.constant 0 : i32
    %c0_i32_0 = arith.constant 0 : i32
    %c0_i32_1 = arith.constant 0 : i32
    return %c0_i32, %c0_i32_0 : i32, i32
  }
  func.func @transform_4(%arg0: i32, %arg1: i32) -> (i32, i32) {
    %0 = arith.muli %arg1, %arg0 : i32
    %c0_i32 = arith.constant 0 : i32
    %c0_i32_0 = arith.constant 0 : i32
    return %0, %c0_i32 : i32, i32
  }
}

module attributes {stable_mosaic.version = 11 : i64} {
  func.func @kernel(%arg0: i32, %arg1: i32, %arg2: memref<128x256xbf16, #tpu.memory_space<vmem>>, %arg3: memref<256x128xbf16, #tpu.memory_space<vmem>>, %arg4: memref<1x128xf32, #tpu.memory_space<vmem>>, %arg5: memref<1x128xf32, #tpu.memory_space<vmem>>, %arg6: memref<128x128xbf16, #tpu.memory_space<vmem>>, %arg7: memref<1x128x128xf32, #tpu.memory_space<vmem>>, %arg8: memref<2x128xf32, #tpu.memory_space<vmem>>, %arg9: memref<2x128xf32, #tpu.memory_space<vmem>>) attributes {dimension_semantics = [#tpu.dimension_semantics<arbitrary>, #tpu.dimension_semantics<arbitrary>], iteration_bounds = array<i64: 2, 1>, scalar_prefetch = 0 : i64, scratch_operands = 3 : i64, tpu.core_type = #tpu.core_type<tc>, window_params = [{transform_indices = @transform_0, window_bounds = array<i64: 128, 256>}, {pipeline_mode = #tpu.pipeline_mode<synchronous>, transform_indices = @transform_1, window_bounds = array<i64: 256, 128>}, {pipeline_mode = #tpu.pipeline_mode<synchronous>, transform_indices = @transform_2, window_bounds = array<i64: 1, 128>}, {pipeline_mode = #tpu.pipeline_mode<synchronous>, transform_indices = @transform_3, window_bounds = array<i64: 1, 128>}, {transform_indices = @transform_4, window_bounds = array<i64: 128, 128>}]} {
    %c0_i32 = arith.constant 0 : i32
    %0 = arith.cmpi eq, %arg0, %c0_i32 : i32
    %1 = arith.extui %0 : i1 to i32
    %c0_i32_0 = arith.constant 0 : i32
    %2 = arith.cmpi ne, %1, %c0_i32_0 : i32
    scf.if %2 {
      %c0_i32_2 = arith.constant 0 : i32
      %6 = arith.cmpi eq, %arg1, %c0_i32_2 : i32
      %7 = arith.extui %6 : i1 to i32
      %c0_i32_3 = arith.constant 0 : i32
      %8 = arith.cmpi ne, %7, %c0_i32_3 : i32
      scf.if %8 {
        %cst_20 = arith.constant 0.000000e+00 : f32
        %37 = vector.broadcast %cst_20 : f32 to vector<2x128xf32>
        %c0_21 = arith.constant 0 : index
        %c0_22 = arith.constant 0 : index
        %38 = vector.load %arg8[%c0_21, %c0_22] : memref<2x128xf32, #tpu.memory_space<vmem>>, vector<2x128xf32>
        tpu.vector_store %arg8[%c0_21, %c0_22], %37 {strides = array<i32>} : memref<2x128xf32, #tpu.memory_space<vmem>>, vector<2x128xf32>,
      } else {
      }
      %c0 = arith.constant 0 : index
      %c0_4 = arith.constant 0 : index
      %9 = vector.load %arg2[%c0, %c0_4] : memref<128x256xbf16, #tpu.memory_space<vmem>>, vector<128x256xbf16>
      %c0_5 = arith.constant 0 : index
      %c0_6 = arith.constant 0 : index
      %10 = vector.load %arg3[%c0_5, %c0_6] : memref<256x128xbf16, #tpu.memory_space<vmem>>, vector<256x128xbf16>
      %cst = arith.constant dense<0.000000e+00> : vector<128x128xf32>
      %11 = tpu.matmul %9, %10, %cst {dimension_numbers = #tpu.dot_dimension_numbers<[1], [0], [0], [1], [0, 0, 1, 1], [], []>} : vector<128x256xbf16>, vector<256x128xbf16>, vector<128x128xf32> -> vector<128x128xf32>
      %12 = arith.index_cast %arg1 : i32 to index
      %c0_7 = arith.constant 0 : index
      %c0_8 = arith.constant 0 : index
      %13 = vector.load %arg7[%12, %c0_7, %c0_8] : memref<1x128x128xf32, #tpu.memory_space<vmem>>, vector<1x128x128xf32>
      %14 = vector.shape_cast %13 : vector<1x128x128xf32> to vector<128x128xf32>
      %15 = vector.shape_cast %11 : vector<128x128xf32> to vector<1x128x128xf32>
      tpu.vector_store %arg7[%12, %c0_7, %c0_8], %15 {strides = array<i32>} : memref<1x128x128xf32, #tpu.memory_space<vmem>>, vector<1x128x128xf32>,
      %16 = tpu.iota {dimensions = array<i32: 0>} : vector<128x1xi32>
      %c128_i32 = arith.constant 128 : i32
      %17 = arith.muli %arg1, %c128_i32 : i32
      %18 = vector.broadcast %17 : i32 to vector<128x1xi32>
      %19 = arith.addi %16, %18 : vector<128x1xi32>
      %c128_i32_9 = arith.constant 128 : i32
      %20 = vector.broadcast %c128_i32_9 : i32 to vector<128x1xi32>
      %21 = arith.cmpi slt, %19, %20 : vector<128x1xi32>
      %cst_10 = arith.constant 0.000000e+00 : f32
      %22 = vector.shape_cast %21 : vector<128x1xi1> to vector<128x1xi1>
      %23 = vector.broadcast %22 : vector<128x1xi1> to vector<128x128xi1>
      %24 = vector.broadcast %cst_10 : f32 to vector<128x128xf32>
      %25 = arith.select %23, %11, %24 : vector<128x128xi1>, vector<128x128xf32>
      %c0_11 = arith.constant 0 : index
      %c0_12 = arith.constant 0 : index
      %26 = vector.load %arg8[%c0_11, %c0_12] : memref<2x128xf32, #tpu.memory_space<vmem>>, vector<1x128xf32>
      %cst_13 = arith.constant dense<0.000000e+00> : vector<128xf32>
      %27 = vector.multi_reduction <add>, %25, %cst_13 [0] : vector<128x128xf32> to vector<128xf32>
      %28 = vector.shape_cast %27 : vector<128xf32> to vector<1x128xf32>
      %29 = arith.addf %26, %28 : vector<1x128xf32>
      %c0_14 = arith.constant 0 : index
      %c0_15 = arith.constant 0 : index
      %30 = vector.load %arg8[%c0_14, %c0_15] : memref<2x128xf32, #tpu.memory_space<vmem>>, vector<1x128xf32>
      tpu.vector_store %arg8[%c0_14, %c0_15], %29 {strides = array<i32>} : memref<2x128xf32, #tpu.memory_space<vmem>>, vector<1x128xf32>,
      %c1 = arith.constant 1 : index
      %c0_16 = arith.constant 0 : index
      %31 = vector.load %arg8[%c1, %c0_16] : memref<2x128xf32, #tpu.memory_space<vmem>>, vector<1x128xf32>
      %32 = arith.mulf %25, %25 : vector<128x128xf32>
      %cst_17 = arith.constant dense<0.000000e+00> : vector<128xf32>
      %33 = vector.multi_reduction <add>, %32, %cst_17 [0] : vector<128x128xf32> to vector<128xf32>
      %34 = vector.shape_cast %33 : vector<128xf32> to vector<1x128xf32>
      %35 = arith.addf %31, %34 : vector<1x128xf32>
      %c1_18 = arith.constant 1 : index
      %c0_19 = arith.constant 0 : index
      %36 = vector.load %arg8[%c1_18, %c0_19] : memref<2x128xf32, #tpu.memory_space<vmem>>, vector<1x128xf32>
      tpu.vector_store %arg8[%c1_18, %c0_19], %35 {strides = array<i32>} : memref<2x128xf32, #tpu.memory_space<vmem>>, vector<1x128xf32>,
    } else {
    }
    %c1_i32 = arith.constant 1 : i32
    %3 = arith.cmpi eq, %arg0, %c1_i32 : i32
    %4 = arith.extui %3 : i1 to i32
    %c0_i32_1 = arith.constant 0 : i32
    %5 = arith.cmpi ne, %4, %c0_i32_1 : i32
    scf.if %5 {
      %c0_i32_2 = arith.constant 0 : i32
      %6 = arith.cmpi eq, %arg1, %c0_i32_2 : i32
      %7 = arith.extui %6 : i1 to i32
      %c0_i32_3 = arith.constant 0 : i32
      %8 = arith.cmpi ne, %7, %c0_i32_3 : i32
      scf.if %8 {
        %c0_11 = arith.constant 0 : index
        %c0_12 = arith.constant 0 : index
        %25 = vector.load %arg8[%c0_11, %c0_12] : memref<2x128xf32, #tpu.memory_space<vmem>>, vector<1x128xf32>
        %cst_13 = arith.constant 7.812500e-03 : f32
        %26 = vector.broadcast %cst_13 : f32 to vector<1x128xf32>
        %27 = arith.mulf %25, %26 : vector<1x128xf32>
        %c1_14 = arith.constant 1 : index
        %c0_15 = arith.constant 0 : index
        %28 = vector.load %arg8[%c1_14, %c0_15] : memref<2x128xf32, #tpu.memory_space<vmem>>, vector<1x128xf32>
        %cst_16 = arith.constant 7.812500e-03 : f32
        %29 = vector.broadcast %cst_16 : f32 to vector<1x128xf32>
        %30 = arith.mulf %28, %29 : vector<1x128xf32>
        %31 = arith.mulf %27, %27 : vector<1x128xf32>
        %32 = arith.subf %30, %31 : vector<1x128xf32>
        %cst_17 = arith.constant 0.000000e+00 : f32
        %33 = vector.broadcast %cst_17 : f32 to vector<1x128xf32>
        %34 = arith.maximumf %32, %33 : vector<1x128xf32>
        %c0_18 = arith.constant 0 : index
        %c0_19 = arith.constant 0 : index
        %35 = vector.load %arg4[%c0_18, %c0_19] : memref<1x128xf32, #tpu.memory_space<vmem>>, vector<1x128xf32>
        %cst_20 = arith.constant 9.99999974E-6 : f32
        %36 = vector.broadcast %cst_20 : f32 to vector<1x128xf32>
        %37 = arith.addf %34, %36 : vector<1x128xf32>
        %38 = math.rsqrt %37 : vector<1x128xf32>
        %39 = arith.mulf %35, %38 : vector<1x128xf32>
        %c0_21 = arith.constant 0 : index
        %c0_22 = arith.constant 0 : index
        %40 = vector.load %arg9[%c0_21, %c0_22] : memref<2x128xf32, #tpu.memory_space<vmem>>, vector<1x128xf32>
        tpu.vector_store %arg9[%c0_21, %c0_22], %39 {strides = array<i32>} : memref<2x128xf32, #tpu.memory_space<vmem>>, vector<1x128xf32>,
        %c0_23 = arith.constant 0 : index
        %c0_24 = arith.constant 0 : index
        %41 = vector.load %arg5[%c0_23, %c0_24] : memref<1x128xf32, #tpu.memory_space<vmem>>, vector<1x128xf32>
        %42 = arith.mulf %27, %39 : vector<1x128xf32>
        %43 = arith.subf %41, %42 : vector<1x128xf32>
        %c1_25 = arith.constant 1 : index
        %c0_26 = arith.constant 0 : index
        %44 = vector.load %arg9[%c1_25, %c0_26] : memref<2x128xf32, #tpu.memory_space<vmem>>, vector<1x128xf32>
        tpu.vector_store %arg9[%c1_25, %c0_26], %43 {strides = array<i32>} : memref<2x128xf32, #tpu.memory_space<vmem>>, vector<1x128xf32>,
      } else {
      }
      %9 = arith.index_cast %arg1 : i32 to index
      %c0 = arith.constant 0 : index
      %c0_4 = arith.constant 0 : index
      %10 = vector.load %arg7[%9, %c0, %c0_4] : memref<1x128x128xf32, #tpu.memory_space<vmem>>, vector<1x128x128xf32>
      %11 = vector.shape_cast %10 : vector<1x128x128xf32> to vector<128x128xf32>
      %c0_5 = arith.constant 0 : index
      %c0_6 = arith.constant 0 : index
      %12 = vector.load %arg9[%c0_5, %c0_6] : memref<2x128xf32, #tpu.memory_space<vmem>>, vector<1x128xf32>
      %13 = vector.broadcast %12 : vector<1x128xf32> to vector<128x128xf32>
      %14 = arith.mulf %11, %13 : vector<128x128xf32>
      %c1 = arith.constant 1 : index
      %c0_7 = arith.constant 0 : index
      %15 = vector.load %arg9[%c1, %c0_7] : memref<2x128xf32, #tpu.memory_space<vmem>>, vector<1x128xf32>
      %16 = vector.broadcast %15 : vector<1x128xf32> to vector<128x128xf32>
      %17 = arith.addf %14, %16 : vector<128x128xf32>
      %cst = arith.constant 0.000000e+00 : f32
      %18 = vector.broadcast %cst : f32 to vector<128x128xf32>
      %19 = arith.cmpf oge, %17, %18 : vector<128x128xf32>
      %cst_8 = arith.constant 2.000000e-01 : f32
      %20 = vector.broadcast %cst_8 : f32 to vector<128x128xf32>
      %21 = arith.mulf %20, %17 : vector<128x128xf32>
      %22 = arith.select %19, %17, %21 : vector<128x128xi1>, vector<128x128xf32>
      %23 = arith.truncf %22 : vector<128x128xf32> to vector<128x128xbf16>
      %c0_9 = arith.constant 0 : index
      %c0_10 = arith.constant 0 : index
      %24 = vector.load %arg6[%c0_9, %c0_10] : memref<128x128xbf16, #tpu.memory_space<vmem>>, vector<128x128xbf16>
      tpu.vector_store %arg6[%c0_9, %c0_10], %23 {strides = array<i32>} : memref<128x128xbf16, #tpu.memory_space<vmem>>, vector<128x128xbf16>,
    } else {
    }
    return
  }
  func.func @transform_0(%arg0: i32, %arg1: i32) -> (i32, i32) {
    %c1_i32 = arith.constant 1 : i32
    %0 = arith.subi %c1_i32, %arg0 : i32
    %1 = arith.muli %arg1, %0 : i32
    %c0_i32 = arith.constant 0 : i32
    %2 = arith.muli %c0_i32, %arg0 : i32
    %3 = arith.addi %1, %2 : i32
    %c0_i32_0 = arith.constant 0 : i32
    %c0_i32_1 = arith.constant 0 : i32
    return %3, %c0_i32_0 : i32, i32
  }
  func.func @transform_1(%arg0: i32, %arg1: i32) -> (i32, i32) {
    %c0_i32 = arith.constant 0 : i32
    %c0_i32_0 = arith.constant 0 : i32
    %c0_i32_1 = arith.constant 0 : i32
    return %c0_i32, %c0_i32_0 : i32, i32
  }
  func.func @transform_2(%arg0: i32, %arg1: i32) -> (i32, i32) {
    %c0_i32 = arith.constant 0 : i32
    %c0_i32_0 = arith.constant 0 : i32
    %c0_i32_1 = arith.constant 0 : i32
    return %c0_i32, %c0_i32_0 : i32, i32
  }
  func.func @transform_3(%arg0: i32, %arg1: i32) -> (i32, i32) {
    %c0_i32 = arith.constant 0 : i32
    %c0_i32_0 = arith.constant 0 : i32
    %c0_i32_1 = arith.constant 0 : i32
    return %c0_i32, %c0_i32_0 : i32, i32
  }
  func.func @transform_4(%arg0: i32, %arg1: i32) -> (i32, i32) {
    %0 = arith.muli %arg1, %arg0 : i32
    %c0_i32 = arith.constant 0 : i32
    %c0_i32_0 = arith.constant 0 : i32
    return %0, %c0_i32 : i32, i32
  }
}

module attributes {stable_mosaic.version = 11 : i64} {
  func.func @kernel(%arg0: i32, %arg1: i32, %arg2: memref<98x512xbf16, #tpu.memory_space<vmem>>, %arg3: memref<512x128xbf16, #tpu.memory_space<vmem>>, %arg4: memref<1x128xf32, #tpu.memory_space<vmem>>, %arg5: memref<1x128xf32, #tpu.memory_space<vmem>>, %arg6: memref<98x128xbf16, #tpu.memory_space<vmem>>, %arg7: memref<1x98x128xf32, #tpu.memory_space<vmem>>, %arg8: memref<2x128xf32, #tpu.memory_space<vmem>>, %arg9: memref<2x128xf32, #tpu.memory_space<vmem>>) attributes {dimension_semantics = [#tpu.dimension_semantics<arbitrary>, #tpu.dimension_semantics<arbitrary>], iteration_bounds = array<i64: 2, 1>, scalar_prefetch = 0 : i64, scratch_operands = 3 : i64, tpu.core_type = #tpu.core_type<tc>, window_params = [{transform_indices = @transform_0, window_bounds = array<i64: 98, 512>}, {pipeline_mode = #tpu.pipeline_mode<synchronous>, transform_indices = @transform_1, window_bounds = array<i64: 512, 128>}, {pipeline_mode = #tpu.pipeline_mode<synchronous>, transform_indices = @transform_2, window_bounds = array<i64: 1, 128>}, {pipeline_mode = #tpu.pipeline_mode<synchronous>, transform_indices = @transform_3, window_bounds = array<i64: 1, 128>}, {transform_indices = @transform_4, window_bounds = array<i64: 98, 128>}]} {
    %c0_i32 = arith.constant 0 : i32
    %0 = arith.cmpi eq, %arg0, %c0_i32 : i32
    %1 = arith.extui %0 : i1 to i32
    %c0_i32_0 = arith.constant 0 : i32
    %2 = arith.cmpi ne, %1, %c0_i32_0 : i32
    scf.if %2 {
      %c0_i32_2 = arith.constant 0 : i32
      %6 = arith.cmpi eq, %arg1, %c0_i32_2 : i32
      %7 = arith.extui %6 : i1 to i32
      %c0_i32_3 = arith.constant 0 : i32
      %8 = arith.cmpi ne, %7, %c0_i32_3 : i32
      scf.if %8 {
        %cst_20 = arith.constant 0.000000e+00 : f32
        %37 = vector.broadcast %cst_20 : f32 to vector<2x128xf32>
        %c0_21 = arith.constant 0 : index
        %c0_22 = arith.constant 0 : index
        %38 = vector.load %arg8[%c0_21, %c0_22] : memref<2x128xf32, #tpu.memory_space<vmem>>, vector<2x128xf32>
        tpu.vector_store %arg8[%c0_21, %c0_22], %37 {strides = array<i32>} : memref<2x128xf32, #tpu.memory_space<vmem>>, vector<2x128xf32>,
      } else {
      }
      %c0 = arith.constant 0 : index
      %c0_4 = arith.constant 0 : index
      %9 = vector.load %arg2[%c0, %c0_4] : memref<98x512xbf16, #tpu.memory_space<vmem>>, vector<98x512xbf16>
      %c0_5 = arith.constant 0 : index
      %c0_6 = arith.constant 0 : index
      %10 = vector.load %arg3[%c0_5, %c0_6] : memref<512x128xbf16, #tpu.memory_space<vmem>>, vector<512x128xbf16>
      %cst = arith.constant dense<0.000000e+00> : vector<98x128xf32>
      %11 = tpu.matmul %9, %10, %cst {dimension_numbers = #tpu.dot_dimension_numbers<[1], [0], [0], [1], [0, 0, 1, 1], [], []>} : vector<98x512xbf16>, vector<512x128xbf16>, vector<98x128xf32> -> vector<98x128xf32>
      %12 = arith.index_cast %arg1 : i32 to index
      %c0_7 = arith.constant 0 : index
      %c0_8 = arith.constant 0 : index
      %13 = vector.load %arg7[%12, %c0_7, %c0_8] : memref<1x98x128xf32, #tpu.memory_space<vmem>>, vector<1x98x128xf32>
      %14 = vector.shape_cast %13 : vector<1x98x128xf32> to vector<98x128xf32>
      %15 = vector.shape_cast %11 : vector<98x128xf32> to vector<1x98x128xf32>
      tpu.vector_store %arg7[%12, %c0_7, %c0_8], %15 {strides = array<i32>} : memref<1x98x128xf32, #tpu.memory_space<vmem>>, vector<1x98x128xf32>,
      %16 = tpu.iota {dimensions = array<i32: 0>} : vector<98x1xi32>
      %c98_i32 = arith.constant 98 : i32
      %17 = arith.muli %arg1, %c98_i32 : i32
      %18 = vector.broadcast %17 : i32 to vector<98x1xi32>
      %19 = arith.addi %16, %18 : vector<98x1xi32>
      %c98_i32_9 = arith.constant 98 : i32
      %20 = vector.broadcast %c98_i32_9 : i32 to vector<98x1xi32>
      %21 = arith.cmpi slt, %19, %20 : vector<98x1xi32>
      %cst_10 = arith.constant 0.000000e+00 : f32
      %22 = vector.shape_cast %21 : vector<98x1xi1> to vector<98x1xi1>
      %23 = vector.broadcast %22 : vector<98x1xi1> to vector<98x128xi1>
      %24 = vector.broadcast %cst_10 : f32 to vector<98x128xf32>
      %25 = arith.select %23, %11, %24 : vector<98x128xi1>, vector<98x128xf32>
      %c0_11 = arith.constant 0 : index
      %c0_12 = arith.constant 0 : index
      %26 = vector.load %arg8[%c0_11, %c0_12] : memref<2x128xf32, #tpu.memory_space<vmem>>, vector<1x128xf32>
      %cst_13 = arith.constant dense<0.000000e+00> : vector<128xf32>
      %27 = vector.multi_reduction <add>, %25, %cst_13 [0] : vector<98x128xf32> to vector<128xf32>
      %28 = vector.shape_cast %27 : vector<128xf32> to vector<1x128xf32>
      %29 = arith.addf %26, %28 : vector<1x128xf32>
      %c0_14 = arith.constant 0 : index
      %c0_15 = arith.constant 0 : index
      %30 = vector.load %arg8[%c0_14, %c0_15] : memref<2x128xf32, #tpu.memory_space<vmem>>, vector<1x128xf32>
      tpu.vector_store %arg8[%c0_14, %c0_15], %29 {strides = array<i32>} : memref<2x128xf32, #tpu.memory_space<vmem>>, vector<1x128xf32>,
      %c1 = arith.constant 1 : index
      %c0_16 = arith.constant 0 : index
      %31 = vector.load %arg8[%c1, %c0_16] : memref<2x128xf32, #tpu.memory_space<vmem>>, vector<1x128xf32>
      %32 = arith.mulf %25, %25 : vector<98x128xf32>
      %cst_17 = arith.constant dense<0.000000e+00> : vector<128xf32>
      %33 = vector.multi_reduction <add>, %32, %cst_17 [0] : vector<98x128xf32> to vector<128xf32>
      %34 = vector.shape_cast %33 : vector<128xf32> to vector<1x128xf32>
      %35 = arith.addf %31, %34 : vector<1x128xf32>
      %c1_18 = arith.constant 1 : index
      %c0_19 = arith.constant 0 : index
      %36 = vector.load %arg8[%c1_18, %c0_19] : memref<2x128xf32, #tpu.memory_space<vmem>>, vector<1x128xf32>
      tpu.vector_store %arg8[%c1_18, %c0_19], %35 {strides = array<i32>} : memref<2x128xf32, #tpu.memory_space<vmem>>, vector<1x128xf32>,
    } else {
    }
    %c1_i32 = arith.constant 1 : i32
    %3 = arith.cmpi eq, %arg0, %c1_i32 : i32
    %4 = arith.extui %3 : i1 to i32
    %c0_i32_1 = arith.constant 0 : i32
    %5 = arith.cmpi ne, %4, %c0_i32_1 : i32
    scf.if %5 {
      %c0_i32_2 = arith.constant 0 : i32
      %6 = arith.cmpi eq, %arg1, %c0_i32_2 : i32
      %7 = arith.extui %6 : i1 to i32
      %c0_i32_3 = arith.constant 0 : i32
      %8 = arith.cmpi ne, %7, %c0_i32_3 : i32
      scf.if %8 {
        %c0_11 = arith.constant 0 : index
        %c0_12 = arith.constant 0 : index
        %25 = vector.load %arg8[%c0_11, %c0_12] : memref<2x128xf32, #tpu.memory_space<vmem>>, vector<1x128xf32>
        %cst_13 = arith.constant 0.0102040814 : f32
        %26 = vector.broadcast %cst_13 : f32 to vector<1x128xf32>
        %27 = arith.mulf %25, %26 : vector<1x128xf32>
        %c1_14 = arith.constant 1 : index
        %c0_15 = arith.constant 0 : index
        %28 = vector.load %arg8[%c1_14, %c0_15] : memref<2x128xf32, #tpu.memory_space<vmem>>, vector<1x128xf32>
        %cst_16 = arith.constant 0.0102040814 : f32
        %29 = vector.broadcast %cst_16 : f32 to vector<1x128xf32>
        %30 = arith.mulf %28, %29 : vector<1x128xf32>
        %31 = arith.mulf %27, %27 : vector<1x128xf32>
        %32 = arith.subf %30, %31 : vector<1x128xf32>
        %cst_17 = arith.constant 0.000000e+00 : f32
        %33 = vector.broadcast %cst_17 : f32 to vector<1x128xf32>
        %34 = arith.maximumf %32, %33 : vector<1x128xf32>
        %c0_18 = arith.constant 0 : index
        %c0_19 = arith.constant 0 : index
        %35 = vector.load %arg4[%c0_18, %c0_19] : memref<1x128xf32, #tpu.memory_space<vmem>>, vector<1x128xf32>
        %cst_20 = arith.constant 9.99999974E-6 : f32
        %36 = vector.broadcast %cst_20 : f32 to vector<1x128xf32>
        %37 = arith.addf %34, %36 : vector<1x128xf32>
        %38 = math.rsqrt %37 : vector<1x128xf32>
        %39 = arith.mulf %35, %38 : vector<1x128xf32>
        %c0_21 = arith.constant 0 : index
        %c0_22 = arith.constant 0 : index
        %40 = vector.load %arg9[%c0_21, %c0_22] : memref<2x128xf32, #tpu.memory_space<vmem>>, vector<1x128xf32>
        tpu.vector_store %arg9[%c0_21, %c0_22], %39 {strides = array<i32>} : memref<2x128xf32, #tpu.memory_space<vmem>>, vector<1x128xf32>,
        %c0_23 = arith.constant 0 : index
        %c0_24 = arith.constant 0 : index
        %41 = vector.load %arg5[%c0_23, %c0_24] : memref<1x128xf32, #tpu.memory_space<vmem>>, vector<1x128xf32>
        %42 = arith.mulf %27, %39 : vector<1x128xf32>
        %43 = arith.subf %41, %42 : vector<1x128xf32>
        %c1_25 = arith.constant 1 : index
        %c0_26 = arith.constant 0 : index
        %44 = vector.load %arg9[%c1_25, %c0_26] : memref<2x128xf32, #tpu.memory_space<vmem>>, vector<1x128xf32>
        tpu.vector_store %arg9[%c1_25, %c0_26], %43 {strides = array<i32>} : memref<2x128xf32, #tpu.memory_space<vmem>>, vector<1x128xf32>,
      } else {
      }
      %9 = arith.index_cast %arg1 : i32 to index
      %c0 = arith.constant 0 : index
      %c0_4 = arith.constant 0 : index
      %10 = vector.load %arg7[%9, %c0, %c0_4] : memref<1x98x128xf32, #tpu.memory_space<vmem>>, vector<1x98x128xf32>
      %11 = vector.shape_cast %10 : vector<1x98x128xf32> to vector<98x128xf32>
      %c0_5 = arith.constant 0 : index
      %c0_6 = arith.constant 0 : index
      %12 = vector.load %arg9[%c0_5, %c0_6] : memref<2x128xf32, #tpu.memory_space<vmem>>, vector<1x128xf32>
      %13 = vector.broadcast %12 : vector<1x128xf32> to vector<98x128xf32>
      %14 = arith.mulf %11, %13 : vector<98x128xf32>
      %c1 = arith.constant 1 : index
      %c0_7 = arith.constant 0 : index
      %15 = vector.load %arg9[%c1, %c0_7] : memref<2x128xf32, #tpu.memory_space<vmem>>, vector<1x128xf32>
      %16 = vector.broadcast %15 : vector<1x128xf32> to vector<98x128xf32>
      %17 = arith.addf %14, %16 : vector<98x128xf32>
      %cst = arith.constant 0.000000e+00 : f32
      %18 = vector.broadcast %cst : f32 to vector<98x128xf32>
      %19 = arith.cmpf oge, %17, %18 : vector<98x128xf32>
      %cst_8 = arith.constant 2.000000e-01 : f32
      %20 = vector.broadcast %cst_8 : f32 to vector<98x128xf32>
      %21 = arith.mulf %20, %17 : vector<98x128xf32>
      %22 = arith.select %19, %17, %21 : vector<98x128xi1>, vector<98x128xf32>
      %23 = arith.truncf %22 : vector<98x128xf32> to vector<98x128xbf16>
      %c0_9 = arith.constant 0 : index
      %c0_10 = arith.constant 0 : index
      %24 = vector.load %arg6[%c0_9, %c0_10] : memref<98x128xbf16, #tpu.memory_space<vmem>>, vector<98x128xbf16>
      tpu.vector_store %arg6[%c0_9, %c0_10], %23 {strides = array<i32>} : memref<98x128xbf16, #tpu.memory_space<vmem>>, vector<98x128xbf16>,
    } else {
    }
    return
  }
  func.func @transform_0(%arg0: i32, %arg1: i32) -> (i32, i32) {
    %c1_i32 = arith.constant 1 : i32
    %0 = arith.subi %c1_i32, %arg0 : i32
    %1 = arith.muli %arg1, %0 : i32
    %c0_i32 = arith.constant 0 : i32
    %2 = arith.muli %c0_i32, %arg0 : i32
    %3 = arith.addi %1, %2 : i32
    %c0_i32_0 = arith.constant 0 : i32
    %c0_i32_1 = arith.constant 0 : i32
    return %3, %c0_i32_0 : i32, i32
  }
  func.func @transform_1(%arg0: i32, %arg1: i32) -> (i32, i32) {
    %c0_i32 = arith.constant 0 : i32
    %c0_i32_0 = arith.constant 0 : i32
    %c0_i32_1 = arith.constant 0 : i32
    return %c0_i32, %c0_i32_0 : i32, i32
  }
  func.func @transform_2(%arg0: i32, %arg1: i32) -> (i32, i32) {
    %c0_i32 = arith.constant 0 : i32
    %c0_i32_0 = arith.constant 0 : i32
    %c0_i32_1 = arith.constant 0 : i32
    return %c0_i32, %c0_i32_0 : i32, i32
  }
  func.func @transform_3(%arg0: i32, %arg1: i32) -> (i32, i32) {
    %c0_i32 = arith.constant 0 : i32
    %c0_i32_0 = arith.constant 0 : i32
    %c0_i32_1 = arith.constant 0 : i32
    return %c0_i32, %c0_i32_0 : i32, i32
  }
  func.func @transform_4(%arg0: i32, %arg1: i32) -> (i32, i32) {
    %0 = arith.muli %arg1, %arg0 : i32
    %c0_i32 = arith.constant 0 : i32
    %c0_i32_0 = arith.constant 0 : i32
    return %0, %c0_i32 : i32, i32
  }
}

module attributes {stable_mosaic.version = 11 : i64} {
  func.func @_gemm_bias_sigmoid_kernel(%arg0: i32, %arg1: memref<48x1024xbf16, #tpu.memory_space<vmem>>, %arg2: memref<1024x128xbf16, #tpu.memory_space<vmem>>, %arg3: memref<1x128xf32, #tpu.memory_space<vmem>>, %arg4: memref<48x128xf32, #tpu.memory_space<vmem>>) attributes {dimension_semantics = [#tpu.dimension_semantics<parallel>], iteration_bounds = array<i64: 2>, scalar_prefetch = 0 : i64, scratch_operands = 0 : i64, tpu.core_type = #tpu.core_type<tc>, window_params = [{transform_indices = @transform_0, window_bounds = array<i64: 48, 1024>}, {pipeline_mode = #tpu.pipeline_mode<synchronous>, transform_indices = @transform_1, window_bounds = array<i64: 1024, 128>}, {pipeline_mode = #tpu.pipeline_mode<synchronous>, transform_indices = @transform_2, window_bounds = array<i64: 1, 128>}, {transform_indices = @transform_3, window_bounds = array<i64: 48, 128>}]} {
    %c0 = arith.constant 0 : index
    %c0_0 = arith.constant 0 : index
    %0 = vector.load %arg1[%c0, %c0_0] : memref<48x1024xbf16, #tpu.memory_space<vmem>>, vector<48x1024xbf16>
    %c0_1 = arith.constant 0 : index
    %c0_2 = arith.constant 0 : index
    %1 = vector.load %arg2[%c0_1, %c0_2] : memref<1024x128xbf16, #tpu.memory_space<vmem>>, vector<1024x128xbf16>
    %cst = arith.constant dense<0.000000e+00> : vector<48x128xf32>
    %2 = tpu.matmul %0, %1, %cst {dimension_numbers = #tpu.dot_dimension_numbers<[1], [0], [0], [1], [0, 0, 1, 1], [], []>} : vector<48x1024xbf16>, vector<1024x128xbf16>, vector<48x128xf32> -> vector<48x128xf32>
    %c0_3 = arith.constant 0 : index
    %c0_4 = arith.constant 0 : index
    %3 = vector.load %arg3[%c0_3, %c0_4] : memref<1x128xf32, #tpu.memory_space<vmem>>, vector<1x128xf32>
    %4 = vector.broadcast %3 : vector<1x128xf32> to vector<48x128xf32>
    %5 = arith.addf %2, %4 : vector<48x128xf32>
    %cst_5 = arith.constant 0.000000e+00 : f32
    %6 = vector.broadcast %cst_5 : f32 to vector<48x128xf32>
    %7 = arith.subf %6, %5 : vector<48x128xf32>
    %8 = math.exp %7 : vector<48x128xf32>
    %cst_6 = arith.constant 1.000000e+00 : f32
    %9 = vector.broadcast %cst_6 : f32 to vector<48x128xf32>
    %10 = arith.addf %9, %8 : vector<48x128xf32>
    %cst_7 = arith.constant 1.000000e+00 : f32
    %11 = vector.broadcast %cst_7 : f32 to vector<48x128xf32>
    %12 = arith.divf %11, %10 : vector<48x128xf32>
    %c0_8 = arith.constant 0 : index
    %c0_9 = arith.constant 0 : index
    %13 = vector.load %arg4[%c0_8, %c0_9] : memref<48x128xf32, #tpu.memory_space<vmem>>, vector<48x128xf32>
    tpu.vector_store %arg4[%c0_8, %c0_9], %12 {strides = array<i32>} : memref<48x128xf32, #tpu.memory_space<vmem>>, vector<48x128xf32>,
    return
  }
  func.func @transform_0(%arg0: i32) -> (i32, i32) {
    %c0_i32 = arith.constant 0 : i32
    %c0_i32_0 = arith.constant 0 : i32
    return %arg0, %c0_i32 : i32, i32
  }
  func.func @transform_1(%arg0: i32) -> (i32, i32) {
    %c0_i32 = arith.constant 0 : i32
    %c0_i32_0 = arith.constant 0 : i32
    %c0_i32_1 = arith.constant 0 : i32
    return %c0_i32, %c0_i32_0 : i32, i32
  }
  func.func @transform_2(%arg0: i32) -> (i32, i32) {
    %c0_i32 = arith.constant 0 : i32
    %c0_i32_0 = arith.constant 0 : i32
    %c0_i32_1 = arith.constant 0 : i32
    return %c0_i32, %c0_i32_0 : i32, i32
  }
  func.func @transform_3(%arg0: i32) -> (i32, i32) {
    %c0_i32 = arith.constant 0 : i32
    %c0_i32_0 = arith.constant 0 : i32
    return %arg0, %c0_i32 : i32, i32
  }
}

</mosaic_0001>

<llo_original>
// kernel: patch_discriminator.5
$region0: #{patch_discriminator.5}
  #allocation0 [shape = 'u32[]', space=smem, size = 0x4, offset = 0x4, fixed_abs, tag = 'smem constant byte address 0x4 - core index']
  #allocation1 [shape = 'u32[144,128]{1,0:T(1,128)}', space=vmem, size = 0x12000, scoped, tag = 'internal scratch']
  %s0 = inlined_call_operand.vmem [shape: bf16[2048,128], index: 0, kind: input, shape index: {}]
  %s1 = inlined_call_operand.vmem [shape: bf16[128,128], index: 1, kind: input, shape index: {}]
  %s2 = inlined_call_operand.vmem [shape: f32[1,128], index: 2, kind: input, shape index: {}]
  %s3 = inlined_call_operand.vmem [shape: bf16[2048,128], index: 3, kind: output, shape index: {}]
  %s4 = sld [smem:[#allocation0]]
  $region45: #{patch_discriminator.5} parent=0
    _
  %s6 = ssub.s32 1, %s4
  %s7 = scalar_select 0, %s6, %s4
  loop: start=0, step=1, limit=10
  $region2: #{patch_discriminator.5} parent=0 // loop_pre_header
    _
  $region3: #{patch_discriminator.5} parent=0 // loop_header
    %s9 = sphi 0, %s13
    %p10 = scmp.ge.s32.totalorder %s9, 10
    %s19 = sphi 0, %s21
    %s22 = sphi 0, %s19
    %s23 = sphi 0, %s22
    %s39 = sphi 0, %s23
    %s43 = sphi 0, %s43
    %s45 = sphi 0, %s43
    %s46 = sphi 0, %s45
    %s60 = sphi 0, %s46
    %s64 = sphi 0, %s64
    %s66 = sphi 0, %s64
    %s67 = sphi 0, %s66
    %s81 = sphi 0, %s67
    %s87 = sphi 0, %s89
    %s90 = sphi 0, %s87
    %s91 = sphi 0, %s90
    %s107 = sphi 0, %s91
  $region4: #{patch_discriminator.5} parent=0 // loop_header_branch
    %12 = sbr.rel (%p10) target = $region8
  $region5: #{patch_discriminator.5} parent=0 // loop_body
    %s14 = ssub.s32 %s9, 1
    %s15 = ssub.s32 %s9, 2
    %s16 = sadd.s32 %s9, 1
    %s17 = ssub.s32 %s9, %s16
    %p18 = scmp.eq.s32.totalorder %s17, 0
    %s20 = sadd.s32 %s19, 1
    %s21 = scalar_select %p18, %s19, %s20
    %p24 = pneg %p18
    %p25 = scmp.eq.s32.totalorder %s9, 7
    %p26 = por %p24, %p25
    %p27 = scmp.ne.s32.totalorder %s19, %s22
    %p28 = scmp.eq.s32.totalorder %s9, 0
    %p29 = por %p27, %p28
    %p30 = scmp.ne.s32.totalorder %s19, %s22
    %p31 = scmp.eq.s32.totalorder %s14, 7
    %p32 = por %p30, %p31
    %p33 = scmp.ne.s32.totalorder %s22, %s23
    %p34 = scmp.eq.s32.totalorder %s14, 0
    %p35 = por %p33, %p34
    %p36 = scmp.ne.s32.totalorder %s22, %s23
    %p37 = scmp.eq.s32.totalorder %s15, 7
    %p38 = por %p36, %p37
    %p40 = scmp.ne.s32.totalorder %s23, %s39
    %p41 = scmp.eq.s32.totalorder %s15, 0
    %p42 = por %p40, %p41
    %s44 = sadd.s32 %s43, 1
    %p47 = scmp.eq.s32.totalorder %s9, 7
    %p48 = scmp.ne.s32.totalorder %s43, %s45
    %p49 = scmp.eq.s32.totalorder %s9, 0
    %p50 = por %p48, %p49
    %p51 = scmp.ne.s32.totalorder %s43, %s45
    %p52 = scmp.eq.s32.totalorder %s14, 7
    %p53 = por %p51, %p52
    %p54 = scmp.ne.s32.totalorder %s45, %s46
    %p55 = scmp.eq.s32.totalorder %s14, 0
    %p56 = por %p54, %p55
    %p57 = scmp.ne.s32.totalorder %s45, %s46
    %p58 = scmp.eq.s32.totalorder %s15, 7
    %p59 = por %p57, %p58
    %p61 = scmp.ne.s32.totalorder %s46, %s60
    %p62 = scmp.eq.s32.totalorder %s15, 0
    %p63 = por %p61, %p62
    %s65 = sadd.s32 %s64, 1
    %p68 = scmp.eq.s32.totalorder %s9, 7
    %p69 = scmp.ne.s32.totalorder %s64, %s66
    %p70 = scmp.eq.s32.totalorder %s9, 0
    %p71 = por %p69, %p70
    %p72 = scmp.ne.s32.totalorder %s64, %s66
    %p73 = scmp.eq.s32.totalorder %s14, 7
    %p74 = por %p72, %p73
    %p75 = scmp.ne.s32.totalorder %s66, %s67
    %p76 = scmp.eq.s32.totalorder %s14, 0
    %p77 = por %p75, %p76
    %p78 = scmp.ne.s32.totalorder %s66, %s67
    %p79 = scmp.eq.s32.totalorder %s15, 7
    %p80 = por %p78, %p79
    %p82 = scmp.ne.s32.totalorder %s67, %s81
    %p83 = scmp.eq.s32.totalorder %s15, 0
    %p84 = por %p82, %p83
    %s85 = ssub.s32 %s9, %s16
    %p86 = scmp.eq.s32.totalorder %s85, 0
    %s88 = sadd.s32 %s87, 1
    %s89 = scalar_select %p86, %s87, %s88
    %p92 = pneg %p86
    %p93 = scmp.eq.s32.totalorder %s9, 7
    %p94 = por %p92, %p93
    %p95 = scmp.ne.s32.totalorder %s87, %s90
    %p96 = scmp.eq.s32.totalorder %s9, 0
    %p97 = por %p95, %p96
    %p98 = scmp.ne.s32.totalorder %s87, %s90
    %p99 = scmp.eq.s32.totalorder %s14, 7
    %p100 = por %p98, %p99
    %p101 = scmp.ne.s32.totalorder %s90, %s91
    %p102 = scmp.eq.s32.totalorder %s14, 0
    %p103 = por %p101, %p102
    %p104 = scmp.ne.s32.totalorder %s90, %s91
    %p105 = scmp.eq.s32.totalorder %s15, 7
    %p106 = por %p104, %p105
    %p108 = scmp.ne.s32.totalorder %s91, %s107
    %p109 = scmp.eq.s32.totalorder %s15, 0
    %p110 = por %p108, %p109
    %p111 = scmp.le.s32.totalorder 1, %s9
    %p112 = scmp.lt.s32.totalorder %s9, 9
    %p113 = pnand %p111, %p112
    %p114 = pneg %p113
    // Predicated region
    $region9: #{patch_discriminator.5} parent=5 // pred_check
      _
    $region10: #{patch_discriminator.5} parent=5 // pred_check_branch
      %116 = sbr.rel (%p113) target = $region12
    $region11: #{patch_discriminator.5} parent=5 // pred_region
      %s117 = ssub.s32 %s9, 1
      // Predicated region
      $region13: #{patch_discriminator.5} parent=11 // pred_check
        %p118 = pneg %p56
      $region14: #{patch_discriminator.5} parent=11 // pred_check_branch
        %120 = sbr.rel (%p118) target = $region16
      $region15: #{patch_discriminator.5} parent=11 // pred_region
        _
      $region16: #{patch_discriminator.5} parent=11 // pred_fallthru
        _
      // Predicated region
      $region17: #{patch_discriminator.5} parent=11 // pred_check
        %p121 = pneg %p77
      $region18: #{patch_discriminator.5} parent=11 // pred_check_branch
        %123 = sbr.rel (%p121) target = $region20
      $region19: #{patch_discriminator.5} parent=11 // pred_region
        _
      $region20: #{patch_discriminator.5} parent=11 // pred_fallthru
        _
    $region12: #{patch_discriminator.5} parent=5 // pred_fallthru
      _
    %p124 = scmp.lt.s32.totalorder %s9, 8
    // Predicated region
    $region21: #{patch_discriminator.5} parent=5 // pred_check
      %p125 = pneg %p124
    $region22: #{patch_discriminator.5} parent=5 // pred_check_branch
      %127 = sbr.rel (%p125) target = $region24
    $region23: #{patch_discriminator.5} parent=5 // pred_region
      // Predicated region
      $region25: #{patch_discriminator.5} parent=23 // pred_check
        %p128 = pneg %p29
      $region26: #{patch_discriminator.5} parent=23 // pred_check_branch
        %130 = sbr.rel (%p128) target = $region28
      $region27: #{patch_discriminator.5} parent=23 // pred_region
        %s131 = smul.u32 32, %s9
        %p132 = scmp.lt.s32.totalorder %s131, 255
        %s133 = scalar_select %p132, %s131, 255
        %s134 = smul.addr %s133, 4
        %s135 = scalar_lea.vmem %s0, %s134
        %s136 = smul.u32 32, %s9
      $region28: #{patch_discriminator.5} parent=23 // pred_fallthru
        _
    $region24: #{patch_discriminator.5} parent=5 // pred_fallthru
      _
    %p137 = scmp.le.s32.totalorder 1, %s9
    %p138 = scmp.lt.s32.totalorder %s9, 9
    %p139 = pnand %p137, %p138
    %p140 = pneg %p139
    // Predicated region
    $region29: #{patch_discriminator.5} parent=5 // pred_check
      _
    $region30: #{patch_discriminator.5} parent=5 // pred_check_branch
      %142 = sbr.rel (%p139) target = $region32
    $region31: #{patch_discriminator.5} parent=5 // pred_region
      %s143 = ssub.s32 %s9, 1
      %s144 = smul.u32 32, %s14
      %p145 = scmp.lt.s32.totalorder %s144, 255
      %s146 = scalar_select %p145, %s144, 255
      %s147 = smul.addr %s146, 4
      %s148 = scalar_lea.vmem %s0, %s147
      %p149 = pneg %p35
      %p150 = pneg %p32
      %p151 = pneg %p56
      %p152 = pneg %p53
      %p153 = pneg %p77
      %p154 = pneg %p74
      %p155 = pneg %p103
      %p156 = pneg %p100
      %s157 = smul.u32 32, %s14
      %p158 = scmp.lt.s32.totalorder %s157, 255
      %s159 = scalar_select %p158, %s157, 255
      %s160 = smul.addr %s159, 4
      %s161 = scalar_lea.vmem %s3, %s160
      %s162 = smul.u32 32, %s14
      %p163 = scmp.lt.s32.totalorder %s162, 255
      %s164 = scalar_select %p163, %s162, 255
      %s165 = smul.addr %s164, 4
      %s166 = scalar_lea.vmem %s0, %s165
      %s167 = smul.u32 32, %s14
      %s168 = smul.u32 32, %s14
      %p169 = scmp.lt.s32.totalorder %s168, 255
      %s170 = scalar_select %p169, %s168, 255
      %s171 = smul.addr %s170, 4
      %s172 = scalar_lea.vmem %s3, %s171
      %s173 = smul.u32 32, %s14
      %v175 = vld [vmem:[%s166] sm:$0xf]
      %v176 = vld [vmem:[%s166 + $0x4] sm:$0xf]
      %v177 = vld [vmem:[%s166 + $0x8] sm:$0xf]
      %v178 = vld [vmem:[%s166 + $0xc] sm:$0xf]
      %v179 = vld [vmem:[%s166 + $0x10] sm:$0xf]
      %v180 = vld [vmem:[%s166 + $0x14] sm:$0xf]
      %v181 = vld [vmem:[%s166 + $0x18] sm:$0xf]
      %v182 = vld [vmem:[%s166 + $0x1c] sm:$0xf]
      %v183 = vld [vmem:[%s166 + $0x20] sm:$0xf]
      %v184 = vld [vmem:[%s166 + $0x24] sm:$0xf]
      %v185 = vld [vmem:[%s166 + $0x28] sm:$0xf]
      %v186 = vld [vmem:[%s166 + $0x2c] sm:$0xf]
      %v187 = vld [vmem:[%s166 + $0x30] sm:$0xf]
      %v188 = vld [vmem:[%s166 + $0x34] sm:$0xf]
      %v189 = vld [vmem:[%s166 + $0x38] sm:$0xf]
      %v190 = vld [vmem:[%s166 + $0x3c] sm:$0xf]
      %v191 = vld [vmem:[%s166 + $0x40] sm:$0xf]
      %v192 = vld [vmem:[%s166 + $0x44] sm:$0xf]
      %v193 = vld [vmem:[%s166 + $0x48] sm:$0xf]
      %v194 = vld [vmem:[%s166 + $0x4c] sm:$0xf]
      %v195 = vld [vmem:[%s166 + $0x50] sm:$0xf]
      %v196 = vld [vmem:[%s166 + $0x54] sm:$0xf]
      %v197 = vld [vmem:[%s166 + $0x58] sm:$0xf]
      %v198 = vld [vmem:[%s166 + $0x5c] sm:$0xf]
      %v199 = vld [vmem:[%s166 + $0x60] sm:$0xf]
      %v200 = vld [vmem:[%s166 + $0x64] sm:$0xf]
      %v201 = vld [vmem:[%s166 + $0x68] sm:$0xf]
      %v202 = vld [vmem:[%s166 + $0x6c] sm:$0xf]
      %v203 = vld [vmem:[%s166 + $0x70] sm:$0xf]
      %v204 = vld [vmem:[%s166 + $0x74] sm:$0xf]
      %v205 = vld [vmem:[%s166 + $0x78] sm:$0xf]
      %v206 = vld [vmem:[%s166 + $0x7c] sm:$0xf]
      %v207 = vld [vmem:[%s1] sm:$0xf]
      %v208 = vld [vmem:[%s1 + $0x4] sm:$0xf]
      %v209 = vld [vmem:[%s1 + $0x8] sm:$0xf]
      %v210 = vld [vmem:[%s1 + $0xc] sm:$0xf]
      %v211 = vld [vmem:[%s1 + $0x10] sm:$0xf]
      %v212 = vld [vmem:[%s1 + $0x14] sm:$0xf]
      %v213 = vld [vmem:[%s1 + $0x18] sm:$0xf]
      %v214 = vld [vmem:[%s1 + $0x1c] sm:$0xf]
      %v215 = vld [vmem:[%s1 + $0x20] sm:$0xf]
      %v216 = vld [vmem:[%s1 + $0x24] sm:$0xf]
      %v217 = vld [vmem:[%s1 + $0x28] sm:$0xf]
      %v218 = vld [vmem:[%s1 + $0x2c] sm:$0xf]
      %v219 = vld [vmem:[%s1 + $0x30] sm:$0xf]
      %v220 = vld [vmem:[%s1 + $0x34] sm:$0xf]
      %v221 = vld [vmem:[%s1 + $0x38] sm:$0xf]
      %v222 = vld [vmem:[%s1 + $0x3c] sm:$0xf]
      %v223 = vld [vmem:[%s2] sm:$0x1]
      %v225 = vlaneseq
      %v226 = vshrl.u32 %v225, 7
      %v227 = vsub.s32 0, %v226
      %v228 = vrot.slane %v223, %v227
      %v262 = vunpack.c.l.b16 %v175
      %v263 = vunpack.c.l.b16 %v176
      %v264 = vunpack.c.l.b16 %v177
      %v265 = vunpack.c.l.b16 %v178
      %v266 = vunpack.c.l.b16 %v179
      %v267 = vunpack.c.l.b16 %v180
      %v268 = vunpack.c.l.b16 %v181
      %v269 = vunpack.c.l.b16 %v182
      %v270 = vunpack.c.l.b16 %v183
      %v271 = vunpack.c.l.b16 %v184
      %v272 = vunpack.c.l.b16 %v185
      %v273 = vunpack.c.l.b16 %v186
      %v274 = vunpack.c.l.b16 %v187
      %v275 = vunpack.c.l.b16 %v188
      %v276 = vunpack.c.l.b16 %v189
      %v277 = vunpack.c.l.b16 %v190
      %v278 = vunpack.c.l.b16 %v191
      %v279 = vunpack.c.l.b16 %v192
      %v280 = vunpack.c.l.b16 %v193
      %v281 = vunpack.c.l.b16 %v194
      %v282 = vunpack.c.l.b16 %v195
      %v283 = vunpack.c.l.b16 %v196
      %v284 = vunpack.c.l.b16 %v197
      %v285 = vunpack.c.l.b16 %v198
      %v286 = vunpack.c.l.b16 %v199
      %v287 = vunpack.c.l.b16 %v200
      %v288 = vunpack.c.l.b16 %v201
      %v289 = vunpack.c.l.b16 %v202
      %v290 = vunpack.c.l.b16 %v203
      %v291 = vunpack.c.l.b16 %v204
      %v292 = vunpack.c.l.b16 %v205
      %v293 = vunpack.c.l.b16 %v206
      %v294 = vpack.c.b16 %v263, %v262
      %v295 = vpack.c.b16 %v265, %v264
      %v296 = vpack.c.b16 %v267, %v266
      %v297 = vpack.c.b16 %v269, %v268
      %v298 = vpack.c.b16 %v271, %v270
      %v299 = vpack.c.b16 %v273, %v272
      %v300 = vpack.c.b16 %v275, %v274
      %v301 = vpack.c.b16 %v277, %v276
      %v302 = vpack.c.b16 %v279, %v278
      %v303 = vpack.c.b16 %v281, %v280
      %v304 = vpack.c.b16 %v283, %v282
      %v305 = vpack.c.b16 %v285, %v284
      %v306 = vpack.c.b16 %v287, %v286
      %v307 = vpack.c.b16 %v289, %v288
      %v308 = vpack.c.b16 %v291, %v290
      %v309 = vpack.c.b16 %v293, %v292
      %v342 = vunpack.c.l.b16 %v207
      %v343 = vunpack.c.l.b16 %v208
      %v344 = vunpack.c.l.b16 %v209
      %v345 = vunpack.c.l.b16 %v210
      %v346 = vunpack.c.l.b16 %v211
      %v347 = vunpack.c.l.b16 %v212
      %v348 = vunpack.c.l.b16 %v213
      %v349 = vunpack.c.l.b16 %v214
      %v350 = vunpack.c.l.b16 %v215
      %v351 = vunpack.c.l.b16 %v216
      %v352 = vunpack.c.l.b16 %v217
      %v353 = vunpack.c.l.b16 %v218
      %v354 = vunpack.c.l.b16 %v219
      %v355 = vunpack.c.l.b16 %v220
      %v356 = vunpack.c.l.b16 %v221
      %v357 = vunpack.c.l.b16 %v222
      %v358 = vpack.c.b16 %v343, %v342
      %v359 = vpack.c.b16 %v345, %v344
      %v360 = vpack.c.b16 %v347, %v346
      %v361 = vpack.c.b16 %v349, %v348
      %v362 = vpack.c.b16 %v351, %v350
      %v363 = vpack.c.b16 %v353, %v352
      %v364 = vpack.c.b16 %v355, %v354
      %v365 = vpack.c.b16 %v357, %v356
      %374 = vmatprep.subr.bf16.mxu0 0
      %375 = vmatpush1.bf16.msra.mxu0 %v358
      %376 = vmatprep.subr.bf16.mxu0 0
      %377 = vmatpush1.bf16.msra.mxu0 %v359
      %378 = vmatprep.subr.bf16.mxu0 0
      %379 = vmatpush1.bf16.msra.mxu0 %v360
      %380 = vmatprep.subr.bf16.mxu0 0
      %381 = vmatpush1.bf16.msra.mxu0 %v361
      %382 = vmatprep.subr.bf16.mxu0 0
      %383 = vmatpush1.bf16.msra.mxu0 %v362
      %384 = vmatprep.subr.bf16.mxu0 0
      %385 = vmatpush1.bf16.msra.mxu0 %v363
      %386 = vmatprep.subr.bf16.mxu0 0
      %387 = vmatpush1.bf16.msra.mxu0 %v364
      %388 = vmatprep.subr.bf16.mxu0 0
      %389 = vmatpush1.bf16.msra.mxu0 %v365
      %390 = vmatprep.subr.bf16.mxu0 0
      %391 = vmatpush1.bf16.msra.mxu0 0
      %392 = vmatprep.subr.bf16.mxu0 0
      %393 = vmatpush1.bf16.msra.mxu0 0
      %394 = vmatprep.subr.bf16.mxu0 0
      %395 = vmatpush1.bf16.msra.mxu0 0
      %396 = vmatprep.subr.bf16.mxu0 0
      %397 = vmatpush1.bf16.msra.mxu0 0
      %398 = vmatprep.subr.bf16.mxu0 0
      %399 = vmatpush1.bf16.msra.mxu0 0
      %400 = vmatprep.subr.bf16.mxu0 0
      %401 = vmatpush1.bf16.msra.mxu0 0
      %402 = vmatprep.subr.bf16.mxu0 0
      %403 = vmatpush1.bf16.msra.mxu0 0
      %404 = vmatprep.subr.bf16.mxu0 0
      %405 = vmatpush1.bf16.msra.mxu0 0
      %406 = vmatprep.mubr.bf16.mxu0 0
      %407 = vmatmul.mubr.bf16.gmra.mrb[0].mxu0 %v294
      %v408 = vpop.f32.mrb[0].mxu0
      %v409 = vadd.f32 %v228, %v408
      %v410 = vpop.f32.mrb[0].mxu0
      %v411 = vpop.f32.mrb[0].mxu0
      %v412 = vadd.f32 %v228, %v411
      %v413 = vpop.f32.mrb[0].mxu0
      %414 = vmatprep.mubr.bf16.mxu0 0
      %415 = vmatmul.mubr.bf16.gmra.mrb[0].mxu0 %v295
      %v416 = vpop.f32.mrb[0].mxu0
      %v417 = vadd.f32 %v228, %v416
      %v418 = vpop.f32.mrb[0].mxu0
      %v419 = vpop.f32.mrb[0].mxu0
      %v420 = vadd.f32 %v228, %v419
      %v421 = vpop.f32.mrb[0].mxu0
      %422 = vmatprep.mubr.bf16.mxu0 0
      %423 = vmatmul.mubr.bf16.gmra.mrb[0].mxu0 %v296
      %v424 = vpop.f32.mrb[0].mxu0
      %v425 = vadd.f32 %v228, %v424
      %v426 = vpop.f32.mrb[0].mxu0
      %v427 = vpop.f32.mrb[0].mxu0
      %v428 = vadd.f32 %v228, %v427
      %v429 = vpop.f32.mrb[0].mxu0
      %430 = vmatprep.mubr.bf16.mxu0 0
      %431 = vmatmul.mubr.bf16.gmra.mrb[0].mxu0 %v297
      %v432 = vpop.f32.mrb[0].mxu0
      %v433 = vadd.f32 %v228, %v432
      %v434 = vpop.f32.mrb[0].mxu0
      %v435 = vpop.f32.mrb[0].mxu0
      %v436 = vadd.f32 %v228, %v435
      %v437 = vpop.f32.mrb[0].mxu0
      %438 = vmatprep.mubr.bf16.mxu0 0
      %439 = vmatmul.mubr.bf16.gmra.mrb[0].mxu0 %v298
      %v440 = vpop.f32.mrb[0].mxu0
      %v441 = vadd.f32 %v228, %v440
      %v442 = vpop.f32.mrb[0].mxu0
      %v443 = vpop.f32.mrb[0].mxu0
      %v444 = vadd.f32 %v228, %v443
      %v445 = vpop.f32.mrb[0].mxu0
      %446 = vmatprep.mubr.bf16.mxu0 0
      %447 = vmatmul.mubr.bf16.gmra.mrb[0].mxu0 %v299
      %v448 = vpop.f32.mrb[0].mxu0
      %v449 = vadd.f32 %v228, %v448
      %v450 = vpop.f32.mrb[0].mxu0
      %v451 = vpop.f32.mrb[0].mxu0
      %v452 = vadd.f32 %v228, %v451
      %v453 = vpop.f32.mrb[0].mxu0
      %454 = vmatprep.mubr.bf16.mxu0 0
      %455 = vmatmul.mubr.bf16.gmra.mrb[0].mxu0 %v300
      %v456 = vpop.f32.mrb[0].mxu0
      %v457 = vadd.f32 %v228, %v456
      %v458 = vpop.f32.mrb[0].mxu0
      %v459 = vpop.f32.mrb[0].mxu0
      %v460 = vadd.f32 %v228, %v459
      %v461 = vpop.f32.mrb[0].mxu0
      %462 = vmatprep.mubr.bf16.mxu0 0
      %463 = vmatmul.mubr.bf16.gmra.mrb[0].mxu0 %v301
      %v464 = vpop.f32.mrb[0].mxu0
      %v465 = vadd.f32 %v228, %v464
      %v466 = vpop.f32.mrb[0].mxu0
      %v467 = vpop.f32.mrb[0].mxu0
      %v468 = vadd.f32 %v228, %v467
      %v469 = vpop.f32.mrb[0].mxu0
      %470 = vmatprep.mubr.bf16.mxu0 0
      %471 = vmatmul.mubr.bf16.gmra.mrb[0].mxu0 %v302
      %v472 = vpop.f32.mrb[0].mxu0
      %v473 = vadd.f32 %v228, %v472
      %v474 = vpop.f32.mrb[0].mxu0
      %v475 = vpop.f32.mrb[0].mxu0
      %v476 = vadd.f32 %v228, %v475
      %v477 = vpop.f32.mrb[0].mxu0
      %478 = vmatprep.mubr.bf16.mxu0 0
      %479 = vmatmul.mubr.bf16.gmra.mrb[0].mxu0 %v303
      %v480 = vpop.f32.mrb[0].mxu0
      %v481 = vadd.f32 %v228, %v480
      %v482 = vpop.f32.mrb[0].mxu0
      %v483 = vpop.f32.mrb[0].mxu0
      %v484 = vadd.f32 %v228, %v483
      %v485 = vpop.f32.mrb[0].mxu0
      %486 = vmatprep.mubr.bf16.mxu0 0
      %487 = vmatmul.mubr.bf16.gmra.mrb[0].mxu0 %v304
      %v488 = vpop.f32.mrb[0].mxu0
      %v489 = vadd.f32 %v228, %v488
      %v490 = vpop.f32.mrb[0].mxu0
      %v491 = vpop.f32.mrb[0].mxu0
      %v492 = vadd.f32 %v228, %v491
      %v493 = vpop.f32.mrb[0].mxu0
      %494 = vmatprep.mubr.bf16.mxu0 0
      %495 = vmatmul.mubr.bf16.gmra.mrb[0].mxu0 %v305
      %v496 = vpop.f32.mrb[0].mxu0
      %v497 = vadd.f32 %v228, %v496
      %v498 = vpop.f32.mrb[0].mxu0
      %v499 = vpop.f32.mrb[0].mxu0
      %v500 = vadd.f32 %v228, %v499
      %v501 = vpop.f32.mrb[0].mxu0
      %502 = vmatprep.mubr.bf16.mxu0 0
      %503 = vmatmul.mubr.bf16.gmra.mrb[0].mxu0 %v306
      %v504 = vpop.f32.mrb[0].mxu0
      %v505 = vadd.f32 %v228, %v504
      %v506 = vpop.f32.mrb[0].mxu0
      %v507 = vpop.f32.mrb[0].mxu0
      %v508 = vadd.f32 %v228, %v507
      %v509 = vpop.f32.mrb[0].mxu0
      %510 = vmatprep.mubr.bf16.mxu0 0
      %511 = vmatmul.mubr.bf16.gmra.mrb[0].mxu0 %v307
      %v512 = vpop.f32.mrb[0].mxu0
      %v513 = vadd.f32 %v228, %v512
      %v514 = vpop.f32.mrb[0].mxu0
      %v515 = vpop.f32.mrb[0].mxu0
      %v516 = vadd.f32 %v228, %v515
      %v517 = vpop.f32.mrb[0].mxu0
      %518 = vmatprep.mubr.bf16.mxu0 0
      %519 = vmatmul.mubr.bf16.gmra.mrb[0].mxu0 %v308
      %v520 = vpop.f32.mrb[0].mxu0
      %v521 = vadd.f32 %v228, %v520
      %v522 = vpop.f32.mrb[0].mxu0
      %v523 = vpop.f32.mrb[0].mxu0
      %v524 = vadd.f32 %v228, %v523
      %v525 = vpop.f32.mrb[0].mxu0
      %526 = vmatprep.mubr.bf16.mxu0 0
      %527 = vmatmul.mubr.bf16.gmra.mrb[0].mxu0 %v309
      %v528 = vpop.f32.mrb[0].mxu0
      %v529 = vadd.f32 %v228, %v528
      %v530 = vpop.f32.mrb[0].mxu0
      %v531 = vpop.f32.mrb[0].mxu0
      %v532 = vadd.f32 %v228, %v531
      %v533 = vpop.f32.mrb[0].mxu0
      %534 = vdwg.mxu0
      %vm535 = vcmp.ge.f32.partialorder %v409, 0.0
      %vm536 = vcmp.ge.f32.partialorder %v412, 0.0
      %vm537 = vcmp.ge.f32.partialorder %v417, 0.0
      %vm538 = vcmp.ge.f32.partialorder %v420, 0.0
      %vm539 = vcmp.ge.f32.partialorder %v425, 0.0
      %vm540 = vcmp.ge.f32.partialorder %v428, 0.0
      %vm541 = vcmp.ge.f32.partialorder %v433, 0.0
      %vm542 = vcmp.ge.f32.partialorder %v436, 0.0
      %vm543 = vcmp.ge.f32.partialorder %v441, 0.0
      %vm544 = vcmp.ge.f32.partialorder %v444, 0.0
      %vm545 = vcmp.ge.f32.partialorder %v449, 0.0
      %vm546 = vcmp.ge.f32.partialorder %v452, 0.0
      %vm547 = vcmp.ge.f32.partialorder %v457, 0.0
      %vm548 = vcmp.ge.f32.partialorder %v460, 0.0
      %vm549 = vcmp.ge.f32.partialorder %v465, 0.0
      %vm550 = vcmp.ge.f32.partialorder %v468, 0.0
      %vm551 = vcmp.ge.f32.partialorder %v473, 0.0
      %vm552 = vcmp.ge.f32.partialorder %v476, 0.0
      %vm553 = vcmp.ge.f32.partialorder %v481, 0.0
      %vm554 = vcmp.ge.f32.partialorder %v484, 0.0
      %vm555 = vcmp.ge.f32.partialorder %v489, 0.0
      %vm556 = vcmp.ge.f32.partialorder %v492, 0.0
      %vm557 = vcmp.ge.f32.partialorder %v497, 0.0
      %vm558 = vcmp.ge.f32.partialorder %v500, 0.0
      %vm559 = vcmp.ge.f32.partialorder %v505, 0.0
      %vm560 = vcmp.ge.f32.partialorder %v508, 0.0
      %vm561 = vcmp.ge.f32.partialorder %v513, 0.0
      %vm562 = vcmp.ge.f32.partialorder %v516, 0.0
      %vm563 = vcmp.ge.f32.partialorder %v521, 0.0
      %vm564 = vcmp.ge.f32.partialorder %v524, 0.0
      %vm565 = vcmp.ge.f32.partialorder %v529, 0.0
      %vm566 = vcmp.ge.f32.partialorder %v532, 0.0
      %v567 = vmul.f32 %v409, 0.2
      %v568 = vmul.f32 %v412, 0.2
      %v569 = vmul.f32 %v417, 0.2
      %v570 = vmul.f32 %v420, 0.2
      %v571 = vmul.f32 %v425, 0.2
      %v572 = vmul.f32 %v428, 0.2
      %v573 = vmul.f32 %v433, 0.2
      %v574 = vmul.f32 %v436, 0.2
      %v575 = vmul.f32 %v441, 0.2
      %v576 = vmul.f32 %v444, 0.2
      %v577 = vmul.f32 %v449, 0.2
      %v578 = vmul.f32 %v452, 0.2
      %v579 = vmul.f32 %v457, 0.2
      %v580 = vmul.f32 %v460, 0.2
      %v581 = vmul.f32 %v465, 0.2
      %v582 = vmul.f32 %v468, 0.2
      %v583 = vmul.f32 %v473, 0.2
      %v584 = vmul.f32 %v476, 0.2
      %v585 = vmul.f32 %v481, 0.2
      %v586 = vmul.f32 %v484, 0.2
      %v587 = vmul.f32 %v489, 0.2
      %v588 = vmul.f32 %v492, 0.2
      %v589 = vmul.f32 %v497, 0.2
      %v590 = vmul.f32 %v500, 0.2
      %v591 = vmul.f32 %v505, 0.2
      %v592 = vmul.f32 %v508, 0.2
      %v593 = vmul.f32 %v513, 0.2
      %v594 = vmul.f32 %v516, 0.2
      %v595 = vmul.f32 %v521, 0.2
      %v596 = vmul.f32 %v524, 0.2
      %v597 = vmul.f32 %v529, 0.2
      %v598 = vmul.f32 %v532, 0.2
      %v599 = vsel %vm535, %v409, %v567
      %v600 = vsel %vm536, %v412, %v568
      %v601 = vsel %vm537, %v417, %v569
      %v602 = vsel %vm538, %v420, %v570
      %v603 = vsel %vm539, %v425, %v571
      %v604 = vsel %vm540, %v428, %v572
      %v605 = vsel %vm541, %v433, %v573
      %v606 = vsel %vm542, %v436, %v574
      %v607 = vsel %vm543, %v441, %v575
      %v608 = vsel %vm544, %v444, %v576
      %v609 = vsel %vm545, %v449, %v577
      %v610 = vsel %vm546, %v452, %v578
      %v611 = vsel %vm547, %v457, %v579
      %v612 = vsel %vm548, %v460, %v580
      %v613 = vsel %vm549, %v465, %v581
      %v614 = vsel %vm550, %v468, %v582
      %v615 = vsel %vm551, %v473, %v583
      %v616 = vsel %vm552, %v476, %v584
      %v617 = vsel %vm553, %v481, %v585
      %v618 = vsel %vm554, %v484, %v586
      %v619 = vsel %vm555, %v489, %v587
      %v620 = vsel %vm556, %v492, %v588
      %v621 = vsel %vm557, %v497, %v589
      %v622 = vsel %vm558, %v500, %v590
      %v623 = vsel %vm559, %v505, %v591
      %v624 = vsel %vm560, %v508, %v592
      %v625 = vsel %vm561, %v513, %v593
      %v626 = vsel %vm562, %v516, %v594
      %v627 = vsel %vm563, %v521, %v595
      %v628 = vsel %vm564, %v524, %v596
      %v629 = vsel %vm565, %v529, %v597
      %v630 = vsel %vm566, %v532, %v598
      %v631 = vpack.c.bf16 %v600, %v599
      %v632 = vpack.c.bf16 %v602, %v601
      %v633 = vpack.c.bf16 %v604, %v603
      %v634 = vpack.c.bf16 %v606, %v605
      %v635 = vpack.c.bf16 %v608, %v607
      %v636 = vpack.c.bf16 %v610, %v609
      %v637 = vpack.c.bf16 %v612, %v611
      %v638 = vpack.c.bf16 %v614, %v613
      %v639 = vpack.c.bf16 %v616, %v615
      %v640 = vpack.c.bf16 %v618, %v617
      %v641 = vpack.c.bf16 %v620, %v619
      %v642 = vpack.c.bf16 %v622, %v621
      %v643 = vpack.c.bf16 %v624, %v623
      %v644 = vpack.c.bf16 %v626, %v625
      %v645 = vpack.c.bf16 %v628, %v627
      %v646 = vpack.c.bf16 %v630, %v629
      %v663 = vunpack.c.l.b16 %v631
      %v664 = vunpack.c.h.b16 %v631
      %v665 = vunpack.c.l.b16 %v632
      %v666 = vunpack.c.h.b16 %v632
      %v667 = vunpack.c.l.b16 %v633
      %v668 = vunpack.c.h.b16 %v633
      %v669 = vunpack.c.l.b16 %v634
      %v670 = vunpack.c.h.b16 %v634
      %v671 = vunpack.c.l.b16 %v635
      %v672 = vunpack.c.h.b16 %v635
      %v673 = vunpack.c.l.b16 %v636
      %v674 = vunpack.c.h.b16 %v636
      %v675 = vunpack.c.l.b16 %v637
      %v676 = vunpack.c.h.b16 %v637
      %v677 = vunpack.c.l.b16 %v638
      %v678 = vunpack.c.h.b16 %v638
      %v679 = vunpack.c.l.b16 %v639
      %v680 = vunpack.c.h.b16 %v639
      %v681 = vunpack.c.l.b16 %v640
      %v682 = vunpack.c.h.b16 %v640
      %v683 = vunpack.c.l.b16 %v641
      %v684 = vunpack.c.h.b16 %v641
      %v685 = vunpack.c.l.b16 %v642
      %v686 = vunpack.c.h.b16 %v642
      %v687 = vunpack.c.l.b16 %v643
      %v688 = vunpack.c.h.b16 %v643
      %v689 = vunpack.c.l.b16 %v644
      %v690 = vunpack.c.h.b16 %v644
      %v691 = vunpack.c.l.b16 %v645
      %v692 = vunpack.c.h.b16 %v645
      %v693 = vunpack.c.l.b16 %v646
      %v694 = vunpack.c.h.b16 %v646
      %v695 = vpack.c.b16 %v663, %v663
      %v696 = vpack.c.b16 %v664, %v664
      %v697 = vpack.c.b16 %v665, %v665
      %v698 = vpack.c.b16 %v666, %v666
      %v699 = vpack.c.b16 %v667, %v667
      %v700 = vpack.c.b16 %v668, %v668
      %v701 = vpack.c.b16 %v669, %v669
      %v702 = vpack.c.b16 %v670, %v670
      %v703 = vpack.c.b16 %v671, %v671
      %v704 = vpack.c.b16 %v672, %v672
      %v705 = vpack.c.b16 %v673, %v673
      %v706 = vpack.c.b16 %v674, %v674
      %v707 = vpack.c.b16 %v675, %v675
      %v708 = vpack.c.b16 %v676, %v676
      %v709 = vpack.c.b16 %v677, %v677
      %v710 = vpack.c.b16 %v678, %v678
      %v711 = vpack.c.b16 %v679, %v679
      %v712 = vpack.c.b16 %v680, %v680
      %v713 = vpack.c.b16 %v681, %v681
      %v714 = vpack.c.b16 %v682, %v682
      %v715 = vpack.c.b16 %v683, %v683
      %v716 = vpack.c.b16 %v684, %v684
      %v717 = vpack.c.b16 %v685, %v685
      %v718 = vpack.c.b16 %v686, %v686
      %v719 = vpack.c.b16 %v687, %v687
      %v720 = vpack.c.b16 %v688, %v688
      %v721 = vpack.c.b16 %v689, %v689
      %v722 = vpack.c.b16 %v690, %v690
      %v723 = vpack.c.b16 %v691, %v691
      %v724 = vpack.c.b16 %v692, %v692
      %v725 = vpack.c.b16 %v693, %v693
      %v726 = vpack.c.b16 %v694, %v694
      %759 = vst [vmem:[%s172] sm:$0xf] %v695
      %760 = vst [vmem:[%s172 + $0x4] sm:$0xf] %v696
      %761 = vst [vmem:[%s172 + $0x8] sm:$0xf] %v697
      %762 = vst [vmem:[%s172 + $0xc] sm:$0xf] %v698
      %763 = vst [vmem:[%s172 + $0x10] sm:$0xf] %v699
      %764 = vst [vmem:[%s172 + $0x14] sm:$0xf] %v700
      %765 = vst [vmem:[%s172 + $0x18] sm:$0xf] %v701
      %766 = vst [vmem:[%s172 + $0x1c] sm:$0xf] %v702
      %767 = vst [vmem:[%s172 + $0x20] sm:$0xf] %v703
      %768 = vst [vmem:[%s172 + $0x24] sm:$0xf] %v704
      %769 = vst [vmem:[%s172 + $0x28] sm:$0xf] %v705
      %770 = vst [vmem:[%s172 + $0x2c] sm:$0xf] %v706
      %771 = vst [vmem:[%s172 + $0x30] sm:$0xf] %v707
      %772 = vst [vmem:[%s172 + $0x34] sm:$0xf] %v708
      %773 = vst [vmem:[%s172 + $0x38] sm:$0xf] %v709
      %774 = vst [vmem:[%s172 + $0x3c] sm:$0xf] %v710
      %775 = vst [vmem:[%s172 + $0x40] sm:$0xf] %v711
      %776 = vst [vmem:[%s172 + $0x44] sm:$0xf] %v712
      %777 = vst [vmem:[%s172 + $0x48] sm:$0xf] %v713
      %778 = vst [vmem:[%s172 + $0x4c] sm:$0xf] %v714
      %779 = vst [vmem:[%s172 + $0x50] sm:$0xf] %v715
      %780 = vst [vmem:[%s172 + $0x54] sm:$0xf] %v716
      %781 = vst [vmem:[%s172 + $0x58] sm:$0xf] %v717
      %782 = vst [vmem:[%s172 + $0x5c] sm:$0xf] %v718
      %783 = vst [vmem:[%s172 + $0x60] sm:$0xf] %v719
      %784 = vst [vmem:[%s172 + $0x64] sm:$0xf] %v720
      %785 = vst [vmem:[%s172 + $0x68] sm:$0xf] %v721
      %786 = vst [vmem:[%s172 + $0x6c] sm:$0xf] %v722
      %787 = vst [vmem:[%s172 + $0x70] sm:$0xf] %v723
      %788 = vst [vmem:[%s172 + $0x74] sm:$0xf] %v724
      %789 = vst [vmem:[%s172 + $0x78] sm:$0xf] %v725
      %790 = vst [vmem:[%s172 + $0x7c] sm:$0xf] %v726
      %s791 = smul.u32 32, %s14
      %p792 = scmp.lt.s32.totalorder %s791, 255
      %s793 = scalar_select %p792, %s791, 255
      %s794 = smul.addr %s793, 4
      %s795 = scalar_lea.vmem %s3, %s794
      // Predicated region
      $region33: #{patch_discriminator.5} parent=31 // pred_check
        %p796 = pneg %p100
      $region34: #{patch_discriminator.5} parent=31 // pred_check_branch
        %798 = sbr.rel (%p796) target = $region36
      $region35: #{patch_discriminator.5} parent=31 // pred_region
        %s799 = smul.u32 32, %s14
      $region36: #{patch_discriminator.5} parent=31 // pred_fallthru
        _
    $region32: #{patch_discriminator.5} parent=5 // pred_fallthru
      _
    %p800 = scmp.le.s32.totalorder 2, %s9
    // Predicated region
    $region37: #{patch_discriminator.5} parent=5 // pred_check
      %p801 = pneg %p800
    $region38: #{patch_discriminator.5} parent=5 // pred_check_branch
      %803 = sbr.rel (%p801) target = $region40
    $region39: #{patch_discriminator.5} parent=5 // pred_region
      %s804 = ssub.s32 %s9, 2
      // Predicated region
      $region41: #{patch_discriminator.5} parent=39 // pred_check
        %p805 = pneg %p106
      $region42: #{patch_discriminator.5} parent=39 // pred_check_branch
        %807 = sbr.rel (%p805) target = $region44
      $region43: #{patch_discriminator.5} parent=39 // pred_region
        %s808 = smul.u32 32, %s15
        %p809 = scmp.lt.s32.totalorder %s808, 255
        %s810 = scalar_select %p809, %s808, 255
        %s811 = smul.addr %s810, 4
        %s812 = scalar_lea.vmem %s3, %s811
      $region44: #{patch_discriminator.5} parent=39 // pred_fallthru
        _
    $region40: #{patch_discriminator.5} parent=5 // pred_fallthru
      _
  $region6: #{patch_discriminator.5} parent=0 // loop_footer
    %s13 = sadd.s32 1, %s9
  $region7: #{patch_discriminator.5} parent=0 // loop_footer_branch
    %8 = sbr.rel target = $region3
  $region8: #{patch_discriminator.5} parent=0 // loop_exit
    _

// kernel: patch_discriminator.6
$region0: #{patch_discriminator.6}
  #allocation0 [shape = 'u32[]', space=smem, size = 0x4, offset = 0x4, fixed_abs, tag = 'smem constant byte address 0x4 - core index']
  #allocation1 [shape = 'u32[144,128]{1,0:T(1,128)}', space=vmem, size = 0x12000, scoped, tag = 'internal scratch']
  #allocation2 [shape = 'f32[2,256,128]{2,1,0:T(8,128)}', space=vmem, size = 0x40000, scoped, tag = 'scratch operand']
  #allocation3 [shape = 'f32[2,128]{1,0:T(2,128)}', space=vmem, size = 0x400, scoped, tag = 'scratch operand']
  #allocation4 [shape = 'f32[2,128]{1,0:T(2,128)}', space=vmem, size = 0x400, scoped, tag = 'scratch operand']
  %s0 = inlined_call_operand.vmem [shape: bf16[512,128], index: 0, kind: input, shape index: {}]
  %s1 = inlined_call_operand.vmem [shape: bf16[128,128], index: 1, kind: input, shape index: {}]
  %s2 = inlined_call_operand.vmem [shape: f32[1,128], index: 2, kind: input, shape index: {}]
  %s3 = inlined_call_operand.vmem [shape: f32[1,128], index: 3, kind: input, shape index: {}]
  %s4 = inlined_call_operand.vmem [shape: bf16[512,128], index: 4, kind: output, shape index: {}]
  %s5 = sld [smem:[#allocation0]]
  $region65: #{patch_discriminator.6} parent=0
    _
  %s7 = ssub.s32 1, %s5
  %s8 = scalar_select 0, %s7, %s5
  loop: start=0, step=1, limit=6
  $region2: #{patch_discriminator.6} parent=0 // loop_pre_header
    _
  $region3: #{patch_discriminator.6} parent=0 // loop_header
    %s10 = sphi 0, %s14
    %p11 = scmp.ge.s32.totalorder %s10, 6
    %s17 = sphi 0, %s29
    %s18 = sphi 0, %s25
    %s19 = sphi 0, %s17
    %s20 = sphi 0, %s18
    %s21 = sphi 0, %s19
    %s22 = sphi 0, %s20
    %s38 = sphi 0, %s40
    %s41 = sphi 0, %s38
    %s42 = sphi 0, %s41
    %s58 = sphi 0, %s42
    %s62 = sphi 0, %s62
    %s64 = sphi 0, %s62
    %s65 = sphi 0, %s64
    %s79 = sphi 0, %s65
    %s83 = sphi 0, %s83
    %s85 = sphi 0, %s83
    %s86 = sphi 0, %s85
    %s100 = sphi 0, %s86
    %s104 = sphi 0, %s104
    %s106 = sphi 0, %s104
    %s107 = sphi 0, %s106
    %s121 = sphi 0, %s107
    %s129 = sphi 0, %s131
    %s132 = sphi 0, %s129
    %s133 = sphi 0, %s132
    %s149 = sphi 0, %s133
  $region4: #{patch_discriminator.6} parent=0 // loop_header_branch
    %13 = sbr.rel (%p11) target = $region8
  $region5: #{patch_discriminator.6} parent=0 // loop_body
    %s15 = ssub.s32 %s10, 1
    %s16 = ssub.s32 %s10, 2
    %s23 = sadd.s32 1, %s18
    %p24 = scmp.ge.s32.totalorder %s23, 2
    %s25 = scalar_select %p24, 0, %s23
    %s26 = sadd.s32 1, %s17
    %s27 = scalar_select %p24, %s26, %s17
    %p28 = scmp.ge.s32.totalorder %s27, 2
    %s29 = scalar_select %p28, 0, %s27
    %s30 = ssub.s32 1, %s17
    %s31 = smul.u32 %s18, %s30
    %s32 = sadd.s32 %s31, %s17
    %s33 = ssub.s32 1, %s29
    %s34 = smul.u32 %s25, %s33
    %s35 = sadd.s32 %s34, %s29
    %s36 = ssub.s32 %s32, %s35
    %p37 = scmp.eq.s32.totalorder %s36, 0
    %s39 = sadd.s32 %s38, 1
    %s40 = scalar_select %p37, %s38, %s39
    %p43 = pneg %p37
    %p44 = scmp.eq.s32.totalorder %s10, 3
    %p45 = por %p43, %p44
    %p46 = scmp.ne.s32.totalorder %s38, %s41
    %p47 = scmp.eq.s32.totalorder %s10, 0
    %p48 = por %p46, %p47
    %p49 = scmp.ne.s32.totalorder %s38, %s41
    %p50 = scmp.eq.s32.totalorder %s15, 3
    %p51 = por %p49, %p50
    %p52 = scmp.ne.s32.totalorder %s41, %s42
    %p53 = scmp.eq.s32.totalorder %s15, 0
    %p54 = por %p52, %p53
    %p55 = scmp.ne.s32.totalorder %s41, %s42
    %p56 = scmp.eq.s32.totalorder %s16, 3
    %p57 = por %p55, %p56
    %p59 = scmp.ne.s32.totalorder %s42, %s58
    %p60 = scmp.eq.s32.totalorder %s16, 0
    %p61 = por %p59, %p60
    %s63 = sadd.s32 %s62, 1
    %p66 = scmp.eq.s32.totalorder %s10, 3
    %p67 = scmp.ne.s32.totalorder %s62, %s64
    %p68 = scmp.eq.s32.totalorder %s10, 0
    %p69 = por %p67, %p68
    %p70 = scmp.ne.s32.totalorder %s62, %s64
    %p71 = scmp.eq.s32.totalorder %s15, 3
    %p72 = por %p70, %p71
    %p73 = scmp.ne.s32.totalorder %s64, %s65
    %p74 = scmp.eq.s32.totalorder %s15, 0
    %p75 = por %p73, %p74
    %p76 = scmp.ne.s32.totalorder %s64, %s65
    %p77 = scmp.eq.s32.totalorder %s16, 3
    %p78 = por %p76, %p77
    %p80 = scmp.ne.s32.totalorder %s65, %s79
    %p81 = scmp.eq.s32.totalorder %s16, 0
    %p82 = por %p80, %p81
    %s84 = sadd.s32 %s83, 1
    %p87 = scmp.eq.s32.totalorder %s10, 3
    %p88 = scmp.ne.s32.totalorder %s83, %s85
    %p89 = scmp.eq.s32.totalorder %s10, 0
    %p90 = por %p88, %p89
    %p91 = scmp.ne.s32.totalorder %s83, %s85
    %p92 = scmp.eq.s32.totalorder %s15, 3
    %p93 = por %p91, %p92
    %p94 = scmp.ne.s32.totalorder %s85, %s86
    %p95 = scmp.eq.s32.totalorder %s15, 0
    %p96 = por %p94, %p95
    %p97 = scmp.ne.s32.totalorder %s85, %s86
    %p98 = scmp.eq.s32.totalorder %s16, 3
    %p99 = por %p97, %p98
    %p101 = scmp.ne.s32.totalorder %s86, %s100
    %p102 = scmp.eq.s32.totalorder %s16, 0
    %p103 = por %p101, %p102
    %s105 = sadd.s32 %s104, 1
    %p108 = scmp.eq.s32.totalorder %s10, 3
    %p109 = scmp.ne.s32.totalorder %s104, %s106
    %p110 = scmp.eq.s32.totalorder %s10, 0
    %p111 = por %p109, %p110
    %p112 = scmp.ne.s32.totalorder %s104, %s106
    %p113 = scmp.eq.s32.totalorder %s15, 3
    %p114 = por %p112, %p113
    %p115 = scmp.ne.s32.totalorder %s106, %s107
    %p116 = scmp.eq.s32.totalorder %s15, 0
    %p117 = por %p115, %p116
    %p118 = scmp.ne.s32.totalorder %s106, %s107
    %p119 = scmp.eq.s32.totalorder %s16, 3
    %p120 = por %p118, %p119
    %p122 = scmp.ne.s32.totalorder %s107, %s121
    %p123 = scmp.eq.s32.totalorder %s16, 0
    %p124 = por %p122, %p123
    %s125 = smul.u32 %s18, %s17
    %s126 = smul.u32 %s25, %s29
    %s127 = ssub.s32 %s125, %s126
    %p128 = scmp.eq.s32.totalorder %s127, 0
    %s130 = sadd.s32 %s129, 1
    %s131 = scalar_select %p128, %s129, %s130
    %p134 = pneg %p128
    %p135 = scmp.eq.s32.totalorder %s10, 3
    %p136 = por %p134, %p135
    %p137 = scmp.ne.s32.totalorder %s129, %s132
    %p138 = scmp.eq.s32.totalorder %s10, 0
    %p139 = por %p137, %p138
    %p140 = scmp.ne.s32.totalorder %s129, %s132
    %p141 = scmp.eq.s32.totalorder %s15, 3
    %p142 = por %p140, %p141
    %p143 = scmp.ne.s32.totalorder %s132, %s133
    %p144 = scmp.eq.s32.totalorder %s15, 0
    %p145 = por %p143, %p144
    %p146 = scmp.ne.s32.totalorder %s132, %s133
    %p147 = scmp.eq.s32.totalorder %s16, 3
    %p148 = por %p146, %p147
    %p150 = scmp.ne.s32.totalorder %s133, %s149
    %p151 = scmp.eq.s32.totalorder %s16, 0
    %p152 = por %p150, %p151
    %p153 = scmp.le.s32.totalorder 1, %s10
    %p154 = scmp.lt.s32.totalorder %s10, 5
    %p155 = pnand %p153, %p154
    %p156 = pneg %p155
    // Predicated region
    $region9: #{patch_discriminator.6} parent=5 // pred_check
      _
    $region10: #{patch_discriminator.6} parent=5 // pred_check_branch
      %158 = sbr.rel (%p155) target = $region12
    $region11: #{patch_discriminator.6} parent=5 // pred_region
      %s159 = ssub.s32 %s10, 1
      // Predicated region
      $region13: #{patch_discriminator.6} parent=11 // pred_check
        %p160 = pneg %p75
      $region14: #{patch_discriminator.6} parent=11 // pred_check_branch
        %162 = sbr.rel (%p160) target = $region16
      $region15: #{patch_discriminator.6} parent=11 // pred_region
        _
      $region16: #{patch_discriminator.6} parent=11 // pred_fallthru
        _
      // Predicated region
      $region17: #{patch_discriminator.6} parent=11 // pred_check
        %p163 = pneg %p96
      $region18: #{patch_discriminator.6} parent=11 // pred_check_branch
        %165 = sbr.rel (%p163) target = $region20
      $region19: #{patch_discriminator.6} parent=11 // pred_region
        _
      $region20: #{patch_discriminator.6} parent=11 // pred_fallthru
        _
      // Predicated region
      $region21: #{patch_discriminator.6} parent=11 // pred_check
        %p166 = pneg %p117
      $region22: #{patch_discriminator.6} parent=11 // pred_check_branch
        %168 = sbr.rel (%p166) target = $region24
      $region23: #{patch_discriminator.6} parent=11 // pred_region
        _
      $region24: #{patch_discriminator.6} parent=11 // pred_fallthru
        _
    $region12: #{patch_discriminator.6} parent=5 // pred_fallthru
      _
    %p169 = scmp.lt.s32.totalorder %s10, 4
    // Predicated region
    $region25: #{patch_discriminator.6} parent=5 // pred_check
      %p170 = pneg %p169
    $region26: #{patch_discriminator.6} parent=5 // pred_check_branch
      %172 = sbr.rel (%p170) target = $region28
    $region27: #{patch_discriminator.6} parent=5 // pred_region
      // Predicated region
      $region29: #{patch_discriminator.6} parent=27 // pred_check
        %p173 = pneg %p48
      $region30: #{patch_discriminator.6} parent=27 // pred_check_branch
        %175 = sbr.rel (%p173) target = $region32
      $region31: #{patch_discriminator.6} parent=27 // pred_region
        %s176 = ssub.s32 1, %s17
        %s177 = smul.u32 %s18, %s176
        %s178 = sadd.s32 %s177, %s17
        %s179 = smul.u32 32, %s178
        %p180 = scmp.lt.s32.totalorder %s179, 63
        %s181 = scalar_select %p180, %s179, 63
        %s182 = smul.addr %s181, 4
        %s183 = scalar_lea.vmem %s0, %s182
        %s184 = ssub.s32 1, %s17
        %s185 = smul.u32 %s18, %s184
        %s186 = sadd.s32 %s185, %s17
        %s187 = smul.u32 32, %s186
      $region32: #{patch_discriminator.6} parent=27 // pred_fallthru
        _
    $region28: #{patch_discriminator.6} parent=5 // pred_fallthru
      _
    %p188 = scmp.le.s32.totalorder 1, %s10
    %p189 = scmp.lt.s32.totalorder %s10, 5
    %p190 = pnand %p188, %p189
    %p191 = pneg %p190
    // Predicated region
    $region33: #{patch_discriminator.6} parent=5 // pred_check
      _
    $region34: #{patch_discriminator.6} parent=5 // pred_check_branch
      %193 = sbr.rel (%p190) target = $region36
    $region35: #{patch_discriminator.6} parent=5 // pred_region
      %s194 = ssub.s32 %s10, 1
      %s195 = ssub.s32 1, %s19
      %s196 = smul.u32 %s20, %s195
      %s197 = sadd.s32 %s196, %s19
      %s198 = smul.u32 32, %s197
      %p199 = scmp.lt.s32.totalorder %s198, 63
      %s200 = scalar_select %p199, %s198, 63
      %s201 = smul.addr %s200, 4
      %s202 = scalar_lea.vmem %s0, %s201
      %p203 = pneg %p54
      %p204 = pneg %p51
      %p205 = pneg %p75
      %p206 = pneg %p72
      %p207 = pneg %p96
      %p208 = pneg %p93
      %p209 = pneg %p117
      %p210 = pneg %p114
      %p211 = pneg %p145
      %p212 = pneg %p142
      %s213 = smul.u32 %s20, %s19
      %s214 = smul.u32 32, %s213
      %p215 = scmp.lt.s32.totalorder %s214, 63
      %s216 = scalar_select %p215, %s214, 63
      %s217 = smul.addr %s216, 4
      %s218 = scalar_lea.vmem %s4, %s217
      %s219 = ssub.s32 1, %s19
      %s220 = smul.u32 %s20, %s219
      %s221 = sadd.s32 %s220, %s19
      %s222 = smul.u32 32, %s221
      %p223 = scmp.lt.s32.totalorder %s222, 63
      %s224 = scalar_select %p223, %s222, 63
      %s225 = smul.addr %s224, 4
      %s226 = scalar_lea.vmem %s0, %s225
      %s227 = ssub.s32 1, %s19
      %s228 = smul.u32 %s20, %s227
      %s229 = sadd.s32 %s228, %s19
      %s230 = smul.u32 32, %s229
      %s231 = smul.u32 %s20, %s19
      %s232 = smul.u32 32, %s231
      %p233 = scmp.lt.s32.totalorder %s232, 63
      %s234 = scalar_select %p233, %s232, 63
      %s235 = smul.addr %s234, 4
      %s236 = scalar_lea.vmem %s4, %s235
      %s237 = smul.u32 %s20, %s19
      %s238 = smul.u32 32, %s237
      %p240 = scmp.eq.s32.totalorder %s19, 0
      // Predicated region
      $region37: #{patch_discriminator.6} parent=35 // pred_check
        %p241 = pneg %p240
      $region38: #{patch_discriminator.6} parent=35 // pred_check_branch
        %243 = sbr.rel (%p241) target = $region40
      $region39: #{patch_discriminator.6} parent=35 // pred_region
        %p244 = scmp.eq.s32.totalorder %s20, 0
        // Predicated region
        $region41: #{patch_discriminator.6} parent=39 // pred_check
          %p245 = pneg %p244
        $region42: #{patch_discriminator.6} parent=39 // pred_check_branch
          %247 = sbr.rel (%p245) target = $region44
        $region43: #{patch_discriminator.6} parent=39 // pred_region
          %248 = vst [vmem:[#allocation3] sm:$0x3] 0.0
        $region44: #{patch_discriminator.6} parent=39 // pred_fallthru
          _
        %v249 = vld [vmem:[%s226] sm:$0xf]
        %v250 = vld [vmem:[%s226 + $0x4] sm:$0xf]
        %v251 = vld [vmem:[%s226 + $0x8] sm:$0xf]
        %v252 = vld [vmem:[%s226 + $0xc] sm:$0xf]
        %v253 = vld [vmem:[%s226 + $0x10] sm:$0xf]
        %v254 = vld [vmem:[%s226 + $0x14] sm:$0xf]
        %v255 = vld [vmem:[%s226 + $0x18] sm:$0xf]
        %v256 = vld [vmem:[%s226 + $0x1c] sm:$0xf]
        %v257 = vld [vmem:[%s226 + $0x20] sm:$0xf]
        %v258 = vld [vmem:[%s226 + $0x24] sm:$0xf]
        %v259 = vld [vmem:[%s226 + $0x28] sm:$0xf]
        %v260 = vld [vmem:[%s226 + $0x2c] sm:$0xf]
        %v261 = vld [vmem:[%s226 + $0x30] sm:$0xf]
        %v262 = vld [vmem:[%s226 + $0x34] sm:$0xf]
        %v263 = vld [vmem:[%s226 + $0x38] sm:$0xf]
        %v264 = vld [vmem:[%s226 + $0x3c] sm:$0xf]
        %v265 = vld [vmem:[%s226 + $0x40] sm:$0xf]
        %v266 = vld [vmem:[%s226 + $0x44] sm:$0xf]
        %v267 = vld [vmem:[%s226 + $0x48] sm:$0xf]
        %v268 = vld [vmem:[%s226 + $0x4c] sm:$0xf]
        %v269 = vld [vmem:[%s226 + $0x50] sm:$0xf]
        %v270 = vld [vmem:[%s226 + $0x54] sm:$0xf]
        %v271 = vld [vmem:[%s226 + $0x58] sm:$0xf]
        %v272 = vld [vmem:[%s226 + $0x5c] sm:$0xf]
        %v273 = vld [vmem:[%s226 + $0x60] sm:$0xf]
        %v274 = vld [vmem:[%s226 + $0x64] sm:$0xf]
        %v275 = vld [vmem:[%s226 + $0x68] sm:$0xf]
        %v276 = vld [vmem:[%s226 + $0x6c] sm:$0xf]
        %v277 = vld [vmem:[%s226 + $0x70] sm:$0xf]
        %v278 = vld [vmem:[%s226 + $0x74] sm:$0xf]
        %v279 = vld [vmem:[%s226 + $0x78] sm:$0xf]
        %v280 = vld [vmem:[%s226 + $0x7c] sm:$0xf]
        %v281 = vld [vmem:[%s1] sm:$0xf]
        %v282 = vld [vmem:[%s1 + $0x4] sm:$0xf]
        %v283 = vld [vmem:[%s1 + $0x8] sm:$0xf]
        %v284 = vld [vmem:[%s1 + $0xc] sm:$0xf]
        %v285 = vld [vmem:[%s1 + $0x10] sm:$0xf]
        %v286 = vld [vmem:[%s1 + $0x14] sm:$0xf]
        %v287 = vld [vmem:[%s1 + $0x18] sm:$0xf]
        %v288 = vld [vmem:[%s1 + $0x1c] sm:$0xf]
        %v289 = vld [vmem:[%s1 + $0x20] sm:$0xf]
        %v290 = vld [vmem:[%s1 + $0x24] sm:$0xf]
        %v291 = vld [vmem:[%s1 + $0x28] sm:$0xf]
        %v292 = vld [vmem:[%s1 + $0x2c] sm:$0xf]
        %v293 = vld [vmem:[%s1 + $0x30] sm:$0xf]
        %v294 = vld [vmem:[%s1 + $0x34] sm:$0xf]
        %v295 = vld [vmem:[%s1 + $0x38] sm:$0xf]
        %v296 = vld [vmem:[%s1 + $0x3c] sm:$0xf]
        %v329 = vunpack.c.l.b16 %v249
        %v330 = vunpack.c.l.b16 %v250
        %v331 = vunpack.c.l.b16 %v251
        %v332 = vunpack.c.l.b16 %v252
        %v333 = vunpack.c.l.b16 %v253
        %v334 = vunpack.c.l.b16 %v254
        %v335 = vunpack.c.l.b16 %v255
        %v336 = vunpack.c.l.b16 %v256
        %v337 = vunpack.c.l.b16 %v257
        %v338 = vunpack.c.l.b16 %v258
        %v339 = vunpack.c.l.b16 %v259
        %v340 = vunpack.c.l.b16 %v260
        %v341 = vunpack.c.l.b16 %v261
        %v342 = vunpack.c.l.b16 %v262
        %v343 = vunpack.c.l.b16 %v263
        %v344 = vunpack.c.l.b16 %v264
        %v345 = vunpack.c.l.b16 %v265
        %v346 = vunpack.c.l.b16 %v266
        %v347 = vunpack.c.l.b16 %v267
        %v348 = vunpack.c.l.b16 %v268
        %v349 = vunpack.c.l.b16 %v269
        %v350 = vunpack.c.l.b16 %v270
        %v351 = vunpack.c.l.b16 %v271
        %v352 = vunpack.c.l.b16 %v272
        %v353 = vunpack.c.l.b16 %v273
        %v354 = vunpack.c.l.b16 %v274
        %v355 = vunpack.c.l.b16 %v275
        %v356 = vunpack.c.l.b16 %v276
        %v357 = vunpack.c.l.b16 %v277
        %v358 = vunpack.c.l.b16 %v278
        %v359 = vunpack.c.l.b16 %v279
        %v360 = vunpack.c.l.b16 %v280
        %v361 = vpack.c.b16 %v330, %v329
        %v362 = vpack.c.b16 %v332, %v331
        %v363 = vpack.c.b16 %v334, %v333
        %v364 = vpack.c.b16 %v336, %v335
        %v365 = vpack.c.b16 %v338, %v337
        %v366 = vpack.c.b16 %v340, %v339
        %v367 = vpack.c.b16 %v342, %v341
        %v368 = vpack.c.b16 %v344, %v343
        %v369 = vpack.c.b16 %v346, %v345
        %v370 = vpack.c.b16 %v348, %v347
        %v371 = vpack.c.b16 %v350, %v349
        %v372 = vpack.c.b16 %v352, %v351
        %v373 = vpack.c.b16 %v354, %v353
        %v374 = vpack.c.b16 %v356, %v355
        %v375 = vpack.c.b16 %v358, %v357
        %v376 = vpack.c.b16 %v360, %v359
        %v409 = vunpack.c.l.b16 %v281
        %v410 = vunpack.c.l.b16 %v282
        %v411 = vunpack.c.l.b16 %v283
        %v412 = vunpack.c.l.b16 %v284
        %v413 = vunpack.c.l.b16 %v285
        %v414 = vunpack.c.l.b16 %v286
        %v415 = vunpack.c.l.b16 %v287
        %v416 = vunpack.c.l.b16 %v288
        %v417 = vunpack.c.l.b16 %v289
        %v418 = vunpack.c.l.b16 %v290
        %v419 = vunpack.c.l.b16 %v291
        %v420 = vunpack.c.l.b16 %v292
        %v421 = vunpack.c.l.b16 %v293
        %v422 = vunpack.c.l.b16 %v294
        %v423 = vunpack.c.l.b16 %v295
        %v424 = vunpack.c.l.b16 %v296
        %v425 = vpack.c.b16 %v410, %v409
        %v426 = vpack.c.b16 %v412, %v411
        %v427 = vpack.c.b16 %v414, %v413
        %v428 = vpack.c.b16 %v416, %v415
        %v429 = vpack.c.b16 %v418, %v417
        %v430 = vpack.c.b16 %v420, %v419
        %v431 = vpack.c.b16 %v422, %v421
        %v432 = vpack.c.b16 %v424, %v423
        %441 = vmatprep.subr.bf16.mxu0 0
        %442 = vmatpush1.bf16.msra.mxu0 %v425
        %443 = vmatprep.subr.bf16.mxu0 0
        %444 = vmatpush1.bf16.msra.mxu0 %v426
        %445 = vmatprep.subr.bf16.mxu0 0
        %446 = vmatpush1.bf16.msra.mxu0 %v427
        %447 = vmatprep.subr.bf16.mxu0 0
        %448 = vmatpush1.bf16.msra.mxu0 %v428
        %449 = vmatprep.subr.bf16.mxu0 0
        %450 = vmatpush1.bf16.msra.mxu0 %v429
        %451 = vmatprep.subr.bf16.mxu0 0
        %452 = vmatpush1.bf16.msra.mxu0 %v430
        %453 = vmatprep.subr.bf16.mxu0 0
        %454 = vmatpush1.bf16.msra.mxu0 %v431
        %455 = vmatprep.subr.bf16.mxu0 0
        %456 = vmatpush1.bf16.msra.mxu0 %v432
        %457 = vmatprep.subr.bf16.mxu0 0
        %458 = vmatpush1.bf16.msra.mxu0 0
        %459 = vmatprep.subr.bf16.mxu0 0
        %460 = vmatpush1.bf16.msra.mxu0 0
        %461 = vmatprep.subr.bf16.mxu0 0
        %462 = vmatpush1.bf16.msra.mxu0 0
        %463 = vmatprep.subr.bf16.mxu0 0
        %464 = vmatpush1.bf16.msra.mxu0 0
        %465 = vmatprep.subr.bf16.mxu0 0
        %466 = vmatpush1.bf16.msra.mxu0 0
        %467 = vmatprep.subr.bf16.mxu0 0
        %468 = vmatpush1.bf16.msra.mxu0 0
        %469 = vmatprep.subr.bf16.mxu0 0
        %470 = vmatpush1.bf16.msra.mxu0 0
        %471 = vmatprep.subr.bf16.mxu0 0
        %472 = vmatpush1.bf16.msra.mxu0 0
        %473 = vmatprep.mubr.bf16.mxu0 0
        %474 = vmatmul.mubr.bf16.gmra.mrb[0].mxu0 %v361
        %v475 = vpop.f32.mrb[0].mxu0
        %v476 = vadd.f32 0.0, %v475
        %v477 = vpop.f32.mrb[0].mxu0
        %v478 = vpop.f32.mrb[0].mxu0
        %v479 = vadd.f32 0.0, %v478
        %v480 = vpop.f32.mrb[0].mxu0
        %481 = vmatprep.mubr.bf16.mxu0 0
        %482 = vmatmul.mubr.bf16.gmra.mrb[0].mxu0 %v362
        %v483 = vpop.f32.mrb[0].mxu0
        %v484 = vadd.f32 0.0, %v483
        %v485 = vpop.f32.mrb[0].mxu0
        %v486 = vpop.f32.mrb[0].mxu0
        %v487 = vadd.f32 0.0, %v486
        %v488 = vpop.f32.mrb[0].mxu0
        %489 = vmatprep.mubr.bf16.mxu0 0
        %490 = vmatmul.mubr.bf16.gmra.mrb[0].mxu0 %v363
        %v491 = vpop.f32.mrb[0].mxu0
        %v492 = vadd.f32 0.0, %v491
        %v493 = vpop.f32.mrb[0].mxu0
        %v494 = vpop.f32.mrb[0].mxu0
        %v495 = vadd.f32 0.0, %v494
        %v496 = vpop.f32.mrb[0].mxu0
        %497 = vmatprep.mubr.bf16.mxu0 0
        %498 = vmatmul.mubr.bf16.gmra.mrb[0].mxu0 %v364
        %v499 = vpop.f32.mrb[0].mxu0
        %v500 = vadd.f32 0.0, %v499
        %v501 = vpop.f32.mrb[0].mxu0
        %v502 = vpop.f32.mrb[0].mxu0
        %v503 = vadd.f32 0.0, %v502
        %v504 = vpop.f32.mrb[0].mxu0
        %505 = vmatprep.mubr.bf16.mxu0 0
        %506 = vmatmul.mubr.bf16.gmra.mrb[0].mxu0 %v365
        %v507 = vpop.f32.mrb[0].mxu0
        %v508 = vadd.f32 0.0, %v507
        %v509 = vpop.f32.mrb[0].mxu0
        %v510 = vpop.f32.mrb[0].mxu0
        %v511 = vadd.f32 0.0, %v510
        %v512 = vpop.f32.mrb[0].mxu0
        %513 = vmatprep.mubr.bf16.mxu0 0
        %514 = vmatmul.mubr.bf16.gmra.mrb[0].mxu0 %v366
        %v515 = vpop.f32.mrb[0].mxu0
        %v516 = vadd.f32 0.0, %v515
        %v517 = vpop.f32.mrb[0].mxu0
        %v518 = vpop.f32.mrb[0].mxu0
        %v519 = vadd.f32 0.0, %v518
        %v520 = vpop.f32.mrb[0].mxu0
        %521 = vmatprep.mubr.bf16.mxu0 0
        %522 = vmatmul.mubr.bf16.gmra.mrb[0].mxu0 %v367
        %v523 = vpop.f32.mrb[0].mxu0
        %v524 = vadd.f32 0.0, %v523
        %v525 = vpop.f32.mrb[0].mxu0
        %v526 = vpop.f32.mrb[0].mxu0
        %v527 = vadd.f32 0.0, %v526
        %v528 = vpop.f32.mrb[0].mxu0
        %529 = vmatprep.mubr.bf16.mxu0 0
        %530 = vmatmul.mubr.bf16.gmra.mrb[0].mxu0 %v368
        %v531 = vpop.f32.mrb[0].mxu0
        %v532 = vadd.f32 0.0, %v531
        %v533 = vpop.f32.mrb[0].mxu0
        %v534 = vpop.f32.mrb[0].mxu0
        %v535 = vadd.f32 0.0, %v534
        %v536 = vpop.f32.mrb[0].mxu0
        %537 = vmatprep.mubr.bf16.mxu0 0
        %538 = vmatmul.mubr.bf16.gmra.mrb[0].mxu0 %v369
        %v539 = vpop.f32.mrb[0].mxu0
        %v540 = vadd.f32 0.0, %v539
        %v541 = vpop.f32.mrb[0].mxu0
        %v542 = vpop.f32.mrb[0].mxu0
        %v543 = vadd.f32 0.0, %v542
        %v544 = vpop.f32.mrb[0].mxu0
        %545 = vmatprep.mubr.bf16.mxu0 0
        %546 = vmatmul.mubr.bf16.gmra.mrb[0].mxu0 %v370
        %v547 = vpop.f32.mrb[0].mxu0
        %v548 = vadd.f32 0.0, %v547
        %v549 = vpop.f32.mrb[0].mxu0
        %v550 = vpop.f32.mrb[0].mxu0
        %v551 = vadd.f32 0.0, %v550
        %v552 = vpop.f32.mrb[0].mxu0
        %553 = vmatprep.mubr.bf16.mxu0 0
        %554 = vmatmul.mubr.bf16.gmra.mrb[0].mxu0 %v371
        %v555 = vpop.f32.mrb[0].mxu0
        %v556 = vadd.f32 0.0, %v555
        %v557 = vpop.f32.mrb[0].mxu0
        %v558 = vpop.f32.mrb[0].mxu0
        %v559 = vadd.f32 0.0, %v558
        %v560 = vpop.f32.mrb[0].mxu0
        %561 = vmatprep.mubr.bf16.mxu0 0
        %562 = vmatmul.mubr.bf16.gmra.mrb[0].mxu0 %v372
        %v563 = vpop.f32.mrb[0].mxu0
        %v564 = vadd.f32 0.0, %v563
        %v565 = vpop.f32.mrb[0].mxu0
        %v566 = vpop.f32.mrb[0].mxu0
        %v567 = vadd.f32 0.0, %v566
        %v568 = vpop.f32.mrb[0].mxu0
        %569 = vmatprep.mubr.bf16.mxu0 0
        %570 = vmatmul.mubr.bf16.gmra.mrb[0].mxu0 %v373
        %v571 = vpop.f32.mrb[0].mxu0
        %v572 = vadd.f32 0.0, %v571
        %v573 = vpop.f32.mrb[0].mxu0
        %v574 = vpop.f32.mrb[0].mxu0
        %v575 = vadd.f32 0.0, %v574
        %v576 = vpop.f32.mrb[0].mxu0
        %577 = vmatprep.mubr.bf16.mxu0 0
        %578 = vmatmul.mubr.bf16.gmra.mrb[0].mxu0 %v374
        %v579 = vpop.f32.mrb[0].mxu0
        %v580 = vadd.f32 0.0, %v579
        %v581 = vpop.f32.mrb[0].mxu0
        %v582 = vpop.f32.mrb[0].mxu0
        %v583 = vadd.f32 0.0, %v582
        %v584 = vpop.f32.mrb[0].mxu0
        %585 = vmatprep.mubr.bf16.mxu0 0
        %586 = vmatmul.mubr.bf16.gmra.mrb[0].mxu0 %v375
        %v587 = vpop.f32.mrb[0].mxu0
        %v588 = vadd.f32 0.0, %v587
        %v589 = vpop.f32.mrb[0].mxu0
        %v590 = vpop.f32.mrb[0].mxu0
        %v591 = vadd.f32 0.0, %v590
        %v592 = vpop.f32.mrb[0].mxu0
        %593 = vmatprep.mubr.bf16.mxu0 0
        %594 = vmatmul.mubr.bf16.gmra.mrb[0].mxu0 %v376
        %v595 = vpop.f32.mrb[0].mxu0
        %v596 = vadd.f32 0.0, %v595
        %v597 = vpop.f32.mrb[0].mxu0
        %v598 = vpop.f32.mrb[0].mxu0
        %v599 = vadd.f32 0.0, %v598
        %v600 = vpop.f32.mrb[0].mxu0
        %601 = vdwg.mxu0
        %s602 = smul.u32 %s20, 256
        %s603 = scalar_lea.vmem [#allocation2], %s602
        %604 = vst [vmem:[%s603] sm:$0xff] %v476
        %605 = vst [vmem:[%s603 + $0x8] sm:$0xff] %v479
        %606 = vst [vmem:[%s603 + $0x10] sm:$0xff] %v484
        %607 = vst [vmem:[%s603 + $0x18] sm:$0xff] %v487
        %608 = vst [vmem:[%s603 + $0x20] sm:$0xff] %v492
        %609 = vst [vmem:[%s603 + $0x28] sm:$0xff] %v495
        %610 = vst [vmem:[%s603 + $0x30] sm:$0xff] %v500
        %611 = vst [vmem:[%s603 + $0x38] sm:$0xff] %v503
        %612 = vst [vmem:[%s603 + $0x40] sm:$0xff] %v508
        %613 = vst [vmem:[%s603 + $0x48] sm:$0xff] %v511
        %614 = vst [vmem:[%s603 + $0x50] sm:$0xff] %v516
        %615 = vst [vmem:[%s603 + $0x58] sm:$0xff] %v519
        %616 = vst [vmem:[%s603 + $0x60] sm:$0xff] %v524
        %617 = vst [vmem:[%s603 + $0x68] sm:$0xff] %v527
        %618 = vst [vmem:[%s603 + $0x70] sm:$0xff] %v532
        %619 = vst [vmem:[%s603 + $0x78] sm:$0xff] %v535
        %620 = vst [vmem:[%s603 + $0x80] sm:$0xff] %v540
        %621 = vst [vmem:[%s603 + $0x88] sm:$0xff] %v543
        %622 = vst [vmem:[%s603 + $0x90] sm:$0xff] %v548
        %623 = vst [vmem:[%s603 + $0x98] sm:$0xff] %v551
        %624 = vst [vmem:[%s603 + $0xa0] sm:$0xff] %v556
        %625 = vst [vmem:[%s603 + $0xa8] sm:$0xff] %v559
        %626 = vst [vmem:[%s603 + $0xb0] sm:$0xff] %v564
        %627 = vst [vmem:[%s603 + $0xb8] sm:$0xff] %v567
        %628 = vst [vmem:[%s603 + $0xc0] sm:$0xff] %v572
        %629 = vst [vmem:[%s603 + $0xc8] sm:$0xff] %v575
        %630 = vst [vmem:[%s603 + $0xd0] sm:$0xff] %v580
        %631 = vst [vmem:[%s603 + $0xd8] sm:$0xff] %v583
        %632 = vst [vmem:[%s603 + $0xe0] sm:$0xff] %v588
        %633 = vst [vmem:[%s603 + $0xe8] sm:$0xff] %v591
        %634 = vst [vmem:[%s603 + $0xf0] sm:$0xff] %v596
        %635 = vst [vmem:[%s603 + $0xf8] sm:$0xff] %v599
        %v636 = vlaneseq
        %v637 = vshrl.u32 %v636, 7
        %v638 = vadd.s32 %v637, 8
        %v639 = vadd.s32 %v637, 16
        %v640 = vadd.s32 %v637, 24
        %v641 = vadd.s32 %v637, 32
        %v642 = vadd.s32 %v637, 40
        %v643 = vadd.s32 %v637, 48
        %v644 = vadd.s32 %v637, 56
        %v645 = vadd.s32 %v637, 64
        %v646 = vadd.s32 %v637, 72
        %v647 = vadd.s32 %v637, 80
        %v648 = vadd.s32 %v637, 88
        %v649 = vadd.s32 %v637, 96
        %v650 = vadd.s32 %v637, 104
        %v651 = vadd.s32 %v637, 112
        %v652 = vadd.s32 %v637, 120
        %v653 = vadd.s32 %v637, 128
        %v654 = vadd.s32 %v637, 136
        %v655 = vadd.s32 %v637, 144
        %v656 = vadd.s32 %v637, 152
        %v657 = vadd.s32 %v637, 160
        %v658 = vadd.s32 %v637, 168
        %v659 = vadd.s32 %v637, 176
        %v660 = vadd.s32 %v637, 184
        %v661 = vadd.s32 %v637, 192
        %v662 = vadd.s32 %v637, 200
        %v663 = vadd.s32 %v637, 208
        %v664 = vadd.s32 %v637, 216
        %v665 = vadd.s32 %v637, 224
        %v666 = vadd.s32 %v637, 232
        %v667 = vadd.s32 %v637, 240
        %v668 = vadd.s32 %v637, 248
        %v669 = vstv %s602
        %v670 = vadd.s32 %v637, %v669
        %v671 = vadd.s32 %v638, %v669
        %v672 = vadd.s32 %v639, %v669
        %v673 = vadd.s32 %v640, %v669
        %v674 = vadd.s32 %v641, %v669
        %v675 = vadd.s32 %v642, %v669
        %v676 = vadd.s32 %v643, %v669
        %v677 = vadd.s32 %v644, %v669
        %v678 = vadd.s32 %v645, %v669
        %v679 = vadd.s32 %v646, %v669
        %v680 = vadd.s32 %v647, %v669
        %v681 = vadd.s32 %v648, %v669
        %v682 = vadd.s32 %v649, %v669
        %v683 = vadd.s32 %v650, %v669
        %v684 = vadd.s32 %v651, %v669
        %v685 = vadd.s32 %v652, %v669
        %v686 = vadd.s32 %v653, %v669
        %v687 = vadd.s32 %v654, %v669
        %v688 = vadd.s32 %v655, %v669
        %v689 = vadd.s32 %v656, %v669
        %v690 = vadd.s32 %v657, %v669
        %v691 = vadd.s32 %v658, %v669
        %v692 = vadd.s32 %v659, %v669
        %v693 = vadd.s32 %v660, %v669
        %v694 = vadd.s32 %v661, %v669
        %v695 = vadd.s32 %v662, %v669
        %v696 = vadd.s32 %v663, %v669
        %v697 = vadd.s32 %v664, %v669
        %v698 = vadd.s32 %v665, %v669
        %v699 = vadd.s32 %v666, %v669
        %v700 = vadd.s32 %v667, %v669
        %v701 = vadd.s32 %v668, %v669
        %vm702 = vcmp.lt.s32.totalorder %v670, 512
        %vm703 = vcmp.lt.s32.totalorder %v671, 512
        %vm704 = vcmp.lt.s32.totalorder %v672, 512
        %vm705 = vcmp.lt.s32.totalorder %v673, 512
        %vm706 = vcmp.lt.s32.totalorder %v674, 512
        %vm707 = vcmp.lt.s32.totalorder %v675, 512
        %vm708 = vcmp.lt.s32.totalorder %v676, 512
        %vm709 = vcmp.lt.s32.totalorder %v677, 512
        %vm710 = vcmp.lt.s32.totalorder %v678, 512
        %vm711 = vcmp.lt.s32.totalorder %v679, 512
        %vm712 = vcmp.lt.s32.totalorder %v680, 512
        %vm713 = vcmp.lt.s32.totalorder %v681, 512
        %vm714 = vcmp.lt.s32.totalorder %v682, 512
        %vm715 = vcmp.lt.s32.totalorder %v683, 512
        %vm716 = vcmp.lt.s32.totalorder %v684, 512
        %vm717 = vcmp.lt.s32.totalorder %v685, 512
        %vm718 = vcmp.lt.s32.totalorder %v686, 512
        %vm719 = vcmp.lt.s32.totalorder %v687, 512
        %vm720 = vcmp.lt.s32.totalorder %v688, 512
        %vm721 = vcmp.lt.s32.totalorder %v689, 512
        %vm722 = vcmp.lt.s32.totalorder %v690, 512
        %vm723 = vcmp.lt.s32.totalorder %v691, 512
        %vm724 = vcmp.lt.s32.totalorder %v692, 512
        %vm725 = vcmp.lt.s32.totalorder %v693, 512
        %vm726 = vcmp.lt.s32.totalorder %v694, 512
        %vm727 = vcmp.lt.s32.totalorder %v695, 512
        %vm728 = vcmp.lt.s32.totalorder %v696, 512
        %vm729 = vcmp.lt.s32.totalorder %v697, 512
        %vm730 = vcmp.lt.s32.totalorder %v698, 512
        %vm731 = vcmp.lt.s32.totalorder %v699, 512
        %vm732 = vcmp.lt.s32.totalorder %v700, 512
        %vm733 = vcmp.lt.s32.totalorder %v701, 512
        %v734 = vsel %vm702, 1, 0
        %v735 = vsel %vm703, 1, 0
        %v736 = vsel %vm704, 1, 0
        %v737 = vsel %vm705, 1, 0
        %v738 = vsel %vm706, 1, 0
        %v739 = vsel %vm707, 1, 0
        %v740 = vsel %vm708, 1, 0
        %v741 = vsel %vm709, 1, 0
        %v742 = vsel %vm710, 1, 0
        %v743 = vsel %vm711, 1, 0
        %v744 = vsel %vm712, 1, 0
        %v745 = vsel %vm713, 1, 0
        %v746 = vsel %vm714, 1, 0
        %v747 = vsel %vm715, 1, 0
        %v748 = vsel %vm716, 1, 0
        %v749 = vsel %vm717, 1, 0
        %v750 = vsel %vm718, 1, 0
        %v751 = vsel %vm719, 1, 0
        %v752 = vsel %vm720, 1, 0
        %v753 = vsel %vm721, 1, 0
        %v754 = vsel %vm722, 1, 0
        %v755 = vsel %vm723, 1, 0
        %v756 = vsel %vm724, 1, 0
        %v757 = vsel %vm725, 1, 0
        %v758 = vsel %vm726, 1, 0
        %v759 = vsel %vm727, 1, 0
        %v760 = vsel %vm728, 1, 0
        %v761 = vsel %vm729, 1, 0
        %v762 = vsel %vm730, 1, 0
        %v763 = vsel %vm731, 1, 0
        %v764 = vsel %vm732, 1, 0
        %v765 = vsel %vm733, 1, 0
        %vm766 = vcmp.eq.s32.totalorder %v734, 1
        %vm767 = vcmp.eq.s32.totalorder %v735, 1
        %vm768 = vcmp.eq.s32.totalorder %v736, 1
        %vm769 = vcmp.eq.s32.totalorder %v737, 1
        %vm770 = vcmp.eq.s32.totalorder %v738, 1
        %vm771 = vcmp.eq.s32.totalorder %v739, 1
        %vm772 = vcmp.eq.s32.totalorder %v740, 1
        %vm773 = vcmp.eq.s32.totalorder %v741, 1
        %vm774 = vcmp.eq.s32.totalorder %v742, 1
        %vm775 = vcmp.eq.s32.totalorder %v743, 1
        %vm776 = vcmp.eq.s32.totalorder %v744, 1
        %vm777 = vcmp.eq.s32.totalorder %v745, 1
        %vm778 = vcmp.eq.s32.totalorder %v746, 1
        %vm779 = vcmp.eq.s32.totalorder %v747, 1
        %vm780 = vcmp.eq.s32.totalorder %v748, 1
        %vm781 = vcmp.eq.s32.totalorder %v749, 1
        %vm782 = vcmp.eq.s32.totalorder %v750, 1
        %vm783 = vcmp.eq.s32.totalorder %v751, 1
        %vm784 = vcmp.eq.s32.totalorder %v752, 1
        %vm785 = vcmp.eq.s32.totalorder %v753, 1
        %vm786 = vcmp.eq.s32.totalorder %v754, 1
        %vm787 = vcmp.eq.s32.totalorder %v755, 1
        %vm788 = vcmp.eq.s32.totalorder %v756, 1
        %vm789 = vcmp.eq.s32.totalorder %v757, 1
        %vm790 = vcmp.eq.s32.totalorder %v758, 1
        %vm791 = vcmp.eq.s32.totalorder %v759, 1
        %vm792 = vcmp.eq.s32.totalorder %v760, 1
        %vm793 = vcmp.eq.s32.totalorder %v761, 1
        %vm794 = vcmp.eq.s32.totalorder %v762, 1
        %vm795 = vcmp.eq.s32.totalorder %v763, 1
        %vm796 = vcmp.eq.s32.totalorder %v764, 1
        %vm797 = vcmp.eq.s32.totalorder %v765, 1
        %v798 = vsel %vm766, %v476, 0.0
        %v799 = vsel %vm767, %v479, 0.0
        %v800 = vsel %vm768, %v484, 0.0
        %v801 = vsel %vm769, %v487, 0.0
        %v802 = vsel %vm770, %v492, 0.0
        %v803 = vsel %vm771, %v495, 0.0
        %v804 = vsel %vm772, %v500, 0.0
        %v805 = vsel %vm773, %v503, 0.0
        %v806 = vsel %vm774, %v508, 0.0
        %v807 = vsel %vm775, %v511, 0.0
        %v808 = vsel %vm776, %v516, 0.0
        %v809 = vsel %vm777, %v519, 0.0
        %v810 = vsel %vm778, %v524, 0.0
        %v811 = vsel %vm779, %v527, 0.0
        %v812 = vsel %vm780, %v532, 0.0
        %v813 = vsel %vm781, %v535, 0.0
        %v814 = vsel %vm782, %v540, 0.0
        %v815 = vsel %vm783, %v543, 0.0
        %v816 = vsel %vm784, %v548, 0.0
        %v817 = vsel %vm785, %v551, 0.0
        %v818 = vsel %vm786, %v556, 0.0
        %v819 = vsel %vm787, %v559, 0.0
        %v820 = vsel %vm788, %v564, 0.0
        %v821 = vsel %vm789, %v567, 0.0
        %v822 = vsel %vm790, %v572, 0.0
        %v823 = vsel %vm791, %v575, 0.0
        %v824 = vsel %vm792, %v580, 0.0
        %v825 = vsel %vm793, %v583, 0.0
        %v826 = vsel %vm794, %v588, 0.0
        %v827 = vsel %vm795, %v591, 0.0
        %v828 = vsel %vm796, %v596, 0.0
        %v829 = vsel %vm797, %v599, 0.0
        %v830 = vld [vmem:[#allocation3] sm:$0x1]
        %v831 = vadd.f32 %v798, %v799
        %v832 = vadd.f32 %v831, %v800
        %v833 = vadd.f32 %v832, %v801
        %v834 = vadd.f32 %v833, %v802
        %v835 = vadd.f32 %v834, %v803
        %v836 = vadd.f32 %v835, %v804
        %v837 = vadd.f32 %v836, %v805
        %v838 = vadd.f32 %v837, %v806
        %v839 = vadd.f32 %v838, %v807
        %v840 = vadd.f32 %v839, %v808
        %v841 = vadd.f32 %v840, %v809
        %v842 = vadd.f32 %v841, %v810
        %v843 = vadd.f32 %v842, %v811
        %v844 = vadd.f32 %v843, %v812
        %v845 = vadd.f32 %v844, %v813
        %v846 = vadd.f32 %v845, %v814
        %v847 = vadd.f32 %v846, %v815
        %v848 = vadd.f32 %v847, %v816
        %v849 = vadd.f32 %v848, %v817
        %v850 = vadd.f32 %v849, %v818
        %v851 = vadd.f32 %v850, %v819
        %v852 = vadd.f32 %v851, %v820
        %v853 = vadd.f32 %v852, %v821
        %v854 = vadd.f32 %v853, %v822
        %v855 = vadd.f32 %v854, %v823
        %v856 = vadd.f32 %v855, %v824
        %v857 = vadd.f32 %v856, %v825
        %v858 = vadd.f32 %v857, %v826
        %v859 = vadd.f32 %v858, %v827
        %v860 = vadd.f32 %v859, %v828
        %v861 = vadd.f32 %v860, %v829
        %v862 = vrot.slane %v861, 4
        %v863 = vadd.f32 %v861, %v862
        %v864 = vrot.slane %v863, 2
        %v865 = vadd.f32 %v863, %v864
        %v866 = vrot.slane %v865, 1
        %v867 = vadd.f32 %v865, %v866
        %v868 = vadd.f32 %v830, %v867
        %869 = vst [vmem:[#allocation3] sm:$0x1] %v868
        %v870 = vld [vmem:[#allocation3 + $0x1] sm:$0x1]
        %v871 = vmul.f32 %v798, %v798
        %v872 = vmul.f32 %v799, %v799
        %v873 = vmul.f32 %v800, %v800
        %v874 = vmul.f32 %v801, %v801
        %v875 = vmul.f32 %v802, %v802
        %v876 = vmul.f32 %v803, %v803
        %v877 = vmul.f32 %v804, %v804
        %v878 = vmul.f32 %v805, %v805
        %v879 = vmul.f32 %v806, %v806
        %v880 = vmul.f32 %v807, %v807
        %v881 = vmul.f32 %v808, %v808
        %v882 = vmul.f32 %v809, %v809
        %v883 = vmul.f32 %v810, %v810
        %v884 = vmul.f32 %v811, %v811
        %v885 = vmul.f32 %v812, %v812
        %v886 = vmul.f32 %v813, %v813
        %v887 = vmul.f32 %v814, %v814
        %v888 = vmul.f32 %v815, %v815
        %v889 = vmul.f32 %v816, %v816
        %v890 = vmul.f32 %v817, %v817
        %v891 = vmul.f32 %v818, %v818
        %v892 = vmul.f32 %v819, %v819
        %v893 = vmul.f32 %v820, %v820
        %v894 = vmul.f32 %v821, %v821
        %v895 = vmul.f32 %v822, %v822
        %v896 = vmul.f32 %v823, %v823
        %v897 = vmul.f32 %v824, %v824
        %v898 = vmul.f32 %v825, %v825
        %v899 = vmul.f32 %v826, %v826
        %v900 = vmul.f32 %v827, %v827
        %v901 = vmul.f32 %v828, %v828
        %v902 = vmul.f32 %v829, %v829
        %v903 = vadd.f32 %v871, %v872
        %v904 = vadd.f32 %v903, %v873
        %v905 = vadd.f32 %v904, %v874
        %v906 = vadd.f32 %v905, %v875
        %v907 = vadd.f32 %v906, %v876
        %v908 = vadd.f32 %v907, %v877
        %v909 = vadd.f32 %v908, %v878
        %v910 = vadd.f32 %v909, %v879
        %v911 = vadd.f32 %v910, %v880
        %v912 = vadd.f32 %v911, %v881
        %v913 = vadd.f32 %v912, %v882
        %v914 = vadd.f32 %v913, %v883
        %v915 = vadd.f32 %v914, %v884
        %v916 = vadd.f32 %v915, %v885
        %v917 = vadd.f32 %v916, %v886
        %v918 = vadd.f32 %v917, %v887
        %v919 = vadd.f32 %v918, %v888
        %v920 = vadd.f32 %v919, %v889
        %v921 = vadd.f32 %v920, %v890
        %v922 = vadd.f32 %v921, %v891
        %v923 = vadd.f32 %v922, %v892
        %v924 = vadd.f32 %v923, %v893
        %v925 = vadd.f32 %v924, %v894
        %v926 = vadd.f32 %v925, %v895
        %v927 = vadd.f32 %v926, %v896
        %v928 = vadd.f32 %v927, %v897
        %v929 = vadd.f32 %v928, %v898
        %v930 = vadd.f32 %v929, %v899
        %v931 = vadd.f32 %v930, %v900
        %v932 = vadd.f32 %v931, %v901
        %v933 = vadd.f32 %v932, %v902
        %v934 = vrot.slane %v933, 4
        %v935 = vadd.f32 %v933, %v934
        %v936 = vrot.slane %v935, 2
        %v937 = vadd.f32 %v935, %v936
        %v938 = vrot.slane %v937, 1
        %v939 = vadd.f32 %v937, %v938
        %v940 = vadd.f32 %v870, %v939
        %941 = vst [vmem:[#allocation3 + $0x1] sm:$0x1] %v940
      $region40: #{patch_discriminator.6} parent=35 // pred_fallthru
        _
      %p942 = scmp.eq.s32.totalorder %s19, 1
      // Predicated region
      $region45: #{patch_discriminator.6} parent=35 // pred_check
        %p943 = pneg %p942
      $region46: #{patch_discriminator.6} parent=35 // pred_check_branch
        %945 = sbr.rel (%p943) target = $region48
      $region47: #{patch_discriminator.6} parent=35 // pred_region
        %p946 = scmp.eq.s32.totalorder %s20, 0
        // Predicated region
        $region49: #{patch_discriminator.6} parent=47 // pred_check
          %p947 = pneg %p946
        $region50: #{patch_discriminator.6} parent=47 // pred_check_branch
          %949 = sbr.rel (%p947) target = $region52
        $region51: #{patch_discriminator.6} parent=47 // pred_region
          %v950 = vld [vmem:[#allocation3] sm:$0x1]
          %v951 = vmul.f32 %v950, 0.001953125
          %v952 = vld [vmem:[#allocation3 + $0x1] sm:$0x1]
          %v953 = vmul.f32 %v952, 0.001953125
          %v954 = vmul.f32 %v951, %v951
          %v955 = vsub.f32 %v953, %v954
          %v956 = vmax.f32 %v955, 0.0
          %v957 = vld [vmem:[%s2] sm:$0x1]
          %v958 = vadd.f32 %v956, 1e-05
          %v959 = vrsqrt.pop %v958
          %v960 = vmul.f32 %v957, %v959
          %961 = vst [vmem:[#allocation4] sm:$0x1] %v960
          %v962 = vld [vmem:[%s3] sm:$0x1]
          %v963 = vmul.f32 %v951, %v960
          %v964 = vsub.f32 %v962, %v963
          %965 = vst [vmem:[#allocation4 + $0x1] sm:$0x1] %v964
        $region52: #{patch_discriminator.6} parent=47 // pred_fallthru
          _
        %s966 = smul.u32 %s20, 256
        %s967 = scalar_lea.vmem [#allocation2], %s966
        %v968 = vld [vmem:[%s967] sm:$0xff]
        %v969 = vld [vmem:[%s967 + $0x8] sm:$0xff]
        %v970 = vld [vmem:[%s967 + $0x10] sm:$0xff]
        %v971 = vld [vmem:[%s967 + $0x18] sm:$0xff]
        %v972 = vld [vmem:[%s967 + $0x20] sm:$0xff]
        %v973 = vld [vmem:[%s967 + $0x28] sm:$0xff]
        %v974 = vld [vmem:[%s967 + $0x30] sm:$0xff]
        %v975 = vld [vmem:[%s967 + $0x38] sm:$0xff]
        %v976 = vld [vmem:[%s967 + $0x40] sm:$0xff]
        %v977 = vld [vmem:[%s967 + $0x48] sm:$0xff]
        %v978 = vld [vmem:[%s967 + $0x50] sm:$0xff]
        %v979 = vld [vmem:[%s967 + $0x58] sm:$0xff]
        %v980 = vld [vmem:[%s967 + $0x60] sm:$0xff]
        %v981 = vld [vmem:[%s967 + $0x68] sm:$0xff]
        %v982 = vld [vmem:[%s967 + $0x70] sm:$0xff]
        %v983 = vld [vmem:[%s967 + $0x78] sm:$0xff]
        %v984 = vld [vmem:[%s967 + $0x80] sm:$0xff]
        %v985 = vld [vmem:[%s967 + $0x88] sm:$0xff]
        %v986 = vld [vmem:[%s967 + $0x90] sm:$0xff]
        %v987 = vld [vmem:[%s967 + $0x98] sm:$0xff]
        %v988 = vld [vmem:[%s967 + $0xa0] sm:$0xff]
        %v989 = vld [vmem:[%s967 + $0xa8] sm:$0xff]
        %v990 = vld [vmem:[%s967 + $0xb0] sm:$0xff]
        %v991 = vld [vmem:[%s967 + $0xb8] sm:$0xff]
        %v992 = vld [vmem:[%s967 + $0xc0] sm:$0xff]
        %v993 = vld [vmem:[%s967 + $0xc8] sm:$0xff]
        %v994 = vld [vmem:[%s967 + $0xd0] sm:$0xff]
        %v995 = vld [vmem:[%s967 + $0xd8] sm:$0xff]
        %v996 = vld [vmem:[%s967 + $0xe0] sm:$0xff]
        %v997 = vld [vmem:[%s967 + $0xe8] sm:$0xff]
        %v998 = vld [vmem:[%s967 + $0xf0] sm:$0xff]
        %v999 = vld [vmem:[%s967 + $0xf8] sm:$0xff]
        %v1000 = vld [vmem:[#allocation4] sm:$0x1]
        %v1001 = vlaneseq
        %v1002 = vshrl.u32 %v1001, 7
        %v1003 = vsub.s32 0, %v1002
        %v1004 = vrot.slane %v1000, %v1003
        %v1005 = vmul.f32 %v968, %v1004
        %v1006 = vmul.f32 %v969, %v1004
        %v1007 = vmul.f32 %v970, %v1004
        %v1008 = vmul.f32 %v971, %v1004
        %v1009 = vmul.f32 %v972, %v1004
        %v1010 = vmul.f32 %v973, %v1004
        %v1011 = vmul.f32 %v974, %v1004
        %v1012 = vmul.f32 %v975, %v1004
        %v1013 = vmul.f32 %v976, %v1004
        %v1014 = vmul.f32 %v977, %v1004
        %v1015 = vmul.f32 %v978, %v1004
        %v1016 = vmul.f32 %v979, %v1004
        %v1017 = vmul.f32 %v980, %v1004
        %v1018 = vmul.f32 %v981, %v1004
        %v1019 = vmul.f32 %v982, %v1004
        %v1020 = vmul.f32 %v983, %v1004
        %v1021 = vmul.f32 %v984, %v1004
        %v1022 = vmul.f32 %v985, %v1004
        %v1023 = vmul.f32 %v986, %v1004
        %v1024 = vmul.f32 %v987, %v1004
        %v1025 = vmul.f32 %v988, %v1004
        %v1026 = vmul.f32 %v989, %v1004
        %v1027 = vmul.f32 %v990, %v1004
        %v1028 = vmul.f32 %v991, %v1004
        %v1029 = vmul.f32 %v992, %v1004
        %v1030 = vmul.f32 %v993, %v1004
        %v1031 = vmul.f32 %v994, %v1004
        %v1032 = vmul.f32 %v995, %v1004
        %v1033 = vmul.f32 %v996, %v1004
        %v1034 = vmul.f32 %v997, %v1004
        %v1035 = vmul.f32 %v998, %v1004
        %v1036 = vmul.f32 %v999, %v1004
        %v1037 = vld [vmem:[#allocation4 + $0x1] sm:$0x1]
        %v1038 = vlaneseq
        %v1039 = vshrl.u32 %v1038, 7
        %v1040 = vsub.s32 0, %v1039
        %v1041 = vrot.slane %v1037, %v1040
        %v1042 = vadd.f32 %v1005, %v1041
        %v1043 = vadd.f32 %v1006, %v1041
        %v1044 = vadd.f32 %v1007, %v1041
        %v1045 = vadd.f32 %v1008, %v1041
        %v1046 = vadd.f32 %v1009, %v1041
        %v1047 = vadd.f32 %v1010, %v1041
        %v1048 = vadd.f32 %v1011, %v1041
        %v1049 = vadd.f32 %v1012, %v1041
        %v1050 = vadd.f32 %v1013, %v1041
        %v1051 = vadd.f32 %v1014, %v1041
        %v1052 = vadd.f32 %v1015, %v1041
        %v1053 = vadd.f32 %v1016, %v1041
        %v1054 = vadd.f32 %v1017, %v1041
        %v1055 = vadd.f32 %v1018, %v1041
        %v1056 = vadd.f32 %v1019, %v1041
        %v1057 = vadd.f32 %v1020, %v1041
        %v1058 = vadd.f32 %v1021, %v1041
        %v1059 = vadd.f32 %v1022, %v1041
        %v1060 = vadd.f32 %v1023, %v1041
        %v1061 = vadd.f32 %v1024, %v1041
        %v1062 = vadd.f32 %v1025, %v1041
        %v1063 = vadd.f32 %v1026, %v1041
        %v1064 = vadd.f32 %v1027, %v1041
        %v1065 = vadd.f32 %v1028, %v1041
        %v1066 = vadd.f32 %v1029, %v1041
        %v1067 = vadd.f32 %v1030, %v1041
        %v1068 = vadd.f32 %v1031, %v1041
        %v1069 = vadd.f32 %v1032, %v1041
        %v1070 = vadd.f32 %v1033, %v1041
        %v1071 = vadd.f32 %v1034, %v1041
        %v1072 = vadd.f32 %v1035, %v1041
        %v1073 = vadd.f32 %v1036, %v1041
        %vm1074 = vcmp.ge.f32.partialorder %v1042, 0.0
        %vm1075 = vcmp.ge.f32.partialorder %v1043, 0.0
        %vm1076 = vcmp.ge.f32.partialorder %v1044, 0.0
        %vm1077 = vcmp.ge.f32.partialorder %v1045, 0.0
        %vm1078 = vcmp.ge.f32.partialorder %v1046, 0.0
        %vm1079 = vcmp.ge.f32.partialorder %v1047, 0.0
        %vm1080 = vcmp.ge.f32.partialorder %v1048, 0.0
        %vm1081 = vcmp.ge.f32.partialorder %v1049, 0.0
        %vm1082 = vcmp.ge.f32.partialorder %v1050, 0.0
        %vm1083 = vcmp.ge.f32.partialorder %v1051, 0.0
        %vm1084 = vcmp.ge.f32.partialorder %v1052, 0.0
        %vm1085 = vcmp.ge.f32.partialorder %v1053, 0.0
        %vm1086 = vcmp.ge.f32.partialorder %v1054, 0.0
        %vm1087 = vcmp.ge.f32.partialorder %v1055, 0.0
        %vm1088 = vcmp.ge.f32.partialorder %v1056, 0.0
        %vm1089 = vcmp.ge.f32.partialorder %v1057, 0.0
        %vm1090 = vcmp.ge.f32.partialorder %v1058, 0.0
        %vm1091 = vcmp.ge.f32.partialorder %v1059, 0.0
        %vm1092 = vcmp.ge.f32.partialorder %v1060, 0.0
        %vm1093 = vcmp.ge.f32.partialorder %v1061, 0.0
        %vm1094 = vcmp.ge.f32.partialorder %v1062, 0.0
        %vm1095 = vcmp.ge.f32.partialorder %v1063, 0.0
        %vm1096 = vcmp.ge.f32.partialorder %v1064, 0.0
        %vm1097 = vcmp.ge.f32.partialorder %v1065, 0.0
        %vm1098 = vcmp.ge.f32.partialorder %v1066, 0.0
        %vm1099 = vcmp.ge.f32.partialorder %v1067, 0.0
        %vm1100 = vcmp.ge.f32.partialorder %v1068, 0.0
        %vm1101 = vcmp.ge.f32.partialorder %v1069, 0.0
        %vm1102 = vcmp.ge.f32.partialorder %v1070, 0.0
        %vm1103 = vcmp.ge.f32.partialorder %v1071, 0.0
        %vm1104 = vcmp.ge.f32.partialorder %v1072, 0.0
        %vm1105 = vcmp.ge.f32.partialorder %v1073, 0.0
        %v1106 = vmul.f32 %v1042, 0.2
        %v1107 = vmul.f32 %v1043, 0.2
        %v1108 = vmul.f32 %v1044, 0.2
        %v1109 = vmul.f32 %v1045, 0.2
        %v1110 = vmul.f32 %v1046, 0.2
        %v1111 = vmul.f32 %v1047, 0.2
        %v1112 = vmul.f32 %v1048, 0.2
        %v1113 = vmul.f32 %v1049, 0.2
        %v1114 = vmul.f32 %v1050, 0.2
        %v1115 = vmul.f32 %v1051, 0.2
        %v1116 = vmul.f32 %v1052, 0.2
        %v1117 = vmul.f32 %v1053, 0.2
        %v1118 = vmul.f32 %v1054, 0.2
        %v1119 = vmul.f32 %v1055, 0.2
        %v1120 = vmul.f32 %v1056, 0.2
        %v1121 = vmul.f32 %v1057, 0.2
        %v1122 = vmul.f32 %v1058, 0.2
        %v1123 = vmul.f32 %v1059, 0.2
        %v1124 = vmul.f32 %v1060, 0.2
        %v1125 = vmul.f32 %v1061, 0.2
        %v1126 = vmul.f32 %v1062, 0.2
        %v1127 = vmul.f32 %v1063, 0.2
        %v1128 = vmul.f32 %v1064, 0.2
        %v1129 = vmul.f32 %v1065, 0.2
        %v1130 = vmul.f32 %v1066, 0.2
        %v1131 = vmul.f32 %v1067, 0.2
        %v1132 = vmul.f32 %v1068, 0.2
        %v1133 = vmul.f32 %v1069, 0.2
        %v1134 = vmul.f32 %v1070, 0.2
        %v1135 = vmul.f32 %v1071, 0.2
        %v1136 = vmul.f32 %v1072, 0.2
        %v1137 = vmul.f32 %v1073, 0.2
        %v1138 = vsel %vm1074, %v1042, %v1106
        %v1139 = vsel %vm1075, %v1043, %v1107
        %v1140 = vsel %vm1076, %v1044, %v1108
        %v1141 = vsel %vm1077, %v1045, %v1109
        %v1142 = vsel %vm1078, %v1046, %v1110
        %v1143 = vsel %vm1079, %v1047, %v1111
        %v1144 = vsel %vm1080, %v1048, %v1112
        %v1145 = vsel %vm1081, %v1049, %v1113
        %v1146 = vsel %vm1082, %v1050, %v1114
        %v1147 = vsel %vm1083, %v1051, %v1115
        %v1148 = vsel %vm1084, %v1052, %v1116
        %v1149 = vsel %vm1085, %v1053, %v1117
        %v1150 = vsel %vm1086, %v1054, %v1118
        %v1151 = vsel %vm1087, %v1055, %v1119
        %v1152 = vsel %vm1088, %v1056, %v1120
        %v1153 = vsel %vm1089, %v1057, %v1121
        %v1154 = vsel %vm1090, %v1058, %v1122
        %v1155 = vsel %vm1091, %v1059, %v1123
        %v1156 = vsel %vm1092, %v1060, %v1124
        %v1157 = vsel %vm1093, %v1061, %v1125
        %v1158 = vsel %vm1094, %v1062, %v1126
        %v1159 = vsel %vm1095, %v1063, %v1127
        %v1160 = vsel %vm1096, %v1064, %v1128
        %v1161 = vsel %vm1097, %v1065, %v1129
        %v1162 = vsel %vm1098, %v1066, %v1130
        %v1163 = vsel %vm1099, %v1067, %v1131
        %v1164 = vsel %vm1100, %v1068, %v1132
        %v1165 = vsel %vm1101, %v1069, %v1133
        %v1166 = vsel %vm1102, %v1070, %v1134
        %v1167 = vsel %vm1103, %v1071, %v1135
        %v1168 = vsel %vm1104, %v1072, %v1136
        %v1169 = vsel %vm1105, %v1073, %v1137
        %v1170 = vpack.c.bf16 %v1139, %v1138
        %v1171 = vpack.c.bf16 %v1141, %v1140
        %v1172 = vpack.c.bf16 %v1143, %v1142
        %v1173 = vpack.c.bf16 %v1145, %v1144
        %v1174 = vpack.c.bf16 %v1147, %v1146
        %v1175 = vpack.c.bf16 %v1149, %v1148
        %v1176 = vpack.c.bf16 %v1151, %v1150
        %v1177 = vpack.c.bf16 %v1153, %v1152
        %v1178 = vpack.c.bf16 %v1155, %v1154
        %v1179 = vpack.c.bf16 %v1157, %v1156
        %v1180 = vpack.c.bf16 %v1159, %v1158
        %v1181 = vpack.c.bf16 %v1161, %v1160
        %v1182 = vpack.c.bf16 %v1163, %v1162
        %v1183 = vpack.c.bf16 %v1165, %v1164
        %v1184 = vpack.c.bf16 %v1167, %v1166
        %v1185 = vpack.c.bf16 %v1169, %v1168
        %v1202 = vunpack.c.l.b16 %v1170
        %v1203 = vunpack.c.h.b16 %v1170
        %v1204 = vunpack.c.l.b16 %v1171
        %v1205 = vunpack.c.h.b16 %v1171
        %v1206 = vunpack.c.l.b16 %v1172
        %v1207 = vunpack.c.h.b16 %v1172
        %v1208 = vunpack.c.l.b16 %v1173
        %v1209 = vunpack.c.h.b16 %v1173
        %v1210 = vunpack.c.l.b16 %v1174
        %v1211 = vunpack.c.h.b16 %v1174
        %v1212 = vunpack.c.l.b16 %v1175
        %v1213 = vunpack.c.h.b16 %v1175
        %v1214 = vunpack.c.l.b16 %v1176
        %v1215 = vunpack.c.h.b16 %v1176
        %v1216 = vunpack.c.l.b16 %v1177
        %v1217 = vunpack.c.h.b16 %v1177
        %v1218 = vunpack.c.l.b16 %v1178
        %v1219 = vunpack.c.h.b16 %v1178
        %v1220 = vunpack.c.l.b16 %v1179
        %v1221 = vunpack.c.h.b16 %v1179
        %v1222 = vunpack.c.l.b16 %v1180
        %v1223 = vunpack.c.h.b16 %v1180
        %v1224 = vunpack.c.l.b16 %v1181
        %v1225 = vunpack.c.h.b16 %v1181
        %v1226 = vunpack.c.l.b16 %v1182
        %v1227 = vunpack.c.h.b16 %v1182
        %v1228 = vunpack.c.l.b16 %v1183
        %v1229 = vunpack.c.h.b16 %v1183
        %v1230 = vunpack.c.l.b16 %v1184
        %v1231 = vunpack.c.h.b16 %v1184
        %v1232 = vunpack.c.l.b16 %v1185
        %v1233 = vunpack.c.h.b16 %v1185
        %v1234 = vpack.c.b16 %v1202, %v1202
        %v1235 = vpack.c.b16 %v1203, %v1203
        %v1236 = vpack.c.b16 %v1204, %v1204
        %v1237 = vpack.c.b16 %v1205, %v1205
        %v1238 = vpack.c.b16 %v1206, %v1206
        %v1239 = vpack.c.b16 %v1207, %v1207
        %v1240 = vpack.c.b16 %v1208, %v1208
        %v1241 = vpack.c.b16 %v1209, %v1209
        %v1242 = vpack.c.b16 %v1210, %v1210
        %v1243 = vpack.c.b16 %v1211, %v1211
        %v1244 = vpack.c.b16 %v1212, %v1212
        %v1245 = vpack.c.b16 %v1213, %v1213
        %v1246 = vpack.c.b16 %v1214, %v1214
        %v1247 = vpack.c.b16 %v1215, %v1215
        %v1248 = vpack.c.b16 %v1216, %v1216
        %v1249 = vpack.c.b16 %v1217, %v1217
        %v1250 = vpack.c.b16 %v1218, %v1218
        %v1251 = vpack.c.b16 %v1219, %v1219
        %v1252 = vpack.c.b16 %v1220, %v1220
        %v1253 = vpack.c.b16 %v1221, %v1221
        %v1254 = vpack.c.b16 %v1222, %v1222
        %v1255 = vpack.c.b16 %v1223, %v1223
        %v1256 = vpack.c.b16 %v1224, %v1224
        %v1257 = vpack.c.b16 %v1225, %v1225
        %v1258 = vpack.c.b16 %v1226, %v1226
        %v1259 = vpack.c.b16 %v1227, %v1227
        %v1260 = vpack.c.b16 %v1228, %v1228
        %v1261 = vpack.c.b16 %v1229, %v1229
        %v1262 = vpack.c.b16 %v1230, %v1230
        %v1263 = vpack.c.b16 %v1231, %v1231
        %v1264 = vpack.c.b16 %v1232, %v1232
        %v1265 = vpack.c.b16 %v1233, %v1233
        %1298 = vst [vmem:[%s236] sm:$0xf] %v1234
        %1299 = vst [vmem:[%s236 + $0x4] sm:$0xf] %v1235
        %1300 = vst [vmem:[%s236 + $0x8] sm:$0xf] %v1236
        %1301 = vst [vmem:[%s236 + $0xc] sm:$0xf] %v1237
        %1302 = vst [vmem:[%s236 + $0x10] sm:$0xf] %v1238
        %1303 = vst [vmem:[%s236 + $0x14] sm:$0xf] %v1239
        %1304 = vst [vmem:[%s236 + $0x18] sm:$0xf] %v1240
        %1305 = vst [vmem:[%s236 + $0x1c] sm:$0xf] %v1241
        %1306 = vst [vmem:[%s236 + $0x20] sm:$0xf] %v1242
        %1307 = vst [vmem:[%s236 + $0x24] sm:$0xf] %v1243
        %1308 = vst [vmem:[%s236 + $0x28] sm:$0xf] %v1244
        %1309 = vst [vmem:[%s236 + $0x2c] sm:$0xf] %v1245
        %1310 = vst [vmem:[%s236 + $0x30] sm:$0xf] %v1246
        %1311 = vst [vmem:[%s236 + $0x34] sm:$0xf] %v1247
        %1312 = vst [vmem:[%s236 + $0x38] sm:$0xf] %v1248
        %1313 = vst [vmem:[%s236 + $0x3c] sm:$0xf] %v1249
        %1314 = vst [vmem:[%s236 + $0x40] sm:$0xf] %v1250
        %1315 = vst [vmem:[%s236 + $0x44] sm:$0xf] %v1251
        %1316 = vst [vmem:[%s236 + $0x48] sm:$0xf] %v1252
        %1317 = vst [vmem:[%s236 + $0x4c] sm:$0xf] %v1253
        %1318 = vst [vmem:[%s236 + $0x50] sm:$0xf] %v1254
        %1319 = vst [vmem:[%s236 + $0x54] sm:$0xf] %v1255
        %1320 = vst [vmem:[%s236 + $0x58] sm:$0xf] %v1256
        %1321 = vst [vmem:[%s236 + $0x5c] sm:$0xf] %v1257
        %1322 = vst [vmem:[%s236 + $0x60] sm:$0xf] %v1258
        %1323 = vst [vmem:[%s236 + $0x64] sm:$0xf] %v1259
        %1324 = vst [vmem:[%s236 + $0x68] sm:$0xf] %v1260
        %1325 = vst [vmem:[%s236 + $0x6c] sm:$0xf] %v1261
        %1326 = vst [vmem:[%s236 + $0x70] sm:$0xf] %v1262
        %1327 = vst [vmem:[%s236 + $0x74] sm:$0xf] %v1263
        %1328 = vst [vmem:[%s236 + $0x78] sm:$0xf] %v1264
        %1329 = vst [vmem:[%s236 + $0x7c] sm:$0xf] %v1265
      $region48: #{patch_discriminator.6} parent=35 // pred_fallthru
        _
      %s1330 = smul.u32 %s20, %s19
      %s1331 = smul.u32 32, %s1330
      %p1332 = scmp.lt.s32.totalorder %s1331, 63
      %s1333 = scalar_select %p1332, %s1331, 63
      %s1334 = smul.addr %s1333, 4
      %s1335 = scalar_lea.vmem %s4, %s1334
      // Predicated region
      $region53: #{patch_discriminator.6} parent=35 // pred_check
        %p1336 = pneg %p142
      $region54: #{patch_discriminator.6} parent=35 // pred_check_branch
        %1338 = sbr.rel (%p1336) target = $region56
      $region55: #{patch_discriminator.6} parent=35 // pred_region
        %s1339 = smul.u32 %s20, %s19
        %s1340 = smul.u32 32, %s1339
      $region56: #{patch_discriminator.6} parent=35 // pred_fallthru
        _
    $region36: #{patch_discriminator.6} parent=5 // pred_fallthru
      _
    %p1341 = scmp.le.s32.totalorder 2, %s10
    // Predicated region
    $region57: #{patch_discriminator.6} parent=5 // pred_check
      %p1342 = pneg %p1341
    $region58: #{patch_discriminator.6} parent=5 // pred_check_branch
      %1344 = sbr.rel (%p1342) target = $region60
    $region59: #{patch_discriminator.6} parent=5 // pred_region
      %s1345 = ssub.s32 %s10, 2
      // Predicated region
      $region61: #{patch_discriminator.6} parent=59 // pred_check
        %p1346 = pneg %p148
      $region62: #{patch_discriminator.6} parent=59 // pred_check_branch
        %1348 = sbr.rel (%p1346) target = $region64
      $region63: #{patch_discriminator.6} parent=59 // pred_region
        %s1349 = smul.u32 %s22, %s21
        %s1350 = smul.u32 32, %s1349
        %p1351 = scmp.lt.s32.totalorder %s1350, 63
        %s1352 = scalar_select %p1351, %s1350, 63
        %s1353 = smul.addr %s1352, 4
        %s1354 = scalar_lea.vmem %s4, %s1353
      $region64: #{patch_discriminator.6} parent=59 // pred_fallthru
        _
    $region60: #{patch_discriminator.6} parent=5 // pred_fallthru
      _
  $region6: #{patch_discriminator.6} parent=0 // loop_footer
    %s14 = sadd.s32 1, %s10
  $region7: #{patch_discriminator.6} parent=0 // loop_footer_branch
    %9 = sbr.rel target = $region3
  $region8: #{patch_discriminator.6} parent=0 // loop_exit
    _

// kernel: patch_discriminator.7
$region0: #{patch_discriminator.7}
  #allocation0 [shape = 'u32[]', space=smem, size = 0x4, offset = 0x4, fixed_abs, tag = 'smem constant byte address 0x4 - core index']
  #allocation1 [shape = 'u32[144,128]{1,0:T(1,128)}', space=vmem, size = 0x12000, scoped, tag = 'internal scratch']
  #allocation2 [shape = 'f32[1,128,128]{2,1,0:T(8,128)}', space=vmem, size = 0x10000, scoped, tag = 'scratch operand']
  #allocation3 [shape = 'f32[2,128]{1,0:T(2,128)}', space=vmem, size = 0x400, scoped, tag = 'scratch operand']
  #allocation4 [shape = 'f32[2,128]{1,0:T(2,128)}', space=vmem, size = 0x400, scoped, tag = 'scratch operand']
  %s0 = inlined_call_operand.vmem [shape: bf16[128,256], index: 0, kind: input, shape index: {}]
  %s1 = inlined_call_operand.vmem [shape: bf16[256,128], index: 1, kind: input, shape index: {}]
  %s2 = inlined_call_operand.vmem [shape: f32[1,128], index: 2, kind: input, shape index: {}]
  %s3 = inlined_call_operand.vmem [shape: f32[1,128], index: 3, kind: input, shape index: {}]
  %s4 = inlined_call_operand.vmem [shape: bf16[128,128], index: 4, kind: output, shape index: {}]
  %s5 = sld [smem:[#allocation0]]
  $region65: #{patch_discriminator.7} parent=0
    _
  %s7 = ssub.s32 1, %s5
  %s8 = scalar_select 0, %s7, %s5
  loop: start=0, step=1, limit=4
  $region2: #{patch_discriminator.7} parent=0 // loop_pre_header
    _
  $region3: #{patch_discriminator.7} parent=0 // loop_header
    %s10 = sphi 0, %s14
    %p11 = scmp.ge.s32.totalorder %s10, 4
    %s17 = sphi 0, %s29
    %s18 = sphi 0, %s25
    %s19 = sphi 0, %s17
    %s20 = sphi 0, %s18
    %s21 = sphi 0, %s19
    %s22 = sphi 0, %s20
    %s36 = sphi 0, %s38
    %s39 = sphi 0, %s36
    %s40 = sphi 0, %s39
    %s56 = sphi 0, %s40
    %s60 = sphi 0, %s60
    %s62 = sphi 0, %s60
    %s63 = sphi 0, %s62
    %s77 = sphi 0, %s63
    %s81 = sphi 0, %s81
    %s83 = sphi 0, %s81
    %s84 = sphi 0, %s83
    %s98 = sphi 0, %s84
    %s102 = sphi 0, %s102
    %s104 = sphi 0, %s102
    %s105 = sphi 0, %s104
    %s119 = sphi 0, %s105
    %s127 = sphi 0, %s129
    %s130 = sphi 0, %s127
    %s131 = sphi 0, %s130
    %s147 = sphi 0, %s131
  $region4: #{patch_discriminator.7} parent=0 // loop_header_branch
    %13 = sbr.rel (%p11) target = $region8
  $region5: #{patch_discriminator.7} parent=0 // loop_body
    %s15 = ssub.s32 %s10, 1
    %s16 = ssub.s32 %s10, 2
    %s23 = sadd.s32 1, %s18
    %p24 = scmp.ge.s32.totalorder %s23, 1
    %s25 = scalar_select %p24, 0, %s23
    %s26 = sadd.s32 1, %s17
    %s27 = scalar_select %p24, %s26, %s17
    %p28 = scmp.ge.s32.totalorder %s27, 2
    %s29 = scalar_select %p28, 0, %s27
    %s30 = ssub.s32 1, %s17
    %s31 = smul.u32 %s18, %s30
    %s32 = ssub.s32 1, %s29
    %s33 = smul.u32 %s25, %s32
    %s34 = ssub.s32 %s31, %s33
    %p35 = scmp.eq.s32.totalorder %s34, 0
    %s37 = sadd.s32 %s36, 1
    %s38 = scalar_select %p35, %s36, %s37
    %p41 = pneg %p35
    %p42 = scmp.eq.s32.totalorder %s10, 1
    %p43 = por %p41, %p42
    %p44 = scmp.ne.s32.totalorder %s36, %s39
    %p45 = scmp.eq.s32.totalorder %s10, 0
    %p46 = por %p44, %p45
    %p47 = scmp.ne.s32.totalorder %s36, %s39
    %p48 = scmp.eq.s32.totalorder %s15, 1
    %p49 = por %p47, %p48
    %p50 = scmp.ne.s32.totalorder %s39, %s40
    %p51 = scmp.eq.s32.totalorder %s15, 0
    %p52 = por %p50, %p51
    %p53 = scmp.ne.s32.totalorder %s39, %s40
    %p54 = scmp.eq.s32.totalorder %s16, 1
    %p55 = por %p53, %p54
    %p57 = scmp.ne.s32.totalorder %s40, %s56
    %p58 = scmp.eq.s32.totalorder %s16, 0
    %p59 = por %p57, %p58
    %s61 = sadd.s32 %s60, 1
    %p64 = scmp.eq.s32.totalorder %s10, 1
    %p65 = scmp.ne.s32.totalorder %s60, %s62
    %p66 = scmp.eq.s32.totalorder %s10, 0
    %p67 = por %p65, %p66
    %p68 = scmp.ne.s32.totalorder %s60, %s62
    %p69 = scmp.eq.s32.totalorder %s15, 1
    %p70 = por %p68, %p69
    %p71 = scmp.ne.s32.totalorder %s62, %s63
    %p72 = scmp.eq.s32.totalorder %s15, 0
    %p73 = por %p71, %p72
    %p74 = scmp.ne.s32.totalorder %s62, %s63
    %p75 = scmp.eq.s32.totalorder %s16, 1
    %p76 = por %p74, %p75
    %p78 = scmp.ne.s32.totalorder %s63, %s77
    %p79 = scmp.eq.s32.totalorder %s16, 0
    %p80 = por %p78, %p79
    %s82 = sadd.s32 %s81, 1
    %p85 = scmp.eq.s32.totalorder %s10, 1
    %p86 = scmp.ne.s32.totalorder %s81, %s83
    %p87 = scmp.eq.s32.totalorder %s10, 0
    %p88 = por %p86, %p87
    %p89 = scmp.ne.s32.totalorder %s81, %s83
    %p90 = scmp.eq.s32.totalorder %s15, 1
    %p91 = por %p89, %p90
    %p92 = scmp.ne.s32.totalorder %s83, %s84
    %p93 = scmp.eq.s32.totalorder %s15, 0
    %p94 = por %p92, %p93
    %p95 = scmp.ne.s32.totalorder %s83, %s84
    %p96 = scmp.eq.s32.totalorder %s16, 1
    %p97 = por %p95, %p96
    %p99 = scmp.ne.s32.totalorder %s84, %s98
    %p100 = scmp.eq.s32.totalorder %s16, 0
    %p101 = por %p99, %p100
    %s103 = sadd.s32 %s102, 1
    %p106 = scmp.eq.s32.totalorder %s10, 1
    %p107 = scmp.ne.s32.totalorder %s102, %s104
    %p108 = scmp.eq.s32.totalorder %s10, 0
    %p109 = por %p107, %p108
    %p110 = scmp.ne.s32.totalorder %s102, %s104
    %p111 = scmp.eq.s32.totalorder %s15, 1
    %p112 = por %p110, %p111
    %p113 = scmp.ne.s32.totalorder %s104, %s105
    %p114 = scmp.eq.s32.totalorder %s15, 0
    %p115 = por %p113, %p114
    %p116 = scmp.ne.s32.totalorder %s104, %s105
    %p117 = scmp.eq.s32.totalorder %s16, 1
    %p118 = por %p116, %p117
    %p120 = scmp.ne.s32.totalorder %s105, %s119
    %p121 = scmp.eq.s32.totalorder %s16, 0
    %p122 = por %p120, %p121
    %s123 = smul.u32 %s18, %s17
    %s124 = smul.u32 %s25, %s29
    %s125 = ssub.s32 %s123, %s124
    %p126 = scmp.eq.s32.totalorder %s125, 0
    %s128 = sadd.s32 %s127, 1
    %s129 = scalar_select %p126, %s127, %s128
    %p132 = pneg %p126
    %p133 = scmp.eq.s32.totalorder %s10, 1
    %p134 = por %p132, %p133
    %p135 = scmp.ne.s32.totalorder %s127, %s130
    %p136 = scmp.eq.s32.totalorder %s10, 0
    %p137 = por %p135, %p136
    %p138 = scmp.ne.s32.totalorder %s127, %s130
    %p139 = scmp.eq.s32.totalorder %s15, 1
    %p140 = por %p138, %p139
    %p141 = scmp.ne.s32.totalorder %s130, %s131
    %p142 = scmp.eq.s32.totalorder %s15, 0
    %p143 = por %p141, %p142
    %p144 = scmp.ne.s32.totalorder %s130, %s131
    %p145 = scmp.eq.s32.totalorder %s16, 1
    %p146 = por %p144, %p145
    %p148 = scmp.ne.s32.totalorder %s131, %s147
    %p149 = scmp.eq.s32.totalorder %s16, 0
    %p150 = por %p148, %p149
    %p151 = scmp.le.s32.totalorder 1, %s10
    %p152 = scmp.lt.s32.totalorder %s10, 3
    %p153 = pnand %p151, %p152
    %p154 = pneg %p153
    // Predicated region
    $region9: #{patch_discriminator.7} parent=5 // pred_check
      _
    $region10: #{patch_discriminator.7} parent=5 // pred_check_branch
      %156 = sbr.rel (%p153) target = $region12
    $region11: #{patch_discriminator.7} parent=5 // pred_region
      %s157 = ssub.s32 %s10, 1
      // Predicated region
      $region13: #{patch_discriminator.7} parent=11 // pred_check
        %p158 = pneg %p73
      $region14: #{patch_discriminator.7} parent=11 // pred_check_branch
        %160 = sbr.rel (%p158) target = $region16
      $region15: #{patch_discriminator.7} parent=11 // pred_region
        _
      $region16: #{patch_discriminator.7} parent=11 // pred_fallthru
        _
      // Predicated region
      $region17: #{patch_discriminator.7} parent=11 // pred_check
        %p161 = pneg %p94
      $region18: #{patch_discriminator.7} parent=11 // pred_check_branch
        %163 = sbr.rel (%p161) target = $region20
      $region19: #{patch_discriminator.7} parent=11 // pred_region
        _
      $region20: #{patch_discriminator.7} parent=11 // pred_fallthru
        _
      // Predicated region
      $region21: #{patch_discriminator.7} parent=11 // pred_check
        %p164 = pneg %p115
      $region22: #{patch_discriminator.7} parent=11 // pred_check_branch
        %166 = sbr.rel (%p164) target = $region24
      $region23: #{patch_discriminator.7} parent=11 // pred_region
        _
      $region24: #{patch_discriminator.7} parent=11 // pred_fallthru
        _
    $region12: #{patch_discriminator.7} parent=5 // pred_fallthru
      _
    %p167 = scmp.lt.s32.totalorder %s10, 2
    // Predicated region
    $region25: #{patch_discriminator.7} parent=5 // pred_check
      %p168 = pneg %p167
    $region26: #{patch_discriminator.7} parent=5 // pred_check_branch
      %170 = sbr.rel (%p168) target = $region28
    $region27: #{patch_discriminator.7} parent=5 // pred_region
      // Predicated region
      $region29: #{patch_discriminator.7} parent=27 // pred_check
        %p171 = pneg %p46
      $region30: #{patch_discriminator.7} parent=27 // pred_check_branch
        %173 = sbr.rel (%p171) target = $region32
      $region31: #{patch_discriminator.7} parent=27 // pred_region
        %s174 = ssub.s32 1, %s17
        %s175 = smul.u32 %s18, %s174
        %s176 = smul.u32 16, %s175
        %p177 = scmp.lt.s32.totalorder %s176, 15
        %s178 = scalar_select %p177, %s176, 15
        %s179 = smul.addr %s178, 2
        %s180 = smul.addr %s179, 4
        %s181 = scalar_lea.vmem %s0, %s180
        %s182 = ssub.s32 1, %s17
        %s183 = smul.u32 %s18, %s182
        %s184 = smul.u32 16, %s183
      $region32: #{patch_discriminator.7} parent=27 // pred_fallthru
        _
    $region28: #{patch_discriminator.7} parent=5 // pred_fallthru
      _
    %p185 = scmp.le.s32.totalorder 1, %s10
    %p186 = scmp.lt.s32.totalorder %s10, 3
    %p187 = pnand %p185, %p186
    %p188 = pneg %p187
    // Predicated region
    $region33: #{patch_discriminator.7} parent=5 // pred_check
      _
    $region34: #{patch_discriminator.7} parent=5 // pred_check_branch
      %190 = sbr.rel (%p187) target = $region36
    $region35: #{patch_discriminator.7} parent=5 // pred_region
      %s191 = ssub.s32 %s10, 1
      %s192 = ssub.s32 1, %s19
      %s193 = smul.u32 %s20, %s192
      %s194 = smul.u32 16, %s193
      %p195 = scmp.lt.s32.totalorder %s194, 15
      %s196 = scalar_select %p195, %s194, 15
      %s197 = smul.addr %s196, 2
      %s198 = smul.addr %s197, 4
      %s199 = scalar_lea.vmem %s0, %s198
      %p200 = pneg %p52
      %p201 = pneg %p49
      %p202 = pneg %p73
      %p203 = pneg %p70
      %p204 = pneg %p94
      %p205 = pneg %p91
      %p206 = pneg %p115
      %p207 = pneg %p112
      %p208 = pneg %p143
      %p209 = pneg %p140
      %s210 = smul.u32 %s20, %s19
      %s211 = smul.u32 16, %s210
      %p212 = scmp.lt.s32.totalorder %s211, 15
      %s213 = scalar_select %p212, %s211, 15
      %s214 = smul.addr %s213, 4
      %s215 = scalar_lea.vmem %s4, %s214
      %s216 = ssub.s32 1, %s19
      %s217 = smul.u32 %s20, %s216
      %s218 = smul.u32 16, %s217
      %p219 = scmp.lt.s32.totalorder %s218, 15
      %s220 = scalar_select %p219, %s218, 15
      %s221 = smul.addr %s220, 2
      %s222 = smul.addr %s221, 4
      %s223 = scalar_lea.vmem %s0, %s222
      %s224 = ssub.s32 1, %s19
      %s225 = smul.u32 %s20, %s224
      %s226 = smul.u32 16, %s225
      %s227 = smul.u32 %s20, %s19
      %s228 = smul.u32 16, %s227
      %p229 = scmp.lt.s32.totalorder %s228, 15
      %s230 = scalar_select %p229, %s228, 15
      %s231 = smul.addr %s230, 4
      %s232 = scalar_lea.vmem %s4, %s231
      %s233 = smul.u32 %s20, %s19
      %s234 = smul.u32 16, %s233
      %p236 = scmp.eq.s32.totalorder %s19, 0
      // Predicated region
      $region37: #{patch_discriminator.7} parent=35 // pred_check
        %p237 = pneg %p236
      $region38: #{patch_discriminator.7} parent=35 // pred_check_branch
        %239 = sbr.rel (%p237) target = $region40
      $region39: #{patch_discriminator.7} parent=35 // pred_region
        %p240 = scmp.eq.s32.totalorder %s20, 0
        // Predicated region
        $region41: #{patch_discriminator.7} parent=39 // pred_check
          %p241 = pneg %p240
        $region42: #{patch_discriminator.7} parent=39 // pred_check_branch
          %243 = sbr.rel (%p241) target = $region44
        $region43: #{patch_discriminator.7} parent=39 // pred_region
          %244 = vst [vmem:[#allocation3] sm:$0x3] 0.0
        $region44: #{patch_discriminator.7} parent=39 // pred_fallthru
          _
        %v245 = vld [vmem:[%s223] sm:$0xff]
        %v246 = vld [vmem:[%s223 + $0x8] sm:$0xff]
        %v247 = vld [vmem:[%s223 + $0x10] sm:$0xff]
        %v248 = vld [vmem:[%s223 + $0x18] sm:$0xff]
        %v249 = vld [vmem:[%s223 + $0x20] sm:$0xff]
        %v250 = vld [vmem:[%s223 + $0x28] sm:$0xff]
        %v251 = vld [vmem:[%s223 + $0x30] sm:$0xff]
        %v252 = vld [vmem:[%s223 + $0x38] sm:$0xff]
        %v253 = vld [vmem:[%s223 + $0x40] sm:$0xff]
        %v254 = vld [vmem:[%s223 + $0x48] sm:$0xff]
        %v255 = vld [vmem:[%s223 + $0x50] sm:$0xff]
        %v256 = vld [vmem:[%s223 + $0x58] sm:$0xff]
        %v257 = vld [vmem:[%s223 + $0x60] sm:$0xff]
        %v258 = vld [vmem:[%s223 + $0x68] sm:$0xff]
        %v259 = vld [vmem:[%s223 + $0x70] sm:$0xff]
        %v260 = vld [vmem:[%s223 + $0x78] sm:$0xff]
        %v261 = vld [vmem:[%s1] sm:$0xf]
        %v262 = vld [vmem:[%s1 + $0x4] sm:$0xf]
        %v263 = vld [vmem:[%s1 + $0x8] sm:$0xf]
        %v264 = vld [vmem:[%s1 + $0xc] sm:$0xf]
        %v265 = vld [vmem:[%s1 + $0x10] sm:$0xf]
        %v266 = vld [vmem:[%s1 + $0x14] sm:$0xf]
        %v267 = vld [vmem:[%s1 + $0x18] sm:$0xf]
        %v268 = vld [vmem:[%s1 + $0x1c] sm:$0xf]
        %v269 = vld [vmem:[%s1 + $0x20] sm:$0xf]
        %v270 = vld [vmem:[%s1 + $0x24] sm:$0xf]
        %v271 = vld [vmem:[%s1 + $0x28] sm:$0xf]
        %v272 = vld [vmem:[%s1 + $0x2c] sm:$0xf]
        %v273 = vld [vmem:[%s1 + $0x30] sm:$0xf]
        %v274 = vld [vmem:[%s1 + $0x34] sm:$0xf]
        %v275 = vld [vmem:[%s1 + $0x38] sm:$0xf]
        %v276 = vld [vmem:[%s1 + $0x3c] sm:$0xf]
        %v277 = vld [vmem:[%s1 + $0x40] sm:$0xf]
        %v278 = vld [vmem:[%s1 + $0x44] sm:$0xf]
        %v279 = vld [vmem:[%s1 + $0x48] sm:$0xf]
        %v280 = vld [vmem:[%s1 + $0x4c] sm:$0xf]
        %v281 = vld [vmem:[%s1 + $0x50] sm:$0xf]
        %v282 = vld [vmem:[%s1 + $0x54] sm:$0xf]
        %v283 = vld [vmem:[%s1 + $0x58] sm:$0xf]
        %v284 = vld [vmem:[%s1 + $0x5c] sm:$0xf]
        %v285 = vld [vmem:[%s1 + $0x60] sm:$0xf]
        %v286 = vld [vmem:[%s1 + $0x64] sm:$0xf]
        %v287 = vld [vmem:[%s1 + $0x68] sm:$0xf]
        %v288 = vld [vmem:[%s1 + $0x6c] sm:$0xf]
        %v289 = vld [vmem:[%s1 + $0x70] sm:$0xf]
        %v290 = vld [vmem:[%s1 + $0x74] sm:$0xf]
        %v291 = vld [vmem:[%s1 + $0x78] sm:$0xf]
        %v292 = vld [vmem:[%s1 + $0x7c] sm:$0xf]
        %v309 = vunpack.c.l.b16 %v245
        %v310 = vunpack.c.h.b16 %v245
        %v311 = vunpack.c.l.b16 %v246
        %v312 = vunpack.c.h.b16 %v246
        %v313 = vunpack.c.l.b16 %v247
        %v314 = vunpack.c.h.b16 %v247
        %v315 = vunpack.c.l.b16 %v248
        %v316 = vunpack.c.h.b16 %v248
        %v317 = vunpack.c.l.b16 %v249
        %v318 = vunpack.c.h.b16 %v249
        %v319 = vunpack.c.l.b16 %v250
        %v320 = vunpack.c.h.b16 %v250
        %v321 = vunpack.c.l.b16 %v251
        %v322 = vunpack.c.h.b16 %v251
        %v323 = vunpack.c.l.b16 %v252
        %v324 = vunpack.c.h.b16 %v252
        %v325 = vunpack.c.l.b16 %v253
        %v326 = vunpack.c.h.b16 %v253
        %v327 = vunpack.c.l.b16 %v254
        %v328 = vunpack.c.h.b16 %v254
        %v329 = vunpack.c.l.b16 %v255
        %v330 = vunpack.c.h.b16 %v255
        %v331 = vunpack.c.l.b16 %v256
        %v332 = vunpack.c.h.b16 %v256
        %v333 = vunpack.c.l.b16 %v257
        %v334 = vunpack.c.h.b16 %v257
        %v335 = vunpack.c.l.b16 %v258
        %v336 = vunpack.c.h.b16 %v258
        %v337 = vunpack.c.l.b16 %v259
        %v338 = vunpack.c.h.b16 %v259
        %v339 = vunpack.c.l.b16 %v260
        %v340 = vunpack.c.h.b16 %v260
        %v341 = vpack.c.b16 %v311, %v309
        %v342 = vpack.c.b16 %v312, %v310
        %v343 = vpack.c.b16 %v315, %v313
        %v344 = vpack.c.b16 %v316, %v314
        %v345 = vpack.c.b16 %v319, %v317
        %v346 = vpack.c.b16 %v320, %v318
        %v347 = vpack.c.b16 %v323, %v321
        %v348 = vpack.c.b16 %v324, %v322
        %v349 = vpack.c.b16 %v327, %v325
        %v350 = vpack.c.b16 %v328, %v326
        %v351 = vpack.c.b16 %v331, %v329
        %v352 = vpack.c.b16 %v332, %v330
        %v353 = vpack.c.b16 %v335, %v333
        %v354 = vpack.c.b16 %v336, %v334
        %v355 = vpack.c.b16 %v339, %v337
        %v356 = vpack.c.b16 %v340, %v338
        %v405 = vunpack.c.l.b16 %v261
        %v406 = vunpack.c.l.b16 %v262
        %v407 = vunpack.c.l.b16 %v263
        %v408 = vunpack.c.l.b16 %v264
        %v409 = vunpack.c.l.b16 %v265
        %v410 = vunpack.c.l.b16 %v266
        %v411 = vunpack.c.l.b16 %v267
        %v412 = vunpack.c.l.b16 %v268
        %v413 = vunpack.c.l.b16 %v269
        %v414 = vunpack.c.l.b16 %v270
        %v415 = vunpack.c.l.b16 %v271
        %v416 = vunpack.c.l.b16 %v272
        %v417 = vunpack.c.l.b16 %v273
        %v418 = vunpack.c.l.b16 %v274
        %v419 = vunpack.c.l.b16 %v275
        %v420 = vunpack.c.l.b16 %v276
        %v421 = vunpack.c.l.b16 %v277
        %v422 = vunpack.c.l.b16 %v278
        %v423 = vunpack.c.l.b16 %v279
        %v424 = vunpack.c.l.b16 %v280
        %v425 = vunpack.c.l.b16 %v281
        %v426 = vunpack.c.l.b16 %v282
        %v427 = vunpack.c.l.b16 %v283
        %v428 = vunpack.c.l.b16 %v284
        %v429 = vunpack.c.l.b16 %v285
        %v430 = vunpack.c.l.b16 %v286
        %v431 = vunpack.c.l.b16 %v287
        %v432 = vunpack.c.l.b16 %v288
        %v433 = vunpack.c.l.b16 %v289
        %v434 = vunpack.c.l.b16 %v290
        %v435 = vunpack.c.l.b16 %v291
        %v436 = vunpack.c.l.b16 %v292
        %v437 = vpack.c.b16 %v406, %v405
        %v438 = vpack.c.b16 %v408, %v407
        %v439 = vpack.c.b16 %v410, %v409
        %v440 = vpack.c.b16 %v412, %v411
        %v441 = vpack.c.b16 %v414, %v413
        %v442 = vpack.c.b16 %v416, %v415
        %v443 = vpack.c.b16 %v418, %v417
        %v444 = vpack.c.b16 %v420, %v419
        %v445 = vpack.c.b16 %v422, %v421
        %v446 = vpack.c.b16 %v424, %v423
        %v447 = vpack.c.b16 %v426, %v425
        %v448 = vpack.c.b16 %v428, %v427
        %v449 = vpack.c.b16 %v430, %v429
        %v450 = vpack.c.b16 %v432, %v431
        %v451 = vpack.c.b16 %v434, %v433
        %v452 = vpack.c.b16 %v436, %v435
        %469 = vmatprep.subr.bf16.mxu0 0
        %470 = vmatpush1.bf16.msra.mxu0 %v437
        %471 = vmatprep.subr.bf16.mxu0 0
        %472 = vmatpush1.bf16.msra.mxu0 %v438
        %473 = vmatprep.subr.bf16.mxu0 0
        %474 = vmatpush1.bf16.msra.mxu0 %v439
        %475 = vmatprep.subr.bf16.mxu0 0
        %476 = vmatpush1.bf16.msra.mxu0 %v440
        %477 = vmatprep.subr.bf16.mxu0 0
        %478 = vmatpush1.bf16.msra.mxu0 %v441
        %479 = vmatprep.subr.bf16.mxu0 0
        %480 = vmatpush1.bf16.msra.mxu0 %v442
        %481 = vmatprep.subr.bf16.mxu0 0
        %482 = vmatpush1.bf16.msra.mxu0 %v443
        %483 = vmatprep.subr.bf16.mxu0 0
        %484 = vmatpush1.bf16.msra.mxu0 %v444
        %485 = vmatprep.subr.bf16.mxu0 0
        %486 = vmatpush1.bf16.msra.mxu0 %v445
        %487 = vmatprep.subr.bf16.mxu0 0
        %488 = vmatpush1.bf16.msra.mxu0 %v446
        %489 = vmatprep.subr.bf16.mxu0 0
        %490 = vmatpush1.bf16.msra.mxu0 %v447
        %491 = vmatprep.subr.bf16.mxu0 0
        %492 = vmatpush1.bf16.msra.mxu0 %v448
        %493 = vmatprep.subr.bf16.mxu0 0
        %494 = vmatpush1.bf16.msra.mxu0 %v449
        %495 = vmatprep.subr.bf16.mxu0 0
        %496 = vmatpush1.bf16.msra.mxu0 %v450
        %497 = vmatprep.subr.bf16.mxu0 0
        %498 = vmatpush1.bf16.msra.mxu0 %v451
        %499 = vmatprep.subr.bf16.mxu0 0
        %500 = vmatpush1.bf16.msra.mxu0 %v452
        %501 = vmatprep.mubr.bf16.mxu0 %v342
        %502 = vmatmul.mubr.bf16.gmra.mrb[0].mxu0 %v341
        %v503 = vpop.f32.mrb[0].mxu0
        %v504 = vadd.f32 0.0, %v503
        %v505 = vpop.f32.mrb[0].mxu0
        %v506 = vpop.f32.mrb[0].mxu0
        %v507 = vadd.f32 0.0, %v506
        %v508 = vpop.f32.mrb[0].mxu0
        %509 = vmatprep.mubr.bf16.mxu0 %v344
        %510 = vmatmul.mubr.bf16.gmra.mrb[0].mxu0 %v343
        %v511 = vpop.f32.mrb[0].mxu0
        %v512 = vadd.f32 0.0, %v511
        %v513 = vpop.f32.mrb[0].mxu0
        %v514 = vpop.f32.mrb[0].mxu0
        %v515 = vadd.f32 0.0, %v514
        %v516 = vpop.f32.mrb[0].mxu0
        %517 = vmatprep.mubr.bf16.mxu0 %v346
        %518 = vmatmul.mubr.bf16.gmra.mrb[0].mxu0 %v345
        %v519 = vpop.f32.mrb[0].mxu0
        %v520 = vadd.f32 0.0, %v519
        %v521 = vpop.f32.mrb[0].mxu0
        %v522 = vpop.f32.mrb[0].mxu0
        %v523 = vadd.f32 0.0, %v522
        %v524 = vpop.f32.mrb[0].mxu0
        %525 = vmatprep.mubr.bf16.mxu0 %v348
        %526 = vmatmul.mubr.bf16.gmra.mrb[0].mxu0 %v347
        %v527 = vpop.f32.mrb[0].mxu0
        %v528 = vadd.f32 0.0, %v527
        %v529 = vpop.f32.mrb[0].mxu0
        %v530 = vpop.f32.mrb[0].mxu0
        %v531 = vadd.f32 0.0, %v530
        %v532 = vpop.f32.mrb[0].mxu0
        %533 = vmatprep.mubr.bf16.mxu0 %v350
        %534 = vmatmul.mubr.bf16.gmra.mrb[0].mxu0 %v349
        %v535 = vpop.f32.mrb[0].mxu0
        %v536 = vadd.f32 0.0, %v535
        %v537 = vpop.f32.mrb[0].mxu0
        %v538 = vpop.f32.mrb[0].mxu0
        %v539 = vadd.f32 0.0, %v538
        %v540 = vpop.f32.mrb[0].mxu0
        %541 = vmatprep.mubr.bf16.mxu0 %v352
        %542 = vmatmul.mubr.bf16.gmra.mrb[0].mxu0 %v351
        %v543 = vpop.f32.mrb[0].mxu0
        %v544 = vadd.f32 0.0, %v543
        %v545 = vpop.f32.mrb[0].mxu0
        %v546 = vpop.f32.mrb[0].mxu0
        %v547 = vadd.f32 0.0, %v546
        %v548 = vpop.f32.mrb[0].mxu0
        %549 = vmatprep.mubr.bf16.mxu0 %v354
        %550 = vmatmul.mubr.bf16.gmra.mrb[0].mxu0 %v353
        %v551 = vpop.f32.mrb[0].mxu0
        %v552 = vadd.f32 0.0, %v551
        %v553 = vpop.f32.mrb[0].mxu0
        %v554 = vpop.f32.mrb[0].mxu0
        %v555 = vadd.f32 0.0, %v554
        %v556 = vpop.f32.mrb[0].mxu0
        %557 = vmatprep.mubr.bf16.mxu0 %v356
        %558 = vmatmul.mubr.bf16.gmra.mrb[0].mxu0 %v355
        %v559 = vpop.f32.mrb[0].mxu0
        %v560 = vadd.f32 0.0, %v559
        %v561 = vpop.f32.mrb[0].mxu0
        %v562 = vpop.f32.mrb[0].mxu0
        %v563 = vadd.f32 0.0, %v562
        %v564 = vpop.f32.mrb[0].mxu0
        %565 = vdwg.mxu0
        %s566 = smul.u32 %s20, 128
        %s567 = scalar_lea.vmem [#allocation2], %s566
        %568 = vst [vmem:[%s567] sm:$0xff] %v504
        %569 = vst [vmem:[%s567 + $0x8] sm:$0xff] %v507
        %570 = vst [vmem:[%s567 + $0x10] sm:$0xff] %v512
        %571 = vst [vmem:[%s567 + $0x18] sm:$0xff] %v515
        %572 = vst [vmem:[%s567 + $0x20] sm:$0xff] %v520
        %573 = vst [vmem:[%s567 + $0x28] sm:$0xff] %v523
        %574 = vst [vmem:[%s567 + $0x30] sm:$0xff] %v528
        %575 = vst [vmem:[%s567 + $0x38] sm:$0xff] %v531
        %576 = vst [vmem:[%s567 + $0x40] sm:$0xff] %v536
        %577 = vst [vmem:[%s567 + $0x48] sm:$0xff] %v539
        %578 = vst [vmem:[%s567 + $0x50] sm:$0xff] %v544
        %579 = vst [vmem:[%s567 + $0x58] sm:$0xff] %v547
        %580 = vst [vmem:[%s567 + $0x60] sm:$0xff] %v552
        %581 = vst [vmem:[%s567 + $0x68] sm:$0xff] %v555
        %582 = vst [vmem:[%s567 + $0x70] sm:$0xff] %v560
        %583 = vst [vmem:[%s567 + $0x78] sm:$0xff] %v563
        %v584 = vlaneseq
        %v585 = vshrl.u32 %v584, 7
        %v586 = vadd.s32 %v585, 8
        %v587 = vadd.s32 %v585, 16
        %v588 = vadd.s32 %v585, 24
        %v589 = vadd.s32 %v585, 32
        %v590 = vadd.s32 %v585, 40
        %v591 = vadd.s32 %v585, 48
        %v592 = vadd.s32 %v585, 56
        %v593 = vadd.s32 %v585, 64
        %v594 = vadd.s32 %v585, 72
        %v595 = vadd.s32 %v585, 80
        %v596 = vadd.s32 %v585, 88
        %v597 = vadd.s32 %v585, 96
        %v598 = vadd.s32 %v585, 104
        %v599 = vadd.s32 %v585, 112
        %v600 = vadd.s32 %v585, 120
        %v601 = vstv %s566
        %v602 = vadd.s32 %v585, %v601
        %v603 = vadd.s32 %v586, %v601
        %v604 = vadd.s32 %v587, %v601
        %v605 = vadd.s32 %v588, %v601
        %v606 = vadd.s32 %v589, %v601
        %v607 = vadd.s32 %v590, %v601
        %v608 = vadd.s32 %v591, %v601
        %v609 = vadd.s32 %v592, %v601
        %v610 = vadd.s32 %v593, %v601
        %v611 = vadd.s32 %v594, %v601
        %v612 = vadd.s32 %v595, %v601
        %v613 = vadd.s32 %v596, %v601
        %v614 = vadd.s32 %v597, %v601
        %v615 = vadd.s32 %v598, %v601
        %v616 = vadd.s32 %v599, %v601
        %v617 = vadd.s32 %v600, %v601
        %vm618 = vcmp.lt.s32.totalorder %v602, 128
        %vm619 = vcmp.lt.s32.totalorder %v603, 128
        %vm620 = vcmp.lt.s32.totalorder %v604, 128
        %vm621 = vcmp.lt.s32.totalorder %v605, 128
        %vm622 = vcmp.lt.s32.totalorder %v606, 128
        %vm623 = vcmp.lt.s32.totalorder %v607, 128
        %vm624 = vcmp.lt.s32.totalorder %v608, 128
        %vm625 = vcmp.lt.s32.totalorder %v609, 128
        %vm626 = vcmp.lt.s32.totalorder %v610, 128
        %vm627 = vcmp.lt.s32.totalorder %v611, 128
        %vm628 = vcmp.lt.s32.totalorder %v612, 128
        %vm629 = vcmp.lt.s32.totalorder %v613, 128
        %vm630 = vcmp.lt.s32.totalorder %v614, 128
        %vm631 = vcmp.lt.s32.totalorder %v615, 128
        %vm632 = vcmp.lt.s32.totalorder %v616, 128
        %vm633 = vcmp.lt.s32.totalorder %v617, 128
        %v634 = vsel %vm618, 1, 0
        %v635 = vsel %vm619, 1, 0
        %v636 = vsel %vm620, 1, 0
        %v637 = vsel %vm621, 1, 0
        %v638 = vsel %vm622, 1, 0
        %v639 = vsel %vm623, 1, 0
        %v640 = vsel %vm624, 1, 0
        %v641 = vsel %vm625, 1, 0
        %v642 = vsel %vm626, 1, 0
        %v643 = vsel %vm627, 1, 0
        %v644 = vsel %vm628, 1, 0
        %v645 = vsel %vm629, 1, 0
        %v646 = vsel %vm630, 1, 0
        %v647 = vsel %vm631, 1, 0
        %v648 = vsel %vm632, 1, 0
        %v649 = vsel %vm633, 1, 0
        %vm650 = vcmp.eq.s32.totalorder %v634, 1
        %vm651 = vcmp.eq.s32.totalorder %v635, 1
        %vm652 = vcmp.eq.s32.totalorder %v636, 1
        %vm653 = vcmp.eq.s32.totalorder %v637, 1
        %vm654 = vcmp.eq.s32.totalorder %v638, 1
        %vm655 = vcmp.eq.s32.totalorder %v639, 1
        %vm656 = vcmp.eq.s32.totalorder %v640, 1
        %vm657 = vcmp.eq.s32.totalorder %v641, 1
        %vm658 = vcmp.eq.s32.totalorder %v642, 1
        %vm659 = vcmp.eq.s32.totalorder %v643, 1
        %vm660 = vcmp.eq.s32.totalorder %v644, 1
        %vm661 = vcmp.eq.s32.totalorder %v645, 1
        %vm662 = vcmp.eq.s32.totalorder %v646, 1
        %vm663 = vcmp.eq.s32.totalorder %v647, 1
        %vm664 = vcmp.eq.s32.totalorder %v648, 1
        %vm665 = vcmp.eq.s32.totalorder %v649, 1
        %v666 = vsel %vm650, %v504, 0.0
        %v667 = vsel %vm651, %v507, 0.0
        %v668 = vsel %vm652, %v512, 0.0
        %v669 = vsel %vm653, %v515, 0.0
        %v670 = vsel %vm654, %v520, 0.0
        %v671 = vsel %vm655, %v523, 0.0
        %v672 = vsel %vm656, %v528, 0.0
        %v673 = vsel %vm657, %v531, 0.0
        %v674 = vsel %vm658, %v536, 0.0
        %v675 = vsel %vm659, %v539, 0.0
        %v676 = vsel %vm660, %v544, 0.0
        %v677 = vsel %vm661, %v547, 0.0
        %v678 = vsel %vm662, %v552, 0.0
        %v679 = vsel %vm663, %v555, 0.0
        %v680 = vsel %vm664, %v560, 0.0
        %v681 = vsel %vm665, %v563, 0.0
        %v682 = vld [vmem:[#allocation3] sm:$0x1]
        %v683 = vadd.f32 %v666, %v667
        %v684 = vadd.f32 %v683, %v668
        %v685 = vadd.f32 %v684, %v669
        %v686 = vadd.f32 %v685, %v670
        %v687 = vadd.f32 %v686, %v671
        %v688 = vadd.f32 %v687, %v672
        %v689 = vadd.f32 %v688, %v673
        %v690 = vadd.f32 %v689, %v674
        %v691 = vadd.f32 %v690, %v675
        %v692 = vadd.f32 %v691, %v676
        %v693 = vadd.f32 %v692, %v677
        %v694 = vadd.f32 %v693, %v678
        %v695 = vadd.f32 %v694, %v679
        %v696 = vadd.f32 %v695, %v680
        %v697 = vadd.f32 %v696, %v681
        %v698 = vrot.slane %v697, 4
        %v699 = vadd.f32 %v697, %v698
        %v700 = vrot.slane %v699, 2
        %v701 = vadd.f32 %v699, %v700
        %v702 = vrot.slane %v701, 1
        %v703 = vadd.f32 %v701, %v702
        %v704 = vadd.f32 %v682, %v703
        %705 = vst [vmem:[#allocation3] sm:$0x1] %v704
        %v706 = vld [vmem:[#allocation3 + $0x1] sm:$0x1]
        %v707 = vmul.f32 %v666, %v666
        %v708 = vmul.f32 %v667, %v667
        %v709 = vmul.f32 %v668, %v668
        %v710 = vmul.f32 %v669, %v669
        %v711 = vmul.f32 %v670, %v670
        %v712 = vmul.f32 %v671, %v671
        %v713 = vmul.f32 %v672, %v672
        %v714 = vmul.f32 %v673, %v673
        %v715 = vmul.f32 %v674, %v674
        %v716 = vmul.f32 %v675, %v675
        %v717 = vmul.f32 %v676, %v676
        %v718 = vmul.f32 %v677, %v677
        %v719 = vmul.f32 %v678, %v678
        %v720 = vmul.f32 %v679, %v679
        %v721 = vmul.f32 %v680, %v680
        %v722 = vmul.f32 %v681, %v681
        %v723 = vadd.f32 %v707, %v708
        %v724 = vadd.f32 %v723, %v709
        %v725 = vadd.f32 %v724, %v710
        %v726 = vadd.f32 %v725, %v711
        %v727 = vadd.f32 %v726, %v712
        %v728 = vadd.f32 %v727, %v713
        %v729 = vadd.f32 %v728, %v714
        %v730 = vadd.f32 %v729, %v715
        %v731 = vadd.f32 %v730, %v716
        %v732 = vadd.f32 %v731, %v717
        %v733 = vadd.f32 %v732, %v718
        %v734 = vadd.f32 %v733, %v719
        %v735 = vadd.f32 %v734, %v720
        %v736 = vadd.f32 %v735, %v721
        %v737 = vadd.f32 %v736, %v722
        %v738 = vrot.slane %v737, 4
        %v739 = vadd.f32 %v737, %v738
        %v740 = vrot.slane %v739, 2
        %v741 = vadd.f32 %v739, %v740
        %v742 = vrot.slane %v741, 1
        %v743 = vadd.f32 %v741, %v742
        %v744 = vadd.f32 %v706, %v743
        %745 = vst [vmem:[#allocation3 + $0x1] sm:$0x1] %v744
      $region40: #{patch_discriminator.7} parent=35 // pred_fallthru
        _
      %p746 = scmp.eq.s32.totalorder %s19, 1
      // Predicated region
      $region45: #{patch_discriminator.7} parent=35 // pred_check
        %p747 = pneg %p746
      $region46: #{patch_discriminator.7} parent=35 // pred_check_branch
        %749 = sbr.rel (%p747) target = $region48
      $region47: #{patch_discriminator.7} parent=35 // pred_region
        %p750 = scmp.eq.s32.totalorder %s20, 0
        // Predicated region
        $region49: #{patch_discriminator.7} parent=47 // pred_check
          %p751 = pneg %p750
        $region50: #{patch_discriminator.7} parent=47 // pred_check_branch
          %753 = sbr.rel (%p751) target = $region52
        $region51: #{patch_discriminator.7} parent=47 // pred_region
          %v754 = vld [vmem:[#allocation3] sm:$0x1]
          %v755 = vmul.f32 %v754, 0.0078125
          %v756 = vld [vmem:[#allocation3 + $0x1] sm:$0x1]
          %v757 = vmul.f32 %v756, 0.0078125
          %v758 = vmul.f32 %v755, %v755
          %v759 = vsub.f32 %v757, %v758
          %v760 = vmax.f32 %v759, 0.0
          %v761 = vld [vmem:[%s2] sm:$0x1]
          %v762 = vadd.f32 %v760, 1e-05
          %v763 = vrsqrt.pop %v762
          %v764 = vmul.f32 %v761, %v763
          %765 = vst [vmem:[#allocation4] sm:$0x1] %v764
          %v766 = vld [vmem:[%s3] sm:$0x1]
          %v767 = vmul.f32 %v755, %v764
          %v768 = vsub.f32 %v766, %v767
          %769 = vst [vmem:[#allocation4 + $0x1] sm:$0x1] %v768
        $region52: #{patch_discriminator.7} parent=47 // pred_fallthru
          _
        %s770 = smul.u32 %s20, 128
        %s771 = scalar_lea.vmem [#allocation2], %s770
        %v772 = vld [vmem:[%s771] sm:$0xff]
        %v773 = vld [vmem:[%s771 + $0x8] sm:$0xff]
        %v774 = vld [vmem:[%s771 + $0x10] sm:$0xff]
        %v775 = vld [vmem:[%s771 + $0x18] sm:$0xff]
        %v776 = vld [vmem:[%s771 + $0x20] sm:$0xff]
        %v777 = vld [vmem:[%s771 + $0x28] sm:$0xff]
        %v778 = vld [vmem:[%s771 + $0x30] sm:$0xff]
        %v779 = vld [vmem:[%s771 + $0x38] sm:$0xff]
        %v780 = vld [vmem:[%s771 + $0x40] sm:$0xff]
        %v781 = vld [vmem:[%s771 + $0x48] sm:$0xff]
        %v782 = vld [vmem:[%s771 + $0x50] sm:$0xff]
        %v783 = vld [vmem:[%s771 + $0x58] sm:$0xff]
        %v784 = vld [vmem:[%s771 + $0x60] sm:$0xff]
        %v785 = vld [vmem:[%s771 + $0x68] sm:$0xff]
        %v786 = vld [vmem:[%s771 + $0x70] sm:$0xff]
        %v787 = vld [vmem:[%s771 + $0x78] sm:$0xff]
        %v788 = vld [vmem:[#allocation4] sm:$0x1]
        %v789 = vlaneseq
        %v790 = vshrl.u32 %v789, 7
        %v791 = vsub.s32 0, %v790
        %v792 = vrot.slane %v788, %v791
        %v793 = vmul.f32 %v772, %v792
        %v794 = vmul.f32 %v773, %v792
        %v795 = vmul.f32 %v774, %v792
        %v796 = vmul.f32 %v775, %v792
        %v797 = vmul.f32 %v776, %v792
        %v798 = vmul.f32 %v777, %v792
        %v799 = vmul.f32 %v778, %v792
        %v800 = vmul.f32 %v779, %v792
        %v801 = vmul.f32 %v780, %v792
        %v802 = vmul.f32 %v781, %v792
        %v803 = vmul.f32 %v782, %v792
        %v804 = vmul.f32 %v783, %v792
        %v805 = vmul.f32 %v784, %v792
        %v806 = vmul.f32 %v785, %v792
        %v807 = vmul.f32 %v786, %v792
        %v808 = vmul.f32 %v787, %v792
        %v809 = vld [vmem:[#allocation4 + $0x1] sm:$0x1]
        %v810 = vlaneseq
        %v811 = vshrl.u32 %v810, 7
        %v812 = vsub.s32 0, %v811
        %v813 = vrot.slane %v809, %v812
        %v814 = vadd.f32 %v793, %v813
        %v815 = vadd.f32 %v794, %v813
        %v816 = vadd.f32 %v795, %v813
        %v817 = vadd.f32 %v796, %v813
        %v818 = vadd.f32 %v797, %v813
        %v819 = vadd.f32 %v798, %v813
        %v820 = vadd.f32 %v799, %v813
        %v821 = vadd.f32 %v800, %v813
        %v822 = vadd.f32 %v801, %v813
        %v823 = vadd.f32 %v802, %v813
        %v824 = vadd.f32 %v803, %v813
        %v825 = vadd.f32 %v804, %v813
        %v826 = vadd.f32 %v805, %v813
        %v827 = vadd.f32 %v806, %v813
        %v828 = vadd.f32 %v807, %v813
        %v829 = vadd.f32 %v808, %v813
        %vm830 = vcmp.ge.f32.partialorder %v814, 0.0
        %vm831 = vcmp.ge.f32.partialorder %v815, 0.0
        %vm832 = vcmp.ge.f32.partialorder %v816, 0.0
        %vm833 = vcmp.ge.f32.partialorder %v817, 0.0
        %vm834 = vcmp.ge.f32.partialorder %v818, 0.0
        %vm835 = vcmp.ge.f32.partialorder %v819, 0.0
        %vm836 = vcmp.ge.f32.partialorder %v820, 0.0
        %vm837 = vcmp.ge.f32.partialorder %v821, 0.0
        %vm838 = vcmp.ge.f32.partialorder %v822, 0.0
        %vm839 = vcmp.ge.f32.partialorder %v823, 0.0
        %vm840 = vcmp.ge.f32.partialorder %v824, 0.0
        %vm841 = vcmp.ge.f32.partialorder %v825, 0.0
        %vm842 = vcmp.ge.f32.partialorder %v826, 0.0
        %vm843 = vcmp.ge.f32.partialorder %v827, 0.0
        %vm844 = vcmp.ge.f32.partialorder %v828, 0.0
        %vm845 = vcmp.ge.f32.partialorder %v829, 0.0
        %v846 = vmul.f32 %v814, 0.2
        %v847 = vmul.f32 %v815, 0.2
        %v848 = vmul.f32 %v816, 0.2
        %v849 = vmul.f32 %v817, 0.2
        %v850 = vmul.f32 %v818, 0.2
        %v851 = vmul.f32 %v819, 0.2
        %v852 = vmul.f32 %v820, 0.2
        %v853 = vmul.f32 %v821, 0.2
        %v854 = vmul.f32 %v822, 0.2
        %v855 = vmul.f32 %v823, 0.2
        %v856 = vmul.f32 %v824, 0.2
        %v857 = vmul.f32 %v825, 0.2
        %v858 = vmul.f32 %v826, 0.2
        %v859 = vmul.f32 %v827, 0.2
        %v860 = vmul.f32 %v828, 0.2
        %v861 = vmul.f32 %v829, 0.2
        %v862 = vsel %vm830, %v814, %v846
        %v863 = vsel %vm831, %v815, %v847
        %v864 = vsel %vm832, %v816, %v848
        %v865 = vsel %vm833, %v817, %v849
        %v866 = vsel %vm834, %v818, %v850
        %v867 = vsel %vm835, %v819, %v851
        %v868 = vsel %vm836, %v820, %v852
        %v869 = vsel %vm837, %v821, %v853
        %v870 = vsel %vm838, %v822, %v854
        %v871 = vsel %vm839, %v823, %v855
        %v872 = vsel %vm840, %v824, %v856
        %v873 = vsel %vm841, %v825, %v857
        %v874 = vsel %vm842, %v826, %v858
        %v875 = vsel %vm843, %v827, %v859
        %v876 = vsel %vm844, %v828, %v860
        %v877 = vsel %vm845, %v829, %v861
        %v878 = vpack.c.bf16 %v863, %v862
        %v879 = vpack.c.bf16 %v865, %v864
        %v880 = vpack.c.bf16 %v867, %v866
        %v881 = vpack.c.bf16 %v869, %v868
        %v882 = vpack.c.bf16 %v871, %v870
        %v883 = vpack.c.bf16 %v873, %v872
        %v884 = vpack.c.bf16 %v875, %v874
        %v885 = vpack.c.bf16 %v877, %v876
        %v894 = vunpack.c.l.b16 %v878
        %v895 = vunpack.c.h.b16 %v878
        %v896 = vunpack.c.l.b16 %v879
        %v897 = vunpack.c.h.b16 %v879
        %v898 = vunpack.c.l.b16 %v880
        %v899 = vunpack.c.h.b16 %v880
        %v900 = vunpack.c.l.b16 %v881
        %v901 = vunpack.c.h.b16 %v881
        %v902 = vunpack.c.l.b16 %v882
        %v903 = vunpack.c.h.b16 %v882
        %v904 = vunpack.c.l.b16 %v883
        %v905 = vunpack.c.h.b16 %v883
        %v906 = vunpack.c.l.b16 %v884
        %v907 = vunpack.c.h.b16 %v884
        %v908 = vunpack.c.l.b16 %v885
        %v909 = vunpack.c.h.b16 %v885
        %v910 = vpack.c.b16 %v894, %v894
        %v911 = vpack.c.b16 %v895, %v895
        %v912 = vpack.c.b16 %v896, %v896
        %v913 = vpack.c.b16 %v897, %v897
        %v914 = vpack.c.b16 %v898, %v898
        %v915 = vpack.c.b16 %v899, %v899
        %v916 = vpack.c.b16 %v900, %v900
        %v917 = vpack.c.b16 %v901, %v901
        %v918 = vpack.c.b16 %v902, %v902
        %v919 = vpack.c.b16 %v903, %v903
        %v920 = vpack.c.b16 %v904, %v904
        %v921 = vpack.c.b16 %v905, %v905
        %v922 = vpack.c.b16 %v906, %v906
        %v923 = vpack.c.b16 %v907, %v907
        %v924 = vpack.c.b16 %v908, %v908
        %v925 = vpack.c.b16 %v909, %v909
        %942 = vst [vmem:[%s232] sm:$0xf] %v910
        %943 = vst [vmem:[%s232 + $0x4] sm:$0xf] %v911
        %944 = vst [vmem:[%s232 + $0x8] sm:$0xf] %v912
        %945 = vst [vmem:[%s232 + $0xc] sm:$0xf] %v913
        %946 = vst [vmem:[%s232 + $0x10] sm:$0xf] %v914
        %947 = vst [vmem:[%s232 + $0x14] sm:$0xf] %v915
        %948 = vst [vmem:[%s232 + $0x18] sm:$0xf] %v916
        %949 = vst [vmem:[%s232 + $0x1c] sm:$0xf] %v917
        %950 = vst [vmem:[%s232 + $0x20] sm:$0xf] %v918
        %951 = vst [vmem:[%s232 + $0x24] sm:$0xf] %v919
        %952 = vst [vmem:[%s232 + $0x28] sm:$0xf] %v920
        %953 = vst [vmem:[%s232 + $0x2c] sm:$0xf] %v921
        %954 = vst [vmem:[%s232 + $0x30] sm:$0xf] %v922
        %955 = vst [vmem:[%s232 + $0x34] sm:$0xf] %v923
        %956 = vst [vmem:[%s232 + $0x38] sm:$0xf] %v924
        %957 = vst [vmem:[%s232 + $0x3c] sm:$0xf] %v925
      $region48: #{patch_discriminator.7} parent=35 // pred_fallthru
        _
      %s958 = smul.u32 %s20, %s19
      %s959 = smul.u32 16, %s958
      %p960 = scmp.lt.s32.totalorder %s959, 15
      %s961 = scalar_select %p960, %s959, 15
      %s962 = smul.addr %s961, 4
      %s963 = scalar_lea.vmem %s4, %s962
      // Predicated region
      $region53: #{patch_discriminator.7} parent=35 // pred_check
        %p964 = pneg %p140
      $region54: #{patch_discriminator.7} parent=35 // pred_check_branch
        %966 = sbr.rel (%p964) target = $region56
      $region55: #{patch_discriminator.7} parent=35 // pred_region
        %s967 = smul.u32 %s20, %s19
        %s968 = smul.u32 16, %s967
      $region56: #{patch_discriminator.7} parent=35 // pred_fallthru
        _
    $region36: #{patch_discriminator.7} parent=5 // pred_fallthru
      _
    %p969 = scmp.le.s32.totalorder 2, %s10
    // Predicated region
    $region57: #{patch_discriminator.7} parent=5 // pred_check
      %p970 = pneg %p969
    $region58: #{patch_discriminator.7} parent=5 // pred_check_branch
      %972 = sbr.rel (%p970) target = $region60
    $region59: #{patch_discriminator.7} parent=5 // pred_region
      %s973 = ssub.s32 %s10, 2
      // Predicated region
      $region61: #{patch_discriminator.7} parent=59 // pred_check
        %p974 = pneg %p146
      $region62: #{patch_discriminator.7} parent=59 // pred_check_branch
        %976 = sbr.rel (%p974) target = $region64
      $region63: #{patch_discriminator.7} parent=59 // pred_region
        %s977 = smul.u32 %s22, %s21
        %s978 = smul.u32 16, %s977
        %p979 = scmp.lt.s32.totalorder %s978, 15
        %s980 = scalar_select %p979, %s978, 15
        %s981 = smul.addr %s980, 4
        %s982 = scalar_lea.vmem %s4, %s981
      $region64: #{patch_discriminator.7} parent=59 // pred_fallthru
        _
    $region60: #{patch_discriminator.7} parent=5 // pred_fallthru
      _
  $region6: #{patch_discriminator.7} parent=0 // loop_footer
    %s14 = sadd.s32 1, %s10
  $region7: #{patch_discriminator.7} parent=0 // loop_footer_branch
    %9 = sbr.rel target = $region3
  $region8: #{patch_discriminator.7} parent=0 // loop_exit
    _

// kernel: patch_discriminator.8
$region0: #{patch_discriminator.8}
  #allocation0 [shape = 'u32[]', space=smem, size = 0x4, offset = 0x4, fixed_abs, tag = 'smem constant byte address 0x4 - core index']
  #allocation1 [shape = 'u32[144,128]{1,0:T(1,128)}', space=vmem, size = 0x12000, scoped, tag = 'internal scratch']
  #allocation2 [shape = 'f32[1,98,128]{2,1,0:T(8,128)}', space=vmem, size = 0xd000, scoped, tag = 'scratch operand']
  #allocation3 [shape = 'f32[2,128]{1,0:T(2,128)}', space=vmem, size = 0x400, scoped, tag = 'scratch operand']
  #allocation4 [shape = 'f32[2,128]{1,0:T(2,128)}', space=vmem, size = 0x400, scoped, tag = 'scratch operand']
  %s0 = inlined_call_operand.vmem [shape: bf16[98,512], index: 0, kind: input, shape index: {}]
  %s1 = inlined_call_operand.vmem [shape: bf16[512,128], index: 1, kind: input, shape index: {}]
  %s2 = inlined_call_operand.vmem [shape: f32[1,128], index: 2, kind: input, shape index: {}]
  %s3 = inlined_call_operand.vmem [shape: f32[1,128], index: 3, kind: input, shape index: {}]
  %s4 = inlined_call_operand.vmem [shape: bf16[98,128], index: 4, kind: output, shape index: {}]
  %s5 = sld [smem:[#allocation0]]
  $region65: #{patch_discriminator.8} parent=0
    _
  %s7 = ssub.s32 1, %s5
  %s8 = scalar_select 0, %s7, %s5
  loop: start=0, step=1, limit=4
  $region2: #{patch_discriminator.8} parent=0 // loop_pre_header
    _
  $region3: #{patch_discriminator.8} parent=0 // loop_header
    %s10 = sphi 0, %s14
    %p11 = scmp.ge.s32.totalorder %s10, 4
    %s17 = sphi 0, %s29
    %s18 = sphi 0, %s25
    %s19 = sphi 0, %s17
    %s20 = sphi 0, %s18
    %s21 = sphi 0, %s19
    %s22 = sphi 0, %s20
    %s36 = sphi 0, %s38
    %s39 = sphi 0, %s36
    %s40 = sphi 0, %s39
    %s56 = sphi 0, %s40
    %s60 = sphi 0, %s60
    %s62 = sphi 0, %s60
    %s63 = sphi 0, %s62
    %s77 = sphi 0, %s63
    %s81 = sphi 0, %s81
    %s83 = sphi 0, %s81
    %s84 = sphi 0, %s83
    %s98 = sphi 0, %s84
    %s102 = sphi 0, %s102
    %s104 = sphi 0, %s102
    %s105 = sphi 0, %s104
    %s119 = sphi 0, %s105
    %s127 = sphi 0, %s129
    %s130 = sphi 0, %s127
    %s131 = sphi 0, %s130
    %s147 = sphi 0, %s131
  $region4: #{patch_discriminator.8} parent=0 // loop_header_branch
    %13 = sbr.rel (%p11) target = $region8
  $region5: #{patch_discriminator.8} parent=0 // loop_body
    %s15 = ssub.s32 %s10, 1
    %s16 = ssub.s32 %s10, 2
    %s23 = sadd.s32 1, %s18
    %p24 = scmp.ge.s32.totalorder %s23, 1
    %s25 = scalar_select %p24, 0, %s23
    %s26 = sadd.s32 1, %s17
    %s27 = scalar_select %p24, %s26, %s17
    %p28 = scmp.ge.s32.totalorder %s27, 2
    %s29 = scalar_select %p28, 0, %s27
    %s30 = ssub.s32 1, %s17
    %s31 = smul.u32 %s18, %s30
    %s32 = ssub.s32 1, %s29
    %s33 = smul.u32 %s25, %s32
    %s34 = ssub.s32 %s31, %s33
    %p35 = scmp.eq.s32.totalorder %s34, 0
    %s37 = sadd.s32 %s36, 1
    %s38 = scalar_select %p35, %s36, %s37
    %p41 = pneg %p35
    %p42 = scmp.eq.s32.totalorder %s10, 1
    %p43 = por %p41, %p42
    %p44 = scmp.ne.s32.totalorder %s36, %s39
    %p45 = scmp.eq.s32.totalorder %s10, 0
    %p46 = por %p44, %p45
    %p47 = scmp.ne.s32.totalorder %s36, %s39
    %p48 = scmp.eq.s32.totalorder %s15, 1
    %p49 = por %p47, %p48
    %p50 = scmp.ne.s32.totalorder %s39, %s40
    %p51 = scmp.eq.s32.totalorder %s15, 0
    %p52 = por %p50, %p51
    %p53 = scmp.ne.s32.totalorder %s39, %s40
    %p54 = scmp.eq.s32.totalorder %s16, 1
    %p55 = por %p53, %p54
    %p57 = scmp.ne.s32.totalorder %s40, %s56
    %p58 = scmp.eq.s32.totalorder %s16, 0
    %p59 = por %p57, %p58
    %s61 = sadd.s32 %s60, 1
    %p64 = scmp.eq.s32.totalorder %s10, 1
    %p65 = scmp.ne.s32.totalorder %s60, %s62
    %p66 = scmp.eq.s32.totalorder %s10, 0
    %p67 = por %p65, %p66
    %p68 = scmp.ne.s32.totalorder %s60, %s62
    %p69 = scmp.eq.s32.totalorder %s15, 1
    %p70 = por %p68, %p69
    %p71 = scmp.ne.s32.totalorder %s62, %s63
    %p72 = scmp.eq.s32.totalorder %s15, 0
    %p73 = por %p71, %p72
    %p74 = scmp.ne.s32.totalorder %s62, %s63
    %p75 = scmp.eq.s32.totalorder %s16, 1
    %p76 = por %p74, %p75
    %p78 = scmp.ne.s32.totalorder %s63, %s77
    %p79 = scmp.eq.s32.totalorder %s16, 0
    %p80 = por %p78, %p79
    %s82 = sadd.s32 %s81, 1
    %p85 = scmp.eq.s32.totalorder %s10, 1
    %p86 = scmp.ne.s32.totalorder %s81, %s83
    %p87 = scmp.eq.s32.totalorder %s10, 0
    %p88 = por %p86, %p87
    %p89 = scmp.ne.s32.totalorder %s81, %s83
    %p90 = scmp.eq.s32.totalorder %s15, 1
    %p91 = por %p89, %p90
    %p92 = scmp.ne.s32.totalorder %s83, %s84
    %p93 = scmp.eq.s32.totalorder %s15, 0
    %p94 = por %p92, %p93
    %p95 = scmp.ne.s32.totalorder %s83, %s84
    %p96 = scmp.eq.s32.totalorder %s16, 1
    %p97 = por %p95, %p96
    %p99 = scmp.ne.s32.totalorder %s84, %s98
    %p100 = scmp.eq.s32.totalorder %s16, 0
    %p101 = por %p99, %p100
    %s103 = sadd.s32 %s102, 1
    %p106 = scmp.eq.s32.totalorder %s10, 1
    %p107 = scmp.ne.s32.totalorder %s102, %s104
    %p108 = scmp.eq.s32.totalorder %s10, 0
    %p109 = por %p107, %p108
    %p110 = scmp.ne.s32.totalorder %s102, %s104
    %p111 = scmp.eq.s32.totalorder %s15, 1
    %p112 = por %p110, %p111
    %p113 = scmp.ne.s32.totalorder %s104, %s105
    %p114 = scmp.eq.s32.totalorder %s15, 0
    %p115 = por %p113, %p114
    %p116 = scmp.ne.s32.totalorder %s104, %s105
    %p117 = scmp.eq.s32.totalorder %s16, 1
    %p118 = por %p116, %p117
    %p120 = scmp.ne.s32.totalorder %s105, %s119
    %p121 = scmp.eq.s32.totalorder %s16, 0
    %p122 = por %p120, %p121
    %s123 = smul.u32 %s18, %s17
    %s124 = smul.u32 %s25, %s29
    %s125 = ssub.s32 %s123, %s124
    %p126 = scmp.eq.s32.totalorder %s125, 0
    %s128 = sadd.s32 %s127, 1
    %s129 = scalar_select %p126, %s127, %s128
    %p132 = pneg %p126
    %p133 = scmp.eq.s32.totalorder %s10, 1
    %p134 = por %p132, %p133
    %p135 = scmp.ne.s32.totalorder %s127, %s130
    %p136 = scmp.eq.s32.totalorder %s10, 0
    %p137 = por %p135, %p136
    %p138 = scmp.ne.s32.totalorder %s127, %s130
    %p139 = scmp.eq.s32.totalorder %s15, 1
    %p140 = por %p138, %p139
    %p141 = scmp.ne.s32.totalorder %s130, %s131
    %p142 = scmp.eq.s32.totalorder %s15, 0
    %p143 = por %p141, %p142
    %p144 = scmp.ne.s32.totalorder %s130, %s131
    %p145 = scmp.eq.s32.totalorder %s16, 1
    %p146 = por %p144, %p145
    %p148 = scmp.ne.s32.totalorder %s131, %s147
    %p149 = scmp.eq.s32.totalorder %s16, 0
    %p150 = por %p148, %p149
    %p151 = scmp.le.s32.totalorder 1, %s10
    %p152 = scmp.lt.s32.totalorder %s10, 3
    %p153 = pnand %p151, %p152
    %p154 = pneg %p153
    // Predicated region
    $region9: #{patch_discriminator.8} parent=5 // pred_check
      _
    $region10: #{patch_discriminator.8} parent=5 // pred_check_branch
      %156 = sbr.rel (%p153) target = $region12
    $region11: #{patch_discriminator.8} parent=5 // pred_region
      %s157 = ssub.s32 %s10, 1
      // Predicated region
      $region13: #{patch_discriminator.8} parent=11 // pred_check
        %p158 = pneg %p73
      $region14: #{patch_discriminator.8} parent=11 // pred_check_branch
        %160 = sbr.rel (%p158) target = $region16
      $region15: #{patch_discriminator.8} parent=11 // pred_region
        _
      $region16: #{patch_discriminator.8} parent=11 // pred_fallthru
        _
      // Predicated region
      $region17: #{patch_discriminator.8} parent=11 // pred_check
        %p161 = pneg %p94
      $region18: #{patch_discriminator.8} parent=11 // pred_check_branch
        %163 = sbr.rel (%p161) target = $region20
      $region19: #{patch_discriminator.8} parent=11 // pred_region
        _
      $region20: #{patch_discriminator.8} parent=11 // pred_fallthru
        _
      // Predicated region
      $region21: #{patch_discriminator.8} parent=11 // pred_check
        %p164 = pneg %p115
      $region22: #{patch_discriminator.8} parent=11 // pred_check_branch
        %166 = sbr.rel (%p164) target = $region24
      $region23: #{patch_discriminator.8} parent=11 // pred_region
        _
      $region24: #{patch_discriminator.8} parent=11 // pred_fallthru
        _
    $region12: #{patch_discriminator.8} parent=5 // pred_fallthru
      _
    %p167 = scmp.lt.s32.totalorder %s10, 2
    // Predicated region
    $region25: #{patch_discriminator.8} parent=5 // pred_check
      %p168 = pneg %p167
    $region26: #{patch_discriminator.8} parent=5 // pred_check_branch
      %170 = sbr.rel (%p168) target = $region28
    $region27: #{patch_discriminator.8} parent=5 // pred_region
      // Predicated region
      $region29: #{patch_discriminator.8} parent=27 // pred_check
        %p171 = pneg %p46
      $region30: #{patch_discriminator.8} parent=27 // pred_check_branch
        %173 = sbr.rel (%p171) target = $region32
      $region31: #{patch_discriminator.8} parent=27 // pred_region
        %s174 = ssub.s32 1, %s17
        %s175 = smul.u32 %s18, %s174
        %s176 = smul.u32 13, %s175
        %p177 = scmp.lt.s32.totalorder %s176, 12
        %s178 = scalar_select %p177, %s176, 12
        %s179 = smul.addr %s178, 4
        %s180 = smul.addr %s179, 4
        %s181 = scalar_lea.vmem %s0, %s180
        %s182 = ssub.s32 1, %s17
        %s183 = smul.u32 %s18, %s182
        %s184 = smul.u32 13, %s183
      $region32: #{patch_discriminator.8} parent=27 // pred_fallthru
        _
    $region28: #{patch_discriminator.8} parent=5 // pred_fallthru
      _
    %p185 = scmp.le.s32.totalorder 1, %s10
    %p186 = scmp.lt.s32.totalorder %s10, 3
    %p187 = pnand %p185, %p186
    %p188 = pneg %p187
    // Predicated region
    $region33: #{patch_discriminator.8} parent=5 // pred_check
      _
    $region34: #{patch_discriminator.8} parent=5 // pred_check_branch
      %190 = sbr.rel (%p187) target = $region36
    $region35: #{patch_discriminator.8} parent=5 // pred_region
      %s191 = ssub.s32 %s10, 1
      %s192 = ssub.s32 1, %s19
      %s193 = smul.u32 %s20, %s192
      %s194 = smul.u32 13, %s193
      %p195 = scmp.lt.s32.totalorder %s194, 12
      %s196 = scalar_select %p195, %s194, 12
      %s197 = smul.addr %s196, 4
      %s198 = smul.addr %s197, 4
      %s199 = scalar_lea.vmem %s0, %s198
      %p200 = pneg %p52
      %p201 = pneg %p49
      %p202 = pneg %p73
      %p203 = pneg %p70
      %p204 = pneg %p94
      %p205 = pneg %p91
      %p206 = pneg %p115
      %p207 = pneg %p112
      %p208 = pneg %p143
      %p209 = pneg %p140
      %s210 = smul.u32 %s20, %s19
      %s211 = smul.u32 13, %s210
      %p212 = scmp.lt.s32.totalorder %s211, 12
      %s213 = scalar_select %p212, %s211, 12
      %s214 = smul.addr %s213, 4
      %s215 = scalar_lea.vmem %s4, %s214
      %s216 = ssub.s32 1, %s19
      %s217 = smul.u32 %s20, %s216
      %s218 = smul.u32 13, %s217
      %p219 = scmp.lt.s32.totalorder %s218, 12
      %s220 = scalar_select %p219, %s218, 12
      %s221 = smul.addr %s220, 4
      %s222 = smul.addr %s221, 4
      %s223 = scalar_lea.vmem %s0, %s222
      %s224 = ssub.s32 1, %s19
      %s225 = smul.u32 %s20, %s224
      %s226 = smul.u32 13, %s225
      %s227 = smul.u32 %s20, %s19
      %s228 = smul.u32 13, %s227
      %p229 = scmp.lt.s32.totalorder %s228, 12
      %s230 = scalar_select %p229, %s228, 12
      %s231 = smul.addr %s230, 4
      %s232 = scalar_lea.vmem %s4, %s231
      %s233 = smul.u32 %s20, %s19
      %s234 = smul.u32 13, %s233
      %p236 = scmp.eq.s32.totalorder %s19, 0
      // Predicated region
      $region37: #{patch_discriminator.8} parent=35 // pred_check
        %p237 = pneg %p236
      $region38: #{patch_discriminator.8} parent=35 // pred_check_branch
        %239 = sbr.rel (%p237) target = $region40
      $region39: #{patch_discriminator.8} parent=35 // pred_region
        %p240 = scmp.eq.s32.totalorder %s20, 0
        // Predicated region
        $region41: #{patch_discriminator.8} parent=39 // pred_check
          %p241 = pneg %p240
        $region42: #{patch_discriminator.8} parent=39 // pred_check_branch
          %243 = sbr.rel (%p241) target = $region44
        $region43: #{patch_discriminator.8} parent=39 // pred_region
          %244 = vst [vmem:[#allocation3] sm:$0x3] 0.0
        $region44: #{patch_discriminator.8} parent=39 // pred_fallthru
          _
        %v245 = vld [vmem:[%s223] sm:$0xff]
        %v246 = vld [vmem:[%s223 + $0x8] sm:$0xff]
        %v247 = vld [vmem:[%s223 + $0x10] sm:$0xff]
        %v248 = vld [vmem:[%s223 + $0x18] sm:$0xff]
        %v249 = vld [vmem:[%s223 + $0x20] sm:$0xff]
        %v250 = vld [vmem:[%s223 + $0x28] sm:$0xff]
        %v251 = vld [vmem:[%s223 + $0x30] sm:$0xff]
        %v252 = vld [vmem:[%s223 + $0x38] sm:$0xff]
        %v253 = vld [vmem:[%s223 + $0x40] sm:$0xff]
        %v254 = vld [vmem:[%s223 + $0x48] sm:$0xff]
        %v255 = vld [vmem:[%s223 + $0x50] sm:$0xff]
        %v256 = vld [vmem:[%s223 + $0x58] sm:$0xff]
        %v257 = vld [vmem:[%s223 + $0x60] sm:$0xff]
        %v258 = vld [vmem:[%s223 + $0x68] sm:$0xff]
        %v259 = vld [vmem:[%s223 + $0x70] sm:$0xff]
        %v260 = vld [vmem:[%s223 + $0x78] sm:$0xff]
        %v261 = vld [vmem:[%s223 + $0x80] sm:$0xff]
        %v262 = vld [vmem:[%s223 + $0x88] sm:$0xff]
        %v263 = vld [vmem:[%s223 + $0x90] sm:$0xff]
        %v264 = vld [vmem:[%s223 + $0x98] sm:$0xff]
        %v265 = vld [vmem:[%s223 + $0xa0] sm:$0xff]
        %v266 = vld [vmem:[%s223 + $0xa8] sm:$0xff]
        %v267 = vld [vmem:[%s223 + $0xb0] sm:$0xff]
        %v268 = vld [vmem:[%s223 + $0xb8] sm:$0xff]
        %v269 = vld [vmem:[%s223 + $0xc0] sm:$0x11]
        %v270 = vld [vmem:[%s223 + $0xc8] sm:$0x11]
        %v271 = vld [vmem:[%s1] sm:$0xf]
        %v272 = vld [vmem:[%s1 + $0x4] sm:$0xf]
        %v273 = vld [vmem:[%s1 + $0x8] sm:$0xf]
        %v274 = vld [vmem:[%s1 + $0xc] sm:$0xf]
        %v275 = vld [vmem:[%s1 + $0x10] sm:$0xf]
        %v276 = vld [vmem:[%s1 + $0x14] sm:$0xf]
        %v277 = vld [vmem:[%s1 + $0x18] sm:$0xf]
        %v278 = vld [vmem:[%s1 + $0x1c] sm:$0xf]
        %v279 = vld [vmem:[%s1 + $0x20] sm:$0xf]
        %v280 = vld [vmem:[%s1 + $0x24] sm:$0xf]
        %v281 = vld [vmem:[%s1 + $0x28] sm:$0xf]
        %v282 = vld [vmem:[%s1 + $0x2c] sm:$0xf]
        %v283 = vld [vmem:[%s1 + $0x30] sm:$0xf]
        %v284 = vld [vmem:[%s1 + $0x34] sm:$0xf]
        %v285 = vld [vmem:[%s1 + $0x38] sm:$0xf]
        %v286 = vld [vmem:[%s1 + $0x3c] sm:$0xf]
        %v287 = vld [vmem:[%s1 + $0x40] sm:$0xf]
        %v288 = vld [vmem:[%s1 + $0x44] sm:$0xf]
        %v289 = vld [vmem:[%s1 + $0x48] sm:$0xf]
        %v290 = vld [vmem:[%s1 + $0x4c] sm:$0xf]
        %v291 = vld [vmem:[%s1 + $0x50] sm:$0xf]
        %v292 = vld [vmem:[%s1 + $0x54] sm:$0xf]
        %v293 = vld [vmem:[%s1 + $0x58] sm:$0xf]
        %v294 = vld [vmem:[%s1 + $0x5c] sm:$0xf]
        %v295 = vld [vmem:[%s1 + $0x60] sm:$0xf]
        %v296 = vld [vmem:[%s1 + $0x64] sm:$0xf]
        %v297 = vld [vmem:[%s1 + $0x68] sm:$0xf]
        %v298 = vld [vmem:[%s1 + $0x6c] sm:$0xf]
        %v299 = vld [vmem:[%s1 + $0x70] sm:$0xf]
        %v300 = vld [vmem:[%s1 + $0x74] sm:$0xf]
        %v301 = vld [vmem:[%s1 + $0x78] sm:$0xf]
        %v302 = vld [vmem:[%s1 + $0x7c] sm:$0xf]
        %v303 = vld [vmem:[%s1 + $0x80] sm:$0xf]
        %v304 = vld [vmem:[%s1 + $0x84] sm:$0xf]
        %v305 = vld [vmem:[%s1 + $0x88] sm:$0xf]
        %v306 = vld [vmem:[%s1 + $0x8c] sm:$0xf]
        %v307 = vld [vmem:[%s1 + $0x90] sm:$0xf]
        %v308 = vld [vmem:[%s1 + $0x94] sm:$0xf]
        %v309 = vld [vmem:[%s1 + $0x98] sm:$0xf]
        %v310 = vld [vmem:[%s1 + $0x9c] sm:$0xf]
        %v311 = vld [vmem:[%s1 + $0xa0] sm:$0xf]
        %v312 = vld [vmem:[%s1 + $0xa4] sm:$0xf]
        %v313 = vld [vmem:[%s1 + $0xa8] sm:$0xf]
        %v314 = vld [vmem:[%s1 + $0xac] sm:$0xf]
        %v315 = vld [vmem:[%s1 + $0xb0] sm:$0xf]
        %v316 = vld [vmem:[%s1 + $0xb4] sm:$0xf]
        %v317 = vld [vmem:[%s1 + $0xb8] sm:$0xf]
        %v318 = vld [vmem:[%s1 + $0xbc] sm:$0xf]
        %v319 = vld [vmem:[%s1 + $0xc0] sm:$0xf]
        %v320 = vld [vmem:[%s1 + $0xc4] sm:$0xf]
        %v321 = vld [vmem:[%s1 + $0xc8] sm:$0xf]
        %v322 = vld [vmem:[%s1 + $0xcc] sm:$0xf]
        %v323 = vld [vmem:[%s1 + $0xd0] sm:$0xf]
        %v324 = vld [vmem:[%s1 + $0xd4] sm:$0xf]
        %v325 = vld [vmem:[%s1 + $0xd8] sm:$0xf]
        %v326 = vld [vmem:[%s1 + $0xdc] sm:$0xf]
        %v327 = vld [vmem:[%s1 + $0xe0] sm:$0xf]
        %v328 = vld [vmem:[%s1 + $0xe4] sm:$0xf]
        %v329 = vld [vmem:[%s1 + $0xe8] sm:$0xf]
        %v330 = vld [vmem:[%s1 + $0xec] sm:$0xf]
        %v331 = vld [vmem:[%s1 + $0xf0] sm:$0xf]
        %v332 = vld [vmem:[%s1 + $0xf4] sm:$0xf]
        %v333 = vld [vmem:[%s1 + $0xf8] sm:$0xf]
        %v334 = vld [vmem:[%s1 + $0xfc] sm:$0xf]
        %v361 = vunpack.c.l.b16 %v245
        %v362 = vunpack.c.h.b16 %v245
        %v363 = vunpack.c.l.b16 %v246
        %v364 = vunpack.c.h.b16 %v246
        %v365 = vunpack.c.l.b16 %v247
        %v366 = vunpack.c.h.b16 %v247
        %v367 = vunpack.c.l.b16 %v248
        %v368 = vunpack.c.h.b16 %v248
        %v369 = vunpack.c.l.b16 %v249
        %v370 = vunpack.c.h.b16 %v249
        %v371 = vunpack.c.l.b16 %v250
        %v372 = vunpack.c.h.b16 %v250
        %v373 = vunpack.c.l.b16 %v251
        %v374 = vunpack.c.h.b16 %v251
        %v375 = vunpack.c.l.b16 %v252
        %v376 = vunpack.c.h.b16 %v252
        %v377 = vunpack.c.l.b16 %v253
        %v378 = vunpack.c.h.b16 %v253
        %v379 = vunpack.c.l.b16 %v254
        %v380 = vunpack.c.h.b16 %v254
        %v381 = vunpack.c.l.b16 %v255
        %v382 = vunpack.c.h.b16 %v255
        %v383 = vunpack.c.l.b16 %v256
        %v384 = vunpack.c.h.b16 %v256
        %v385 = vunpack.c.l.b16 %v257
        %v386 = vunpack.c.h.b16 %v257
        %v387 = vunpack.c.l.b16 %v258
        %v388 = vunpack.c.h.b16 %v258
        %v389 = vunpack.c.l.b16 %v259
        %v390 = vunpack.c.h.b16 %v259
        %v391 = vunpack.c.l.b16 %v260
        %v392 = vunpack.c.h.b16 %v260
        %v393 = vunpack.c.l.b16 %v261
        %v394 = vunpack.c.h.b16 %v261
        %v395 = vunpack.c.l.b16 %v262
        %v396 = vunpack.c.h.b16 %v262
        %v397 = vunpack.c.l.b16 %v263
        %v398 = vunpack.c.h.b16 %v263
        %v399 = vunpack.c.l.b16 %v264
        %v400 = vunpack.c.h.b16 %v264
        %v401 = vunpack.c.l.b16 %v265
        %v402 = vunpack.c.h.b16 %v265
        %v403 = vunpack.c.l.b16 %v266
        %v404 = vunpack.c.h.b16 %v266
        %v405 = vunpack.c.l.b16 %v267
        %v406 = vunpack.c.h.b16 %v267
        %v407 = vunpack.c.l.b16 %v268
        %v408 = vunpack.c.h.b16 %v268
        %v409 = vunpack.c.l.b16 %v269
        %v410 = vunpack.c.h.b16 %v269
        %v411 = vunpack.c.l.b16 %v270
        %v412 = vunpack.c.h.b16 %v270
        %v413 = vpack.c.b16 %v365, %v361
        %v414 = vpack.c.b16 %v366, %v362
        %v415 = vpack.c.b16 %v367, %v363
        %v416 = vpack.c.b16 %v368, %v364
        %v417 = vpack.c.b16 %v373, %v369
        %v418 = vpack.c.b16 %v374, %v370
        %v419 = vpack.c.b16 %v375, %v371
        %v420 = vpack.c.b16 %v376, %v372
        %v421 = vpack.c.b16 %v381, %v377
        %v422 = vpack.c.b16 %v382, %v378
        %v423 = vpack.c.b16 %v383, %v379
        %v424 = vpack.c.b16 %v384, %v380
        %v425 = vpack.c.b16 %v389, %v385
        %v426 = vpack.c.b16 %v390, %v386
        %v427 = vpack.c.b16 %v391, %v387
        %v428 = vpack.c.b16 %v392, %v388
        %v429 = vpack.c.b16 %v397, %v393
        %v430 = vpack.c.b16 %v398, %v394
        %v431 = vpack.c.b16 %v399, %v395
        %v432 = vpack.c.b16 %v400, %v396
        %v433 = vpack.c.b16 %v405, %v401
        %v434 = vpack.c.b16 %v406, %v402
        %v435 = vpack.c.b16 %v407, %v403
        %v436 = vpack.c.b16 %v408, %v404
        %v437 = vpack.c.b16 %v409, %v409
        %v438 = vpack.c.b16 %v410, %v410
        %v439 = vpack.c.b16 %v411, %v411
        %v440 = vpack.c.b16 %v412, %v412
        %v533 = vunpack.c.l.b16 %v271
        %v534 = vunpack.c.l.b16 %v272
        %v535 = vunpack.c.l.b16 %v273
        %v536 = vunpack.c.l.b16 %v274
        %v537 = vunpack.c.l.b16 %v275
        %v538 = vunpack.c.l.b16 %v276
        %v539 = vunpack.c.l.b16 %v277
        %v540 = vunpack.c.l.b16 %v278
        %v541 = vunpack.c.l.b16 %v279
        %v542 = vunpack.c.l.b16 %v280
        %v543 = vunpack.c.l.b16 %v281
        %v544 = vunpack.c.l.b16 %v282
        %v545 = vunpack.c.l.b16 %v283
        %v546 = vunpack.c.l.b16 %v284
        %v547 = vunpack.c.l.b16 %v285
        %v548 = vunpack.c.l.b16 %v286
        %v549 = vunpack.c.l.b16 %v287
        %v550 = vunpack.c.l.b16 %v288
        %v551 = vunpack.c.l.b16 %v289
        %v552 = vunpack.c.l.b16 %v290
        %v553 = vunpack.c.l.b16 %v291
        %v554 = vunpack.c.l.b16 %v292
        %v555 = vunpack.c.l.b16 %v293
        %v556 = vunpack.c.l.b16 %v294
        %v557 = vunpack.c.l.b16 %v295
        %v558 = vunpack.c.l.b16 %v296
        %v559 = vunpack.c.l.b16 %v297
        %v560 = vunpack.c.l.b16 %v298
        %v561 = vunpack.c.l.b16 %v299
        %v562 = vunpack.c.l.b16 %v300
        %v563 = vunpack.c.l.b16 %v301
        %v564 = vunpack.c.l.b16 %v302
        %v565 = vunpack.c.l.b16 %v303
        %v566 = vunpack.c.l.b16 %v304
        %v567 = vunpack.c.l.b16 %v305
        %v568 = vunpack.c.l.b16 %v306
        %v569 = vunpack.c.l.b16 %v307
        %v570 = vunpack.c.l.b16 %v308
        %v571 = vunpack.c.l.b16 %v309
        %v572 = vunpack.c.l.b16 %v310
        %v573 = vunpack.c.l.b16 %v311
        %v574 = vunpack.c.l.b16 %v312
        %v575 = vunpack.c.l.b16 %v313
        %v576 = vunpack.c.l.b16 %v314
        %v577 = vunpack.c.l.b16 %v315
        %v578 = vunpack.c.l.b16 %v316
        %v579 = vunpack.c.l.b16 %v317
        %v580 = vunpack.c.l.b16 %v318
        %v581 = vunpack.c.l.b16 %v319
        %v582 = vunpack.c.l.b16 %v320
        %v583 = vunpack.c.l.b16 %v321
        %v584 = vunpack.c.l.b16 %v322
        %v585 = vunpack.c.l.b16 %v323
        %v586 = vunpack.c.l.b16 %v324
        %v587 = vunpack.c.l.b16 %v325
        %v588 = vunpack.c.l.b16 %v326
        %v589 = vunpack.c.l.b16 %v327
        %v590 = vunpack.c.l.b16 %v328
        %v591 = vunpack.c.l.b16 %v329
        %v592 = vunpack.c.l.b16 %v330
        %v593 = vunpack.c.l.b16 %v331
        %v594 = vunpack.c.l.b16 %v332
        %v595 = vunpack.c.l.b16 %v333
        %v596 = vunpack.c.l.b16 %v334
        %v597 = vpack.c.b16 %v534, %v533
        %v598 = vpack.c.b16 %v536, %v535
        %v599 = vpack.c.b16 %v538, %v537
        %v600 = vpack.c.b16 %v540, %v539
        %v601 = vpack.c.b16 %v542, %v541
        %v602 = vpack.c.b16 %v544, %v543
        %v603 = vpack.c.b16 %v546, %v545
        %v604 = vpack.c.b16 %v548, %v547
        %v605 = vpack.c.b16 %v550, %v549
        %v606 = vpack.c.b16 %v552, %v551
        %v607 = vpack.c.b16 %v554, %v553
        %v608 = vpack.c.b16 %v556, %v555
        %v609 = vpack.c.b16 %v558, %v557
        %v610 = vpack.c.b16 %v560, %v559
        %v611 = vpack.c.b16 %v562, %v561
        %v612 = vpack.c.b16 %v564, %v563
        %v613 = vpack.c.b16 %v566, %v565
        %v614 = vpack.c.b16 %v568, %v567
        %v615 = vpack.c.b16 %v570, %v569
        %v616 = vpack.c.b16 %v572, %v571
        %v617 = vpack.c.b16 %v574, %v573
        %v618 = vpack.c.b16 %v576, %v575
        %v619 = vpack.c.b16 %v578, %v577
        %v620 = vpack.c.b16 %v580, %v579
        %v621 = vpack.c.b16 %v582, %v581
        %v622 = vpack.c.b16 %v584, %v583
        %v623 = vpack.c.b16 %v586, %v585
        %v624 = vpack.c.b16 %v588, %v587
        %v625 = vpack.c.b16 %v590, %v589
        %v626 = vpack.c.b16 %v592, %v591
        %v627 = vpack.c.b16 %v594, %v593
        %v628 = vpack.c.b16 %v596, %v595
        %661 = vmatprep.subr.bf16.mxu0 0
        %662 = vmatpush1.bf16.msra.mxu0 %v597
        %663 = vmatprep.subr.bf16.mxu0 0
        %664 = vmatpush1.bf16.msra.mxu0 %v598
        %665 = vmatprep.subr.bf16.mxu0 0
        %666 = vmatpush1.bf16.msra.mxu0 %v599
        %667 = vmatprep.subr.bf16.mxu0 0
        %668 = vmatpush1.bf16.msra.mxu0 %v600
        %669 = vmatprep.subr.bf16.mxu0 0
        %670 = vmatpush1.bf16.msra.mxu0 %v601
        %671 = vmatprep.subr.bf16.mxu0 0
        %672 = vmatpush1.bf16.msra.mxu0 %v602
        %673 = vmatprep.subr.bf16.mxu0 0
        %674 = vmatpush1.bf16.msra.mxu0 %v603
        %675 = vmatprep.subr.bf16.mxu0 0
        %676 = vmatpush1.bf16.msra.mxu0 %v604
        %677 = vmatprep.subr.bf16.mxu0 0
        %678 = vmatpush1.bf16.msra.mxu0 %v605
        %679 = vmatprep.subr.bf16.mxu0 0
        %680 = vmatpush1.bf16.msra.mxu0 %v606
        %681 = vmatprep.subr.bf16.mxu0 0
        %682 = vmatpush1.bf16.msra.mxu0 %v607
        %683 = vmatprep.subr.bf16.mxu0 0
        %684 = vmatpush1.bf16.msra.mxu0 %v608
        %685 = vmatprep.subr.bf16.mxu0 0
        %686 = vmatpush1.bf16.msra.mxu0 %v609
        %687 = vmatprep.subr.bf16.mxu0 0
        %688 = vmatpush1.bf16.msra.mxu0 %v610
        %689 = vmatprep.subr.bf16.mxu0 0
        %690 = vmatpush1.bf16.msra.mxu0 %v611
        %691 = vmatprep.subr.bf16.mxu0 0
        %692 = vmatpush1.bf16.msra.mxu0 %v612
        %693 = vmatprep.mubr.bf16.mxu0 %v414
        %694 = vmatmul.mubr.bf16.gmra.mrb[0].mxu0 %v413
        %v695 = vpop.f32.mrb[0].mxu0
        %v696 = vadd.f32 0.0, %v695
        %v697 = vpop.f32.mrb[0].mxu0
        %v698 = vpop.f32.mrb[0].mxu0
        %v699 = vadd.f32 0.0, %v698
        %v700 = vpop.f32.mrb[0].mxu0
        %701 = vmatprep.mubr.bf16.mxu0 %v418
        %702 = vmatmul.mubr.bf16.gmra.mrb[0].mxu0 %v417
        %v703 = vpop.f32.mrb[0].mxu0
        %v704 = vadd.f32 0.0, %v703
        %v705 = vpop.f32.mrb[0].mxu0
        %v706 = vpop.f32.mrb[0].mxu0
        %v707 = vadd.f32 0.0, %v706
        %v708 = vpop.f32.mrb[0].mxu0
        %709 = vmatprep.mubr.bf16.mxu0 %v422
        %710 = vmatmul.mubr.bf16.gmra.mrb[0].mxu0 %v421
        %v711 = vpop.f32.mrb[0].mxu0
        %v712 = vadd.f32 0.0, %v711
        %v713 = vpop.f32.mrb[0].mxu0
        %v714 = vpop.f32.mrb[0].mxu0
        %v715 = vadd.f32 0.0, %v714
        %v716 = vpop.f32.mrb[0].mxu0
        %717 = vmatprep.mubr.bf16.mxu0 %v426
        %718 = vmatmul.mubr.bf16.gmra.mrb[0].mxu0 %v425
        %v719 = vpop.f32.mrb[0].mxu0
        %v720 = vadd.f32 0.0, %v719
        %v721 = vpop.f32.mrb[0].mxu0
        %v722 = vpop.f32.mrb[0].mxu0
        %v723 = vadd.f32 0.0, %v722
        %v724 = vpop.f32.mrb[0].mxu0
        %725 = vmatprep.mubr.bf16.mxu0 %v430
        %726 = vmatmul.mubr.bf16.gmra.mrb[0].mxu0 %v429
        %v727 = vpop.f32.mrb[0].mxu0
        %v728 = vadd.f32 0.0, %v727
        %v729 = vpop.f32.mrb[0].mxu0
        %v730 = vpop.f32.mrb[0].mxu0
        %v731 = vadd.f32 0.0, %v730
        %v732 = vpop.f32.mrb[0].mxu0
        %733 = vmatprep.mubr.bf16.mxu0 %v434
        %734 = vmatmul.mubr.bf16.gmra.mrb[0].mxu0 %v433
        %v735 = vpop.f32.mrb[0].mxu0
        %v736 = vadd.f32 0.0, %v735
        %v737 = vpop.f32.mrb[0].mxu0
        %v738 = vpop.f32.mrb[0].mxu0
        %v739 = vadd.f32 0.0, %v738
        %v740 = vpop.f32.mrb[0].mxu0
        %741 = vmatprep.mubr.bf16.mxu0 %v438
        %742 = vmatmul.mubr.bf16.gmra.mrb[0].mxu0 %v437
        %v743 = vpop.f32.mrb[0].mxu0
        %v744 = vadd.f32 0.0, %v743
        %v745 = vpop.f32.mrb[0].mxu0
        %v746 = vpop.f32.mrb[0].mxu0
        %v747 = vpop.f32.mrb[0].mxu0
        %748 = vdwg.mxu0
        %749 = vmatprep.subr.bf16.mxu0 0
        %750 = vmatpush1.bf16.msra.mxu0 %v613
        %751 = vmatprep.subr.bf16.mxu0 0
        %752 = vmatpush1.bf16.msra.mxu0 %v614
        %753 = vmatprep.subr.bf16.mxu0 0
        %754 = vmatpush1.bf16.msra.mxu0 %v615
        %755 = vmatprep.subr.bf16.mxu0 0
        %756 = vmatpush1.bf16.msra.mxu0 %v616
        %757 = vmatprep.subr.bf16.mxu0 0
        %758 = vmatpush1.bf16.msra.mxu0 %v617
        %759 = vmatprep.subr.bf16.mxu0 0
        %760 = vmatpush1.bf16.msra.mxu0 %v618
        %761 = vmatprep.subr.bf16.mxu0 0
        %762 = vmatpush1.bf16.msra.mxu0 %v619
        %763 = vmatprep.subr.bf16.mxu0 0
        %764 = vmatpush1.bf16.msra.mxu0 %v620
        %765 = vmatprep.subr.bf16.mxu0 0
        %766 = vmatpush1.bf16.msra.mxu0 %v621
        %767 = vmatprep.subr.bf16.mxu0 0
        %768 = vmatpush1.bf16.msra.mxu0 %v622
        %769 = vmatprep.subr.bf16.mxu0 0
        %770 = vmatpush1.bf16.msra.mxu0 %v623
        %771 = vmatprep.subr.bf16.mxu0 0
        %772 = vmatpush1.bf16.msra.mxu0 %v624
        %773 = vmatprep.subr.bf16.mxu0 0
        %774 = vmatpush1.bf16.msra.mxu0 %v625
        %775 = vmatprep.subr.bf16.mxu0 0
        %776 = vmatpush1.bf16.msra.mxu0 %v626
        %777 = vmatprep.subr.bf16.mxu0 0
        %778 = vmatpush1.bf16.msra.mxu0 %v627
        %779 = vmatprep.subr.bf16.mxu0 0
        %780 = vmatpush1.bf16.msra.mxu0 %v628
        %781 = vmatprep.mubr.bf16.mxu0 %v416
        %782 = vmatmul.mubr.bf16.gmra.mrb[0].mxu0 %v415
        %v783 = vpop.f32.mrb[0].mxu0
        %v784 = vadd.f32 %v696, %v783
        %v785 = vpop.f32.mrb[0].mxu0
        %v786 = vpop.f32.mrb[0].mxu0
        %v787 = vadd.f32 %v699, %v786
        %v788 = vpop.f32.mrb[0].mxu0
        %789 = vmatprep.mubr.bf16.mxu0 %v420
        %790 = vmatmul.mubr.bf16.gmra.mrb[0].mxu0 %v419
        %v791 = vpop.f32.mrb[0].mxu0
        %v792 = vadd.f32 %v704, %v791
        %v793 = vpop.f32.mrb[0].mxu0
        %v794 = vpop.f32.mrb[0].mxu0
        %v795 = vadd.f32 %v707, %v794
        %v796 = vpop.f32.mrb[0].mxu0
        %797 = vmatprep.mubr.bf16.mxu0 %v424
        %798 = vmatmul.mubr.bf16.gmra.mrb[0].mxu0 %v423
        %v799 = vpop.f32.mrb[0].mxu0
        %v800 = vadd.f32 %v712, %v799
        %v801 = vpop.f32.mrb[0].mxu0
        %v802 = vpop.f32.mrb[0].mxu0
        %v803 = vadd.f32 %v715, %v802
        %v804 = vpop.f32.mrb[0].mxu0
        %805 = vmatprep.mubr.bf16.mxu0 %v428
        %806 = vmatmul.mubr.bf16.gmra.mrb[0].mxu0 %v427
        %v807 = vpop.f32.mrb[0].mxu0
        %v808 = vadd.f32 %v720, %v807
        %v809 = vpop.f32.mrb[0].mxu0
        %v810 = vpop.f32.mrb[0].mxu0
        %v811 = vadd.f32 %v723, %v810
        %v812 = vpop.f32.mrb[0].mxu0
        %813 = vmatprep.mubr.bf16.mxu0 %v432
        %814 = vmatmul.mubr.bf16.gmra.mrb[0].mxu0 %v431
        %v815 = vpop.f32.mrb[0].mxu0
        %v816 = vadd.f32 %v728, %v815
        %v817 = vpop.f32.mrb[0].mxu0
        %v818 = vpop.f32.mrb[0].mxu0
        %v819 = vadd.f32 %v731, %v818
        %v820 = vpop.f32.mrb[0].mxu0
        %821 = vmatprep.mubr.bf16.mxu0 %v436
        %822 = vmatmul.mubr.bf16.gmra.mrb[0].mxu0 %v435
        %v823 = vpop.f32.mrb[0].mxu0
        %v824 = vadd.f32 %v736, %v823
        %v825 = vpop.f32.mrb[0].mxu0
        %v826 = vpop.f32.mrb[0].mxu0
        %v827 = vadd.f32 %v739, %v826
        %v828 = vpop.f32.mrb[0].mxu0
        %829 = vmatprep.mubr.bf16.mxu0 %v440
        %830 = vmatmul.mubr.bf16.gmra.mrb[0].mxu0 %v439
        %v831 = vpop.f32.mrb[0].mxu0
        %v832 = vadd.f32 %v744, %v831
        %v833 = vpop.f32.mrb[0].mxu0
        %v834 = vpop.f32.mrb[0].mxu0
        %v835 = vpop.f32.mrb[0].mxu0
        %836 = vdwg.mxu0
        %s837 = smul.u32 %s20, 104
        %s838 = scalar_lea.vmem [#allocation2], %s837
        %839 = vst [vmem:[%s838] sm:$0xff] %v784
        %840 = vst [vmem:[%s838 + $0x8] sm:$0xff] %v787
        %841 = vst [vmem:[%s838 + $0x10] sm:$0xff] %v792
        %842 = vst [vmem:[%s838 + $0x18] sm:$0xff] %v795
        %843 = vst [vmem:[%s838 + $0x20] sm:$0xff] %v800
        %844 = vst [vmem:[%s838 + $0x28] sm:$0xff] %v803
        %845 = vst [vmem:[%s838 + $0x30] sm:$0xff] %v808
        %846 = vst [vmem:[%s838 + $0x38] sm:$0xff] %v811
        %847 = vst [vmem:[%s838 + $0x40] sm:$0xff] %v816
        %848 = vst [vmem:[%s838 + $0x48] sm:$0xff] %v819
        %849 = vst [vmem:[%s838 + $0x50] sm:$0xff] %v824
        %850 = vst [vmem:[%s838 + $0x58] sm:$0xff] %v827
        %851 = vst [vmem:[%s838 + $0x60] sm:$0x3] %v832
        %v852 = vlaneseq
        %v853 = vshrl.u32 %v852, 7
        %v854 = vadd.s32 %v853, 8
        %v855 = vadd.s32 %v853, 16
        %v856 = vadd.s32 %v853, 24
        %v857 = vadd.s32 %v853, 32
        %v858 = vadd.s32 %v853, 40
        %v859 = vadd.s32 %v853, 48
        %v860 = vadd.s32 %v853, 56
        %v861 = vadd.s32 %v853, 64
        %v862 = vadd.s32 %v853, 72
        %v863 = vadd.s32 %v853, 80
        %v864 = vadd.s32 %v853, 88
        %v865 = vadd.s32 %v853, 96
        %s866 = smul.u32 %s20, 98
        %v867 = vstv %s866
        %v868 = vadd.s32 %v853, %v867
        %v869 = vadd.s32 %v854, %v867
        %v870 = vadd.s32 %v855, %v867
        %v871 = vadd.s32 %v856, %v867
        %v872 = vadd.s32 %v857, %v867
        %v873 = vadd.s32 %v858, %v867
        %v874 = vadd.s32 %v859, %v867
        %v875 = vadd.s32 %v860, %v867
        %v876 = vadd.s32 %v861, %v867
        %v877 = vadd.s32 %v862, %v867
        %v878 = vadd.s32 %v863, %v867
        %v879 = vadd.s32 %v864, %v867
        %v880 = vadd.s32 %v865, %v867
        %vm881 = vcmp.lt.s32.totalorder %v868, 98
        %vm882 = vcmp.lt.s32.totalorder %v869, 98
        %vm883 = vcmp.lt.s32.totalorder %v870, 98
        %vm884 = vcmp.lt.s32.totalorder %v871, 98
        %vm885 = vcmp.lt.s32.totalorder %v872, 98
        %vm886 = vcmp.lt.s32.totalorder %v873, 98
        %vm887 = vcmp.lt.s32.totalorder %v874, 98
        %vm888 = vcmp.lt.s32.totalorder %v875, 98
        %vm889 = vcmp.lt.s32.totalorder %v876, 98
        %vm890 = vcmp.lt.s32.totalorder %v877, 98
        %vm891 = vcmp.lt.s32.totalorder %v878, 98
        %vm892 = vcmp.lt.s32.totalorder %v879, 98
        %vm893 = vcmp.lt.s32.totalorder %v880, 98
        %v894 = vsel %vm881, 1, 0
        %v895 = vsel %vm882, 1, 0
        %v896 = vsel %vm883, 1, 0
        %v897 = vsel %vm884, 1, 0
        %v898 = vsel %vm885, 1, 0
        %v899 = vsel %vm886, 1, 0
        %v900 = vsel %vm887, 1, 0
        %v901 = vsel %vm888, 1, 0
        %v902 = vsel %vm889, 1, 0
        %v903 = vsel %vm890, 1, 0
        %v904 = vsel %vm891, 1, 0
        %v905 = vsel %vm892, 1, 0
        %v906 = vsel %vm893, 1, 0
        %vm907 = vcmp.eq.s32.totalorder %v894, 1
        %vm908 = vcmp.eq.s32.totalorder %v895, 1
        %vm909 = vcmp.eq.s32.totalorder %v896, 1
        %vm910 = vcmp.eq.s32.totalorder %v897, 1
        %vm911 = vcmp.eq.s32.totalorder %v898, 1
        %vm912 = vcmp.eq.s32.totalorder %v899, 1
        %vm913 = vcmp.eq.s32.totalorder %v900, 1
        %vm914 = vcmp.eq.s32.totalorder %v901, 1
        %vm915 = vcmp.eq.s32.totalorder %v902, 1
        %vm916 = vcmp.eq.s32.totalorder %v903, 1
        %vm917 = vcmp.eq.s32.totalorder %v904, 1
        %vm918 = vcmp.eq.s32.totalorder %v905, 1
        %vm919 = vcmp.eq.s32.totalorder %v906, 1
        %v920 = vsel %vm907, %v784, 0.0
        %v921 = vsel %vm908, %v787, 0.0
        %v922 = vsel %vm909, %v792, 0.0
        %v923 = vsel %vm910, %v795, 0.0
        %v924 = vsel %vm911, %v800, 0.0
        %v925 = vsel %vm912, %v803, 0.0
        %v926 = vsel %vm913, %v808, 0.0
        %v927 = vsel %vm914, %v811, 0.0
        %v928 = vsel %vm915, %v816, 0.0
        %v929 = vsel %vm916, %v819, 0.0
        %v930 = vsel %vm917, %v824, 0.0
        %v931 = vsel %vm918, %v827, 0.0
        %v932 = vsel %vm919, %v832, 0.0
        %v933 = vld [vmem:[#allocation3] sm:$0x1]
        %v934 = vadd.f32 %v920, %v921
        %v935 = vadd.f32 %v934, %v922
        %v936 = vadd.f32 %v935, %v923
        %v937 = vadd.f32 %v936, %v924
        %v938 = vadd.f32 %v937, %v925
        %v939 = vadd.f32 %v938, %v926
        %v940 = vadd.f32 %v939, %v927
        %v941 = vadd.f32 %v940, %v928
        %v942 = vadd.f32 %v941, %v929
        %v943 = vadd.f32 %v942, %v930
        %v944 = vadd.f32 %v943, %v931
        %vm945 = vcmask 1041408
        %v946 = vsel %vm945, %v932, 0.0
        %v947 = vadd.f32 %v944, %v946
        %v948 = vrot.slane %v947, 4
        %v949 = vadd.f32 %v947, %v948
        %v950 = vrot.slane %v949, 2
        %v951 = vadd.f32 %v949, %v950
        %v952 = vrot.slane %v951, 1
        %v953 = vadd.f32 %v951, %v952
        %v954 = vadd.f32 %v933, %v953
        %955 = vst [vmem:[#allocation3] sm:$0x1] %v954
        %v956 = vld [vmem:[#allocation3 + $0x1] sm:$0x1]
        %v957 = vmul.f32 %v920, %v920
        %v958 = vmul.f32 %v921, %v921
        %v959 = vmul.f32 %v922, %v922
        %v960 = vmul.f32 %v923, %v923
        %v961 = vmul.f32 %v924, %v924
        %v962 = vmul.f32 %v925, %v925
        %v963 = vmul.f32 %v926, %v926
        %v964 = vmul.f32 %v927, %v927
        %v965 = vmul.f32 %v928, %v928
        %v966 = vmul.f32 %v929, %v929
        %v967 = vmul.f32 %v930, %v930
        %v968 = vmul.f32 %v931, %v931
        %v969 = vmul.f32 %v932, %v932
        %v970 = vadd.f32 %v957, %v958
        %v971 = vadd.f32 %v970, %v959
        %v972 = vadd.f32 %v971, %v960
        %v973 = vadd.f32 %v972, %v961
        %v974 = vadd.f32 %v973, %v962
        %v975 = vadd.f32 %v974, %v963
        %v976 = vadd.f32 %v975, %v964
        %v977 = vadd.f32 %v976, %v965
        %v978 = vadd.f32 %v977, %v966
        %v979 = vadd.f32 %v978, %v967
        %v980 = vadd.f32 %v979, %v968
        %v981 = vsel %vm945, %v969, 0.0
        %v982 = vadd.f32 %v980, %v981
        %v983 = vrot.slane %v982, 4
        %v984 = vadd.f32 %v982, %v983
        %v985 = vrot.slane %v984, 2
        %v986 = vadd.f32 %v984, %v985
        %v987 = vrot.slane %v986, 1
        %v988 = vadd.f32 %v986, %v987
        %v989 = vadd.f32 %v956, %v988
        %990 = vst [vmem:[#allocation3 + $0x1] sm:$0x1] %v989
      $region40: #{patch_discriminator.8} parent=35 // pred_fallthru
        _
      %p991 = scmp.eq.s32.totalorder %s19, 1
      // Predicated region
      $region45: #{patch_discriminator.8} parent=35 // pred_check
        %p992 = pneg %p991
      $region46: #{patch_discriminator.8} parent=35 // pred_check_branch
        %994 = sbr.rel (%p992) target = $region48
      $region47: #{patch_discriminator.8} parent=35 // pred_region
        %p995 = scmp.eq.s32.totalorder %s20, 0
        // Predicated region
        $region49: #{patch_discriminator.8} parent=47 // pred_check
          %p996 = pneg %p995
        $region50: #{patch_discriminator.8} parent=47 // pred_check_branch
          %998 = sbr.rel (%p996) target = $region52
        $region51: #{patch_discriminator.8} parent=47 // pred_region
          %v999 = vld [vmem:[#allocation3] sm:$0x1]
          %v1000 = vmul.f32 %v999, 0.010204081
          %v1001 = vld [vmem:[#allocation3 + $0x1] sm:$0x1]
          %v1002 = vmul.f32 %v1001, 0.010204081
          %v1003 = vmul.f32 %v1000, %v1000
          %v1004 = vsub.f32 %v1002, %v1003
          %v1005 = vmax.f32 %v1004, 0.0
          %v1006 = vld [vmem:[%s2] sm:$0x1]
          %v1007 = vadd.f32 %v1005, 1e-05
          %v1008 = vrsqrt.pop %v1007
          %v1009 = vmul.f32 %v1006, %v1008
          %1010 = vst [vmem:[#allocation4] sm:$0x1] %v1009
          %v1011 = vld [vmem:[%s3] sm:$0x1]
          %v1012 = vmul.f32 %v1000, %v1009
          %v1013 = vsub.f32 %v1011, %v1012
          %1014 = vst [vmem:[#allocation4 + $0x1] sm:$0x1] %v1013
        $region52: #{patch_discriminator.8} parent=47 // pred_fallthru
          _
        %s1015 = smul.u32 %s20, 104
        %s1016 = scalar_lea.vmem [#allocation2], %s1015
        %v1017 = vld [vmem:[%s1016] sm:$0xff]
        %v1018 = vld [vmem:[%s1016 + $0x8] sm:$0xff]
        %v1019 = vld [vmem:[%s1016 + $0x10] sm:$0xff]
        %v1020 = vld [vmem:[%s1016 + $0x18] sm:$0xff]
        %v1021 = vld [vmem:[%s1016 + $0x20] sm:$0xff]
        %v1022 = vld [vmem:[%s1016 + $0x28] sm:$0xff]
        %v1023 = vld [vmem:[%s1016 + $0x30] sm:$0xff]
        %v1024 = vld [vmem:[%s1016 + $0x38] sm:$0xff]
        %v1025 = vld [vmem:[%s1016 + $0x40] sm:$0xff]
        %v1026 = vld [vmem:[%s1016 + $0x48] sm:$0xff]
        %v1027 = vld [vmem:[%s1016 + $0x50] sm:$0xff]
        %v1028 = vld [vmem:[%s1016 + $0x58] sm:$0xff]
        %v1029 = vld [vmem:[%s1016 + $0x60] sm:$0x3]
        %v1030 = vld [vmem:[#allocation4] sm:$0x1]
        %v1031 = vlaneseq
        %v1032 = vshrl.u32 %v1031, 7
        %v1033 = vsub.s32 0, %v1032
        %v1034 = vrot.slane %v1030, %v1033
        %v1035 = vmul.f32 %v1017, %v1034
        %v1036 = vmul.f32 %v1018, %v1034
        %v1037 = vmul.f32 %v1019, %v1034
        %v1038 = vmul.f32 %v1020, %v1034
        %v1039 = vmul.f32 %v1021, %v1034
        %v1040 = vmul.f32 %v1022, %v1034
        %v1041 = vmul.f32 %v1023, %v1034
        %v1042 = vmul.f32 %v1024, %v1034
        %v1043 = vmul.f32 %v1025, %v1034
        %v1044 = vmul.f32 %v1026, %v1034
        %v1045 = vmul.f32 %v1027, %v1034
        %v1046 = vmul.f32 %v1028, %v1034
        %v1047 = vmul.f32 %v1029, %v1034
        %v1048 = vld [vmem:[#allocation4 + $0x1] sm:$0x1]
        %v1049 = vlaneseq
        %v1050 = vshrl.u32 %v1049, 7
        %v1051 = vsub.s32 0, %v1050
        %v1052 = vrot.slane %v1048, %v1051
        %v1053 = vadd.f32 %v1035, %v1052
        %v1054 = vadd.f32 %v1036, %v1052
        %v1055 = vadd.f32 %v1037, %v1052
        %v1056 = vadd.f32 %v1038, %v1052
        %v1057 = vadd.f32 %v1039, %v1052
        %v1058 = vadd.f32 %v1040, %v1052
        %v1059 = vadd.f32 %v1041, %v1052
        %v1060 = vadd.f32 %v1042, %v1052
        %v1061 = vadd.f32 %v1043, %v1052
        %v1062 = vadd.f32 %v1044, %v1052
        %v1063 = vadd.f32 %v1045, %v1052
        %v1064 = vadd.f32 %v1046, %v1052
        %v1065 = vadd.f32 %v1047, %v1052
        %vm1066 = vcmp.ge.f32.partialorder %v1053, 0.0
        %vm1067 = vcmp.ge.f32.partialorder %v1054, 0.0
        %vm1068 = vcmp.ge.f32.partialorder %v1055, 0.0
        %vm1069 = vcmp.ge.f32.partialorder %v1056, 0.0
        %vm1070 = vcmp.ge.f32.partialorder %v1057, 0.0
        %vm1071 = vcmp.ge.f32.partialorder %v1058, 0.0
        %vm1072 = vcmp.ge.f32.partialorder %v1059, 0.0
        %vm1073 = vcmp.ge.f32.partialorder %v1060, 0.0
        %vm1074 = vcmp.ge.f32.partialorder %v1061, 0.0
        %vm1075 = vcmp.ge.f32.partialorder %v1062, 0.0
        %vm1076 = vcmp.ge.f32.partialorder %v1063, 0.0
        %vm1077 = vcmp.ge.f32.partialorder %v1064, 0.0
        %vm1078 = vcmp.ge.f32.partialorder %v1065, 0.0
        %v1079 = vmul.f32 %v1053, 0.2
        %v1080 = vmul.f32 %v1054, 0.2
        %v1081 = vmul.f32 %v1055, 0.2
        %v1082 = vmul.f32 %v1056, 0.2
        %v1083 = vmul.f32 %v1057, 0.2
        %v1084 = vmul.f32 %v1058, 0.2
        %v1085 = vmul.f32 %v1059, 0.2
        %v1086 = vmul.f32 %v1060, 0.2
        %v1087 = vmul.f32 %v1061, 0.2
        %v1088 = vmul.f32 %v1062, 0.2
        %v1089 = vmul.f32 %v1063, 0.2
        %v1090 = vmul.f32 %v1064, 0.2
        %v1091 = vmul.f32 %v1065, 0.2
        %v1092 = vsel %vm1066, %v1053, %v1079
        %v1093 = vsel %vm1067, %v1054, %v1080
        %v1094 = vsel %vm1068, %v1055, %v1081
        %v1095 = vsel %vm1069, %v1056, %v1082
        %v1096 = vsel %vm1070, %v1057, %v1083
        %v1097 = vsel %vm1071, %v1058, %v1084
        %v1098 = vsel %vm1072, %v1059, %v1085
        %v1099 = vsel %vm1073, %v1060, %v1086
        %v1100 = vsel %vm1074, %v1061, %v1087
        %v1101 = vsel %vm1075, %v1062, %v1088
        %v1102 = vsel %vm1076, %v1063, %v1089
        %v1103 = vsel %vm1077, %v1064, %v1090
        %v1104 = vsel %vm1078, %v1065, %v1091
        %v1105 = vpack.c.bf16 %v1093, %v1092
        %v1106 = vpack.c.bf16 %v1095, %v1094
        %v1107 = vpack.c.bf16 %v1097, %v1096
        %v1108 = vpack.c.bf16 %v1099, %v1098
        %v1109 = vpack.c.bf16 %v1101, %v1100
        %v1110 = vpack.c.bf16 %v1103, %v1102
        %v1111 = vpack.c.bf16 %v1104, %v1104
        %v1119 = vunpack.c.l.b16 %v1105
        %v1120 = vunpack.c.h.b16 %v1105
        %v1121 = vunpack.c.l.b16 %v1106
        %v1122 = vunpack.c.h.b16 %v1106
        %v1123 = vunpack.c.l.b16 %v1107
        %v1124 = vunpack.c.h.b16 %v1107
        %v1125 = vunpack.c.l.b16 %v1108
        %v1126 = vunpack.c.h.b16 %v1108
        %v1127 = vunpack.c.l.b16 %v1109
        %v1128 = vunpack.c.h.b16 %v1109
        %v1129 = vunpack.c.l.b16 %v1110
        %v1130 = vunpack.c.h.b16 %v1110
        %v1131 = vunpack.c.l.b16 %v1111
        %v1132 = vpack.c.b16 %v1119, %v1119
        %v1133 = vpack.c.b16 %v1120, %v1120
        %v1134 = vpack.c.b16 %v1121, %v1121
        %v1135 = vpack.c.b16 %v1122, %v1122
        %v1136 = vpack.c.b16 %v1123, %v1123
        %v1137 = vpack.c.b16 %v1124, %v1124
        %v1138 = vpack.c.b16 %v1125, %v1125
        %v1139 = vpack.c.b16 %v1126, %v1126
        %v1140 = vpack.c.b16 %v1127, %v1127
        %v1141 = vpack.c.b16 %v1128, %v1128
        %v1142 = vpack.c.b16 %v1129, %v1129
        %v1143 = vpack.c.b16 %v1130, %v1130
        %v1144 = vpack.c.b16 %v1131, %v1131
        %1158 = vst [vmem:[%s232] sm:$0xf] %v1132
        %1159 = vst [vmem:[%s232 + $0x4] sm:$0xf] %v1133
        %1160 = vst [vmem:[%s232 + $0x8] sm:$0xf] %v1134
        %1161 = vst [vmem:[%s232 + $0xc] sm:$0xf] %v1135
        %1162 = vst [vmem:[%s232 + $0x10] sm:$0xf] %v1136
        %1163 = vst [vmem:[%s232 + $0x14] sm:$0xf] %v1137
        %1164 = vst [vmem:[%s232 + $0x18] sm:$0xf] %v1138
        %1165 = vst [vmem:[%s232 + $0x1c] sm:$0xf] %v1139
        %1166 = vst [vmem:[%s232 + $0x20] sm:$0xf] %v1140
        %1167 = vst [vmem:[%s232 + $0x24] sm:$0xf] %v1141
        %1168 = vst [vmem:[%s232 + $0x28] sm:$0xf] %v1142
        %1169 = vst [vmem:[%s232 + $0x2c] sm:$0xf] %v1143
        %1170 = vst [vmem:[%s232 + $0x30] sm:$0x1] %v1144
      $region48: #{patch_discriminator.8} parent=35 // pred_fallthru
        _
      %s1171 = smul.u32 %s20, %s19
      %s1172 = smul.u32 13, %s1171
      %p1173 = scmp.lt.s32.totalorder %s1172, 12
      %s1174 = scalar_select %p1173, %s1172, 12
      %s1175 = smul.addr %s1174, 4
      %s1176 = scalar_lea.vmem %s4, %s1175
      // Predicated region
      $region53: #{patch_discriminator.8} parent=35 // pred_check
        %p1177 = pneg %p140
      $region54: #{patch_discriminator.8} parent=35 // pred_check_branch
        %1179 = sbr.rel (%p1177) target = $region56
      $region55: #{patch_discriminator.8} parent=35 // pred_region
        %s1180 = smul.u32 %s20, %s19
        %s1181 = smul.u32 13, %s1180
      $region56: #{patch_discriminator.8} parent=35 // pred_fallthru
        _
    $region36: #{patch_discriminator.8} parent=5 // pred_fallthru
      _
    %p1182 = scmp.le.s32.totalorder 2, %s10
    // Predicated region
    $region57: #{patch_discriminator.8} parent=5 // pred_check
      %p1183 = pneg %p1182
    $region58: #{patch_discriminator.8} parent=5 // pred_check_branch
      %1185 = sbr.rel (%p1183) target = $region60
    $region59: #{patch_discriminator.8} parent=5 // pred_region
      %s1186 = ssub.s32 %s10, 2
      // Predicated region
      $region61: #{patch_discriminator.8} parent=59 // pred_check
        %p1187 = pneg %p146
      $region62: #{patch_discriminator.8} parent=59 // pred_check_branch
        %1189 = sbr.rel (%p1187) target = $region64
      $region63: #{patch_discriminator.8} parent=59 // pred_region
        %s1190 = smul.u32 %s22, %s21
        %s1191 = smul.u32 13, %s1190
        %p1192 = scmp.lt.s32.totalorder %s1191, 12
        %s1193 = scalar_select %p1192, %s1191, 12
        %s1194 = smul.addr %s1193, 4
        %s1195 = scalar_lea.vmem %s4, %s1194
      $region64: #{patch_discriminator.8} parent=59 // pred_fallthru
        _
    $region60: #{patch_discriminator.8} parent=5 // pred_fallthru
      _
  $region6: #{patch_discriminator.8} parent=0 // loop_footer
    %s14 = sadd.s32 1, %s10
  $region7: #{patch_discriminator.8} parent=0 // loop_footer_branch
    %9 = sbr.rel target = $region3
  $region8: #{patch_discriminator.8} parent=0 // loop_exit
    _

// kernel: patch_discriminator.9
$region0: #{patch_discriminator.9}
  #allocation0 [shape = 'u32[]', space=smem, size = 0x4, offset = 0x4, fixed_abs, tag = 'smem constant byte address 0x4 - core index']
  #allocation1 [shape = 'u32[144,128]{1,0:T(1,128)}', space=vmem, size = 0x12000, scoped, tag = 'internal scratch']
  %s0 = inlined_call_operand.vmem [shape: bf16[72,1024], index: 0, kind: input, shape index: {}]
  %s1 = inlined_call_operand.vmem [shape: bf16[1024,128], index: 1, kind: input, shape index: {}]
  %s2 = inlined_call_operand.vmem [shape: f32[1,128], index: 2, kind: input, shape index: {}]
  %s3 = inlined_call_operand.vmem [shape: f32[72,128], index: 3, kind: output, shape index: {}]
  %s4 = sld [smem:[#allocation0]]
  $region93: #{patch_discriminator.9} parent=0
    _
  %s6 = ssub.s32 1, %s4
  %s7 = scalar_select 0, %s6, %s4
  $region1: #{patch_discriminator.9} parent=0
    #allocation2 [shape = 'u8[49152]{0}', space=vmem, size = 0xc000, scoped, tag = 'output window, operand 0']
    loop: start=0, step=1, limit=4
    $region2: #{patch_discriminator.9} parent=1 // loop_pre_header
      _
    $region3: #{patch_discriminator.9} parent=1 // loop_header
      %s9 = sphi 0, %s13
      %p10 = scmp.ge.s32.totalorder %s9, 4
      %s19 = sphi 0, %s21
      %s22 = sphi 0, %s19
      %s23 = sphi 0, %s22
      %s39 = sphi 0, %s23
      %s43 = sphi 0, %s43
      %s45 = sphi 0, %s43
      %s46 = sphi 0, %s45
      %s60 = sphi 0, %s46
      %s64 = sphi 0, %s64
      %s66 = sphi 0, %s64
      %s67 = sphi 0, %s66
      %s81 = sphi 0, %s67
      %s87 = sphi 0, %s89
      %s90 = sphi 0, %s87
      %s91 = sphi 0, %s90
      %s107 = sphi 0, %s91
    $region4: #{patch_discriminator.9} parent=1 // loop_header_branch
      %12 = sbr.rel (%p10) target = $region8
    $region5: #{patch_discriminator.9} parent=1 // loop_body
      %s14 = ssub.s32 %s9, 1
      %s15 = ssub.s32 %s9, 2
      %s16 = sadd.s32 %s9, 1
      %s17 = ssub.s32 %s9, %s16
      %p18 = scmp.eq.s32.totalorder %s17, 0
      %s20 = sadd.s32 %s19, 1
      %s21 = scalar_select %p18, %s19, %s20
      %p24 = pneg %p18
      %p25 = scmp.eq.s32.totalorder %s9, 1
      %p26 = por %p24, %p25
      %p27 = scmp.ne.s32.totalorder %s19, %s22
      %p28 = scmp.eq.s32.totalorder %s9, 0
      %p29 = por %p27, %p28
      %p30 = scmp.ne.s32.totalorder %s19, %s22
      %p31 = scmp.eq.s32.totalorder %s14, 1
      %p32 = por %p30, %p31
      %p33 = scmp.ne.s32.totalorder %s22, %s23
      %p34 = scmp.eq.s32.totalorder %s14, 0
      %p35 = por %p33, %p34
      %p36 = scmp.ne.s32.totalorder %s22, %s23
      %p37 = scmp.eq.s32.totalorder %s15, 1
      %p38 = por %p36, %p37
      %p40 = scmp.ne.s32.totalorder %s23, %s39
      %p41 = scmp.eq.s32.totalorder %s15, 0
      %p42 = por %p40, %p41
      %s44 = sadd.s32 %s43, 1
      %p47 = scmp.eq.s32.totalorder %s9, 1
      %p48 = scmp.ne.s32.totalorder %s43, %s45
      %p49 = scmp.eq.s32.totalorder %s9, 0
      %p50 = por %p48, %p49
      %p51 = scmp.ne.s32.totalorder %s43, %s45
      %p52 = scmp.eq.s32.totalorder %s14, 1
      %p53 = por %p51, %p52
      %p54 = scmp.ne.s32.totalorder %s45, %s46
      %p55 = scmp.eq.s32.totalorder %s14, 0
      %p56 = por %p54, %p55
      %p57 = scmp.ne.s32.totalorder %s45, %s46
      %p58 = scmp.eq.s32.totalorder %s15, 1
      %p59 = por %p57, %p58
      %p61 = scmp.ne.s32.totalorder %s46, %s60
      %p62 = scmp.eq.s32.totalorder %s15, 0
      %p63 = por %p61, %p62
      %s65 = sadd.s32 %s64, 1
      %p68 = scmp.eq.s32.totalorder %s9, 1
      %p69 = scmp.ne.s32.totalorder %s64, %s66
      %p70 = scmp.eq.s32.totalorder %s9, 0
      %p71 = por %p69, %p70
      %p72 = scmp.ne.s32.totalorder %s64, %s66
      %p73 = scmp.eq.s32.totalorder %s14, 1
      %p74 = por %p72, %p73
      %p75 = scmp.ne.s32.totalorder %s66, %s67
      %p76 = scmp.eq.s32.totalorder %s14, 0
      %p77 = por %p75, %p76
      %p78 = scmp.ne.s32.totalorder %s66, %s67
      %p79 = scmp.eq.s32.totalorder %s15, 1
      %p80 = por %p78, %p79
      %p82 = scmp.ne.s32.totalorder %s67, %s81
      %p83 = scmp.eq.s32.totalorder %s15, 0
      %p84 = por %p82, %p83
      %s85 = ssub.s32 %s9, %s16
      %p86 = scmp.eq.s32.totalorder %s85, 0
      %s88 = sadd.s32 %s87, 1
      %s89 = scalar_select %p86, %s87, %s88
      %p92 = pneg %p86
      %p93 = scmp.eq.s32.totalorder %s9, 1
      %p94 = por %p92, %p93
      %p95 = scmp.ne.s32.totalorder %s87, %s90
      %p96 = scmp.eq.s32.totalorder %s9, 0
      %p97 = por %p95, %p96
      %p98 = scmp.ne.s32.totalorder %s87, %s90
      %p99 = scmp.eq.s32.totalorder %s14, 1
      %p100 = por %p98, %p99
      %p101 = scmp.ne.s32.totalorder %s90, %s91
      %p102 = scmp.eq.s32.totalorder %s14, 0
      %p103 = por %p101, %p102
      %p104 = scmp.ne.s32.totalorder %s90, %s91
      %p105 = scmp.eq.s32.totalorder %s15, 1
      %p106 = por %p104, %p105
      %p108 = scmp.ne.s32.totalorder %s91, %s107
      %p109 = scmp.eq.s32.totalorder %s15, 0
      %p110 = por %p108, %p109
      %p111 = scmp.le.s32.totalorder 1, %s9
      %p112 = scmp.lt.s32.totalorder %s9, 3
      %p113 = pnand %p111, %p112
      %p114 = pneg %p113
      // Predicated region
      $region9: #{patch_discriminator.9} parent=5 // pred_check
        _
      $region10: #{patch_discriminator.9} parent=5 // pred_check_branch
        %116 = sbr.rel (%p113) target = $region12
      $region11: #{patch_discriminator.9} parent=5 // pred_region
        %s117 = ssub.s32 %s9, 1
        // Predicated region
        $region13: #{patch_discriminator.9} parent=11 // pred_check
          %p118 = pneg %p56
        $region14: #{patch_discriminator.9} parent=11 // pred_check_branch
          %120 = sbr.rel (%p118) target = $region16
        $region15: #{patch_discriminator.9} parent=11 // pred_region
          _
        $region16: #{patch_discriminator.9} parent=11 // pred_fallthru
          _
        // Predicated region
        $region17: #{patch_discriminator.9} parent=11 // pred_check
          %p121 = pneg %p77
        $region18: #{patch_discriminator.9} parent=11 // pred_check_branch
          %123 = sbr.rel (%p121) target = $region20
        $region19: #{patch_discriminator.9} parent=11 // pred_region
          _
        $region20: #{patch_discriminator.9} parent=11 // pred_fallthru
          _
      $region12: #{patch_discriminator.9} parent=5 // pred_fallthru
        _
      %p124 = scmp.lt.s32.totalorder %s9, 2
      // Predicated region
      $region21: #{patch_discriminator.9} parent=5 // pred_check
        %p125 = pneg %p124
      $region22: #{patch_discriminator.9} parent=5 // pred_check_branch
        %127 = sbr.rel (%p125) target = $region24
      $region23: #{patch_discriminator.9} parent=5 // pred_region
        // Predicated region
        $region25: #{patch_discriminator.9} parent=23 // pred_check
          %p128 = pneg %p29
        $region26: #{patch_discriminator.9} parent=23 // pred_check_branch
          %130 = sbr.rel (%p128) target = $region28
        $region27: #{patch_discriminator.9} parent=23 // pred_region
          %s131 = smul.u32 6, %s9
          %s132 = ssub.s32 9, %s131
          %p133 = scmp.lt.s32.totalorder %s132, 6
          %s134 = scalar_select %p133, %s132, 6
          %s135 = smul.u32 64, %s134
          %s136 = smul.u32 %s135, 8
          %p137 = scmp.lt.s32.totalorder %s131, 8
          %s138 = scalar_select %p137, %s131, 8
          %s139 = smul.addr %s138, 8
          %s140 = smul.addr %s139, 4
          %s141 = scalar_lea.vmem %s0, %s140
          %s142 = smul.u32 6, %s9
          %s143 = ssub.s32 9, %s142
          %p144 = scmp.lt.s32.totalorder %s143, 6
          %s145 = scalar_select %p144, %s143, 6
          %s146 = smul.u32 64, %s145
          %s147 = smul.u32 %s146, 8
        $region28: #{patch_discriminator.9} parent=23 // pred_fallthru
          _
      $region24: #{patch_discriminator.9} parent=5 // pred_fallthru
        _
      %p148 = scmp.le.s32.totalorder 1, %s9
      %p149 = scmp.lt.s32.totalorder %s9, 3
      %p150 = pnand %p148, %p149
      %p151 = pneg %p150
      // Predicated region
      $region29: #{patch_discriminator.9} parent=5 // pred_check
        _
      $region30: #{patch_discriminator.9} parent=5 // pred_check_branch
        %153 = sbr.rel (%p150) target = $region32
      $region31: #{patch_discriminator.9} parent=5 // pred_region
        %s154 = ssub.s32 %s9, 1
        %s155 = smul.u32 6, %s14
        %s156 = ssub.s32 9, %s155
        %p157 = scmp.lt.s32.totalorder %s156, 6
        %s158 = scalar_select %p157, %s156, 6
        %s159 = smul.u32 64, %s158
        %s160 = smul.u32 %s159, 8
        %p161 = scmp.lt.s32.totalorder %s155, 8
        %s162 = scalar_select %p161, %s155, 8
        %s163 = smul.addr %s162, 8
        %s164 = smul.addr %s163, 4
        %s165 = scalar_lea.vmem %s0, %s164
        %p166 = pneg %p35
        %p167 = pneg %p32
        %p168 = pneg %p56
        %p169 = pneg %p53
        %p170 = pneg %p77
        %p171 = pneg %p74
        %p172 = pneg %p103
        %p173 = pneg %p100
        %s174 = sand.u32 %s90, 1
        %s175 = sand.u32 %s90, 1
        %s176 = smul.addr %s175, 48
        %s177 = scalar_lea.vmem [#allocation2], %s176
        %s178 = smul.u32 6, %s14
        %s179 = ssub.s32 9, %s178
        %p180 = scmp.lt.s32.totalorder %s179, 6
        %s181 = scalar_select %p180, %s179, 6
        %s182 = smul.u32 64, %s181
        %s183 = smul.u32 %s182, 8
        %p184 = scmp.lt.s32.totalorder %s178, 8
        %s185 = scalar_select %p184, %s178, 8
        %s186 = smul.addr %s185, 8
        %s187 = smul.addr %s186, 4
        %s188 = scalar_lea.vmem %s0, %s187
        %s189 = smul.u32 6, %s14
        %s190 = ssub.s32 9, %s189
        %p191 = scmp.lt.s32.totalorder %s190, 6
        %s192 = scalar_select %p191, %s190, 6
        %s193 = smul.u32 64, %s192
        %s194 = smul.u32 %s193, 8
        %s195 = smul.u32 6, %s14
        %s196 = ssub.s32 9, %s195
        %p197 = scmp.lt.s32.totalorder %s196, 6
        %s198 = scalar_select %p197, %s196, 6
        %s199 = smul.u32 128, %s198
        %v201 = vld [vmem:[%s188] sm:$0xff]
        %v202 = vld [vmem:[%s188 + $0x8] sm:$0xff]
        %v203 = vld [vmem:[%s188 + $0x10] sm:$0xff]
        %v204 = vld [vmem:[%s188 + $0x18] sm:$0xff]
        %v205 = vld [vmem:[%s188 + $0x20] sm:$0xff]
        %v206 = vld [vmem:[%s188 + $0x28] sm:$0xff]
        %v207 = vld [vmem:[%s188 + $0x30] sm:$0xff]
        %v208 = vld [vmem:[%s188 + $0x38] sm:$0xff]
        %v209 = vld [vmem:[%s188 + $0x40] sm:$0xff]
        %v210 = vld [vmem:[%s188 + $0x48] sm:$0xff]
        %v211 = vld [vmem:[%s188 + $0x50] sm:$0xff]
        %v212 = vld [vmem:[%s188 + $0x58] sm:$0xff]
        %v213 = vld [vmem:[%s188 + $0x60] sm:$0xff]
        %v214 = vld [vmem:[%s188 + $0x68] sm:$0xff]
        %v215 = vld [vmem:[%s188 + $0x70] sm:$0xff]
        %v216 = vld [vmem:[%s188 + $0x78] sm:$0xff]
        %v217 = vld [vmem:[%s188 + $0x80] sm:$0xff]
        %v218 = vld [vmem:[%s188 + $0x88] sm:$0xff]
        %v219 = vld [vmem:[%s188 + $0x90] sm:$0xff]
        %v220 = vld [vmem:[%s188 + $0x98] sm:$0xff]
        %v221 = vld [vmem:[%s188 + $0xa0] sm:$0xff]
        %v222 = vld [vmem:[%s188 + $0xa8] sm:$0xff]
        %v223 = vld [vmem:[%s188 + $0xb0] sm:$0xff]
        %v224 = vld [vmem:[%s188 + $0xb8] sm:$0xff]
        %v225 = vld [vmem:[%s1] sm:$0xf]
        %v226 = vld [vmem:[%s1 + $0x4] sm:$0xf]
        %v227 = vld [vmem:[%s1 + $0x8] sm:$0xf]
        %v228 = vld [vmem:[%s1 + $0xc] sm:$0xf]
        %v229 = vld [vmem:[%s1 + $0x10] sm:$0xf]
        %v230 = vld [vmem:[%s1 + $0x14] sm:$0xf]
        %v231 = vld [vmem:[%s1 + $0x18] sm:$0xf]
        %v232 = vld [vmem:[%s1 + $0x1c] sm:$0xf]
        %v233 = vld [vmem:[%s1 + $0x20] sm:$0xf]
        %v234 = vld [vmem:[%s1 + $0x24] sm:$0xf]
        %v235 = vld [vmem:[%s1 + $0x28] sm:$0xf]
        %v236 = vld [vmem:[%s1 + $0x2c] sm:$0xf]
        %v237 = vld [vmem:[%s1 + $0x30] sm:$0xf]
        %v238 = vld [vmem:[%s1 + $0x34] sm:$0xf]
        %v239 = vld [vmem:[%s1 + $0x38] sm:$0xf]
        %v240 = vld [vmem:[%s1 + $0x3c] sm:$0xf]
        %v241 = vld [vmem:[%s1 + $0x40] sm:$0xf]
        %v242 = vld [vmem:[%s1 + $0x44] sm:$0xf]
        %v243 = vld [vmem:[%s1 + $0x48] sm:$0xf]
        %v244 = vld [vmem:[%s1 + $0x4c] sm:$0xf]
        %v245 = vld [vmem:[%s1 + $0x50] sm:$0xf]
        %v246 = vld [vmem:[%s1 + $0x54] sm:$0xf]
        %v247 = vld [vmem:[%s1 + $0x58] sm:$0xf]
        %v248 = vld [vmem:[%s1 + $0x5c] sm:$0xf]
        %v249 = vld [vmem:[%s1 + $0x60] sm:$0xf]
        %v250 = vld [vmem:[%s1 + $0x64] sm:$0xf]
        %v251 = vld [vmem:[%s1 + $0x68] sm:$0xf]
        %v252 = vld [vmem:[%s1 + $0x6c] sm:$0xf]
        %v253 = vld [vmem:[%s1 + $0x70] sm:$0xf]
        %v254 = vld [vmem:[%s1 + $0x74] sm:$0xf]
        %v255 = vld [vmem:[%s1 + $0x78] sm:$0xf]
        %v256 = vld [vmem:[%s1 + $0x7c] sm:$0xf]
        %v257 = vld [vmem:[%s1 + $0x80] sm:$0xf]
        %v258 = vld [vmem:[%s1 + $0x84] sm:$0xf]
        %v259 = vld [vmem:[%s1 + $0x88] sm:$0xf]
        %v260 = vld [vmem:[%s1 + $0x8c] sm:$0xf]
        %v261 = vld [vmem:[%s1 + $0x90] sm:$0xf]
        %v262 = vld [vmem:[%s1 + $0x94] sm:$0xf]
        %v263 = vld [vmem:[%s1 + $0x98] sm:$0xf]
        %v264 = vld [vmem:[%s1 + $0x9c] sm:$0xf]
        %v265 = vld [vmem:[%s1 + $0xa0] sm:$0xf]
        %v266 = vld [vmem:[%s1 + $0xa4] sm:$0xf]
        %v267 = vld [vmem:[%s1 + $0xa8] sm:$0xf]
        %v268 = vld [vmem:[%s1 + $0xac] sm:$0xf]
        %v269 = vld [vmem:[%s1 + $0xb0] sm:$0xf]
        %v270 = vld [vmem:[%s1 + $0xb4] sm:$0xf]
        %v271 = vld [vmem:[%s1 + $0xb8] sm:$0xf]
        %v272 = vld [vmem:[%s1 + $0xbc] sm:$0xf]
        %v273 = vld [vmem:[%s1 + $0xc0] sm:$0xf]
        %v274 = vld [vmem:[%s1 + $0xc4] sm:$0xf]
        %v275 = vld [vmem:[%s1 + $0xc8] sm:$0xf]
        %v276 = vld [vmem:[%s1 + $0xcc] sm:$0xf]
        %v277 = vld [vmem:[%s1 + $0xd0] sm:$0xf]
        %v278 = vld [vmem:[%s1 + $0xd4] sm:$0xf]
        %v279 = vld [vmem:[%s1 + $0xd8] sm:$0xf]
        %v280 = vld [vmem:[%s1 + $0xdc] sm:$0xf]
        %v281 = vld [vmem:[%s1 + $0xe0] sm:$0xf]
        %v282 = vld [vmem:[%s1 + $0xe4] sm:$0xf]
        %v283 = vld [vmem:[%s1 + $0xe8] sm:$0xf]
        %v284 = vld [vmem:[%s1 + $0xec] sm:$0xf]
        %v285 = vld [vmem:[%s1 + $0xf0] sm:$0xf]
        %v286 = vld [vmem:[%s1 + $0xf4] sm:$0xf]
        %v287 = vld [vmem:[%s1 + $0xf8] sm:$0xf]
        %v288 = vld [vmem:[%s1 + $0xfc] sm:$0xf]
        %v289 = vld [vmem:[%s1 + $0x100] sm:$0xf]
        %v290 = vld [vmem:[%s1 + $0x104] sm:$0xf]
        %v291 = vld [vmem:[%s1 + $0x108] sm:$0xf]
        %v292 = vld [vmem:[%s1 + $0x10c] sm:$0xf]
        %v293 = vld [vmem:[%s1 + $0x110] sm:$0xf]
        %v294 = vld [vmem:[%s1 + $0x114] sm:$0xf]
        %v295 = vld [vmem:[%s1 + $0x118] sm:$0xf]
        %v296 = vld [vmem:[%s1 + $0x11c] sm:$0xf]
        %v297 = vld [vmem:[%s1 + $0x120] sm:$0xf]
        %v298 = vld [vmem:[%s1 + $0x124] sm:$0xf]
        %v299 = vld [vmem:[%s1 + $0x128] sm:$0xf]
        %v300 = vld [vmem:[%s1 + $0x12c] sm:$0xf]
        %v301 = vld [vmem:[%s1 + $0x130] sm:$0xf]
        %v302 = vld [vmem:[%s1 + $0x134] sm:$0xf]
        %v303 = vld [vmem:[%s1 + $0x138] sm:$0xf]
        %v304 = vld [vmem:[%s1 + $0x13c] sm:$0xf]
        %v305 = vld [vmem:[%s1 + $0x140] sm:$0xf]
        %v306 = vld [vmem:[%s1 + $0x144] sm:$0xf]
        %v307 = vld [vmem:[%s1 + $0x148] sm:$0xf]
        %v308 = vld [vmem:[%s1 + $0x14c] sm:$0xf]
        %v309 = vld [vmem:[%s1 + $0x150] sm:$0xf]
        %v310 = vld [vmem:[%s1 + $0x154] sm:$0xf]
        %v311 = vld [vmem:[%s1 + $0x158] sm:$0xf]
        %v312 = vld [vmem:[%s1 + $0x15c] sm:$0xf]
        %v313 = vld [vmem:[%s1 + $0x160] sm:$0xf]
        %v314 = vld [vmem:[%s1 + $0x164] sm:$0xf]
        %v315 = vld [vmem:[%s1 + $0x168] sm:$0xf]
        %v316 = vld [vmem:[%s1 + $0x16c] sm:$0xf]
        %v317 = vld [vmem:[%s1 + $0x170] sm:$0xf]
        %v318 = vld [vmem:[%s1 + $0x174] sm:$0xf]
        %v319 = vld [vmem:[%s1 + $0x178] sm:$0xf]
        %v320 = vld [vmem:[%s1 + $0x17c] sm:$0xf]
        %v321 = vld [vmem:[%s1 + $0x180] sm:$0xf]
        %v322 = vld [vmem:[%s1 + $0x184] sm:$0xf]
        %v323 = vld [vmem:[%s1 + $0x188] sm:$0xf]
        %v324 = vld [vmem:[%s1 + $0x18c] sm:$0xf]
        %v325 = vld [vmem:[%s1 + $0x190] sm:$0xf]
        %v326 = vld [vmem:[%s1 + $0x194] sm:$0xf]
        %v327 = vld [vmem:[%s1 + $0x198] sm:$0xf]
        %v328 = vld [vmem:[%s1 + $0x19c] sm:$0xf]
        %v329 = vld [vmem:[%s1 + $0x1a0] sm:$0xf]
        %v330 = vld [vmem:[%s1 + $0x1a4] sm:$0xf]
        %v331 = vld [vmem:[%s1 + $0x1a8] sm:$0xf]
        %v332 = vld [vmem:[%s1 + $0x1ac] sm:$0xf]
        %v333 = vld [vmem:[%s1 + $0x1b0] sm:$0xf]
        %v334 = vld [vmem:[%s1 + $0x1b4] sm:$0xf]
        %v335 = vld [vmem:[%s1 + $0x1b8] sm:$0xf]
        %v336 = vld [vmem:[%s1 + $0x1bc] sm:$0xf]
        %v337 = vld [vmem:[%s1 + $0x1c0] sm:$0xf]
        %v338 = vld [vmem:[%s1 + $0x1c4] sm:$0xf]
        %v339 = vld [vmem:[%s1 + $0x1c8] sm:$0xf]
        %v340 = vld [vmem:[%s1 + $0x1cc] sm:$0xf]
        %v341 = vld [vmem:[%s1 + $0x1d0] sm:$0xf]
        %v342 = vld [vmem:[%s1 + $0x1d4] sm:$0xf]
        %v343 = vld [vmem:[%s1 + $0x1d8] sm:$0xf]
        %v344 = vld [vmem:[%s1 + $0x1dc] sm:$0xf]
        %v345 = vld [vmem:[%s1 + $0x1e0] sm:$0xf]
        %v346 = vld [vmem:[%s1 + $0x1e4] sm:$0xf]
        %v347 = vld [vmem:[%s1 + $0x1e8] sm:$0xf]
        %v348 = vld [vmem:[%s1 + $0x1ec] sm:$0xf]
        %v349 = vld [vmem:[%s1 + $0x1f0] sm:$0xf]
        %v350 = vld [vmem:[%s1 + $0x1f4] sm:$0xf]
        %v351 = vld [vmem:[%s1 + $0x1f8] sm:$0xf]
        %v352 = vld [vmem:[%s1 + $0x1fc] sm:$0xf]
        %v353 = vld [vmem:[%s2] sm:$0x1]
        %v355 = vlaneseq
        %v356 = vshrl.u32 %v355, 7
        %v357 = vsub.s32 0, %v356
        %v358 = vrot.slane %v353, %v357
        %v384 = vunpack.c.l.b16 %v201
        %v385 = vunpack.c.h.b16 %v201
        %v386 = vunpack.c.l.b16 %v202
        %v387 = vunpack.c.h.b16 %v202
        %v388 = vunpack.c.l.b16 %v203
        %v389 = vunpack.c.h.b16 %v203
        %v390 = vunpack.c.l.b16 %v204
        %v391 = vunpack.c.h.b16 %v204
        %v392 = vunpack.c.l.b16 %v205
        %v393 = vunpack.c.h.b16 %v205
        %v394 = vunpack.c.l.b16 %v206
        %v395 = vunpack.c.h.b16 %v206
        %v396 = vunpack.c.l.b16 %v207
        %v397 = vunpack.c.h.b16 %v207
        %v398 = vunpack.c.l.b16 %v208
        %v399 = vunpack.c.h.b16 %v208
        %v400 = vunpack.c.l.b16 %v209
        %v401 = vunpack.c.h.b16 %v209
        %v402 = vunpack.c.l.b16 %v210
        %v403 = vunpack.c.h.b16 %v210
        %v404 = vunpack.c.l.b16 %v211
        %v405 = vunpack.c.h.b16 %v211
        %v406 = vunpack.c.l.b16 %v212
        %v407 = vunpack.c.h.b16 %v212
        %v408 = vunpack.c.l.b16 %v213
        %v409 = vunpack.c.h.b16 %v213
        %v410 = vunpack.c.l.b16 %v214
        %v411 = vunpack.c.h.b16 %v214
        %v412 = vunpack.c.l.b16 %v215
        %v413 = vunpack.c.h.b16 %v215
        %v414 = vunpack.c.l.b16 %v216
        %v415 = vunpack.c.h.b16 %v216
        %v416 = vunpack.c.l.b16 %v217
        %v417 = vunpack.c.h.b16 %v217
        %v418 = vunpack.c.l.b16 %v218
        %v419 = vunpack.c.h.b16 %v218
        %v420 = vunpack.c.l.b16 %v219
        %v421 = vunpack.c.h.b16 %v219
        %v422 = vunpack.c.l.b16 %v220
        %v423 = vunpack.c.h.b16 %v220
        %v424 = vunpack.c.l.b16 %v221
        %v425 = vunpack.c.h.b16 %v221
        %v426 = vunpack.c.l.b16 %v222
        %v427 = vunpack.c.h.b16 %v222
        %v428 = vunpack.c.l.b16 %v223
        %v429 = vunpack.c.h.b16 %v223
        %v430 = vunpack.c.l.b16 %v224
        %v431 = vunpack.c.h.b16 %v224
        %v432 = vpack.c.b16 %v392, %v384
        %v433 = vpack.c.b16 %v393, %v385
        %v434 = vpack.c.b16 %v394, %v386
        %v435 = vpack.c.b16 %v395, %v387
        %v436 = vpack.c.b16 %v396, %v388
        %v437 = vpack.c.b16 %v397, %v389
        %v438 = vpack.c.b16 %v398, %v390
        %v439 = vpack.c.b16 %v399, %v391
        %v440 = vpack.c.b16 %v408, %v400
        %v441 = vpack.c.b16 %v409, %v401
        %v442 = vpack.c.b16 %v410, %v402
        %v443 = vpack.c.b16 %v411, %v403
        %v444 = vpack.c.b16 %v412, %v404
        %v445 = vpack.c.b16 %v413, %v405
        %v446 = vpack.c.b16 %v414, %v406
        %v447 = vpack.c.b16 %v415, %v407
        %v448 = vpack.c.b16 %v424, %v416
        %v449 = vpack.c.b16 %v425, %v417
        %v450 = vpack.c.b16 %v426, %v418
        %v451 = vpack.c.b16 %v427, %v419
        %v452 = vpack.c.b16 %v428, %v420
        %v453 = vpack.c.b16 %v429, %v421
        %v454 = vpack.c.b16 %v430, %v422
        %v455 = vpack.c.b16 %v431, %v423
        %v608 = vunpack.c.l.b16 %v225
        %v609 = vunpack.c.l.b16 %v226
        %v610 = vunpack.c.l.b16 %v227
        %v611 = vunpack.c.l.b16 %v228
        %v612 = vunpack.c.l.b16 %v229
        %v613 = vunpack.c.l.b16 %v230
        %v614 = vunpack.c.l.b16 %v231
        %v615 = vunpack.c.l.b16 %v232
        %v616 = vunpack.c.l.b16 %v233
        %v617 = vunpack.c.l.b16 %v234
        %v618 = vunpack.c.l.b16 %v235
        %v619 = vunpack.c.l.b16 %v236
        %v620 = vunpack.c.l.b16 %v237
        %v621 = vunpack.c.l.b16 %v238
        %v622 = vunpack.c.l.b16 %v239
        %v623 = vunpack.c.l.b16 %v240
        %v624 = vunpack.c.l.b16 %v241
        %v625 = vunpack.c.l.b16 %v242
        %v626 = vunpack.c.l.b16 %v243
        %v627 = vunpack.c.l.b16 %v244
        %v628 = vunpack.c.l.b16 %v245
        %v629 = vunpack.c.l.b16 %v246
        %v630 = vunpack.c.l.b16 %v247
        %v631 = vunpack.c.l.b16 %v248
        %v632 = vunpack.c.l.b16 %v249
        %v633 = vunpack.c.l.b16 %v250
        %v634 = vunpack.c.l.b16 %v251
        %v635 = vunpack.c.l.b16 %v252
        %v636 = vunpack.c.l.b16 %v253
        %v637 = vunpack.c.l.b16 %v254
        %v638 = vunpack.c.l.b16 %v255
        %v639 = vunpack.c.l.b16 %v256
        %v640 = vunpack.c.l.b16 %v257
        %v641 = vunpack.c.l.b16 %v258
        %v642 = vunpack.c.l.b16 %v259
        %v643 = vunpack.c.l.b16 %v260
        %v644 = vunpack.c.l.b16 %v261
        %v645 = vunpack.c.l.b16 %v262
        %v646 = vunpack.c.l.b16 %v263
        %v647 = vunpack.c.l.b16 %v264
        %v648 = vunpack.c.l.b16 %v265
        %v649 = vunpack.c.l.b16 %v266
        %v650 = vunpack.c.l.b16 %v267
        %v651 = vunpack.c.l.b16 %v268
        %v652 = vunpack.c.l.b16 %v269
        %v653 = vunpack.c.l.b16 %v270
        %v654 = vunpack.c.l.b16 %v271
        %v655 = vunpack.c.l.b16 %v272
        %v656 = vunpack.c.l.b16 %v273
        %v657 = vunpack.c.l.b16 %v274
        %v658 = vunpack.c.l.b16 %v275
        %v659 = vunpack.c.l.b16 %v276
        %v660 = vunpack.c.l.b16 %v277
        %v661 = vunpack.c.l.b16 %v278
        %v662 = vunpack.c.l.b16 %v279
        %v663 = vunpack.c.l.b16 %v280
        %v664 = vunpack.c.l.b16 %v281
        %v665 = vunpack.c.l.b16 %v282
        %v666 = vunpack.c.l.b16 %v283
        %v667 = vunpack.c.l.b16 %v284
        %v668 = vunpack.c.l.b16 %v285
        %v669 = vunpack.c.l.b16 %v286
        %v670 = vunpack.c.l.b16 %v287
        %v671 = vunpack.c.l.b16 %v288
        %v672 = vunpack.c.l.b16 %v289
        %v673 = vunpack.c.l.b16 %v290
        %v674 = vunpack.c.l.b16 %v291
        %v675 = vunpack.c.l.b16 %v292
        %v676 = vunpack.c.l.b16 %v293
        %v677 = vunpack.c.l.b16 %v294
        %v678 = vunpack.c.l.b16 %v295
        %v679 = vunpack.c.l.b16 %v296
        %v680 = vunpack.c.l.b16 %v297
        %v681 = vunpack.c.l.b16 %v298
        %v682 = vunpack.c.l.b16 %v299
        %v683 = vunpack.c.l.b16 %v300
        %v684 = vunpack.c.l.b16 %v301
        %v685 = vunpack.c.l.b16 %v302
        %v686 = vunpack.c.l.b16 %v303
        %v687 = vunpack.c.l.b16 %v304
        %v688 = vunpack.c.l.b16 %v305
        %v689 = vunpack.c.l.b16 %v306
        %v690 = vunpack.c.l.b16 %v307
        %v691 = vunpack.c.l.b16 %v308
        %v692 = vunpack.c.l.b16 %v309
        %v693 = vunpack.c.l.b16 %v310
        %v694 = vunpack.c.l.b16 %v311
        %v695 = vunpack.c.l.b16 %v312
        %v696 = vunpack.c.l.b16 %v313
        %v697 = vunpack.c.l.b16 %v314
        %v698 = vunpack.c.l.b16 %v315
        %v699 = vunpack.c.l.b16 %v316
        %v700 = vunpack.c.l.b16 %v317
        %v701 = vunpack.c.l.b16 %v318
        %v702 = vunpack.c.l.b16 %v319
        %v703 = vunpack.c.l.b16 %v320
        %v704 = vunpack.c.l.b16 %v321
        %v705 = vunpack.c.l.b16 %v322
        %v706 = vunpack.c.l.b16 %v323
        %v707 = vunpack.c.l.b16 %v324
        %v708 = vunpack.c.l.b16 %v325
        %v709 = vunpack.c.l.b16 %v326
        %v710 = vunpack.c.l.b16 %v327
        %v711 = vunpack.c.l.b16 %v328
        %v712 = vunpack.c.l.b16 %v329
        %v713 = vunpack.c.l.b16 %v330
        %v714 = vunpack.c.l.b16 %v331
        %v715 = vunpack.c.l.b16 %v332
        %v716 = vunpack.c.l.b16 %v333
        %v717 = vunpack.c.l.b16 %v334
        %v718 = vunpack.c.l.b16 %v335
        %v719 = vunpack.c.l.b16 %v336
        %v720 = vunpack.c.l.b16 %v337
        %v721 = vunpack.c.l.b16 %v338
        %v722 = vunpack.c.l.b16 %v339
        %v723 = vunpack.c.l.b16 %v340
        %v724 = vunpack.c.l.b16 %v341
        %v725 = vunpack.c.l.b16 %v342
        %v726 = vunpack.c.l.b16 %v343
        %v727 = vunpack.c.l.b16 %v344
        %v728 = vunpack.c.l.b16 %v345
        %v729 = vunpack.c.l.b16 %v346
        %v730 = vunpack.c.l.b16 %v347
        %v731 = vunpack.c.l.b16 %v348
        %v732 = vunpack.c.l.b16 %v349
        %v733 = vunpack.c.l.b16 %v350
        %v734 = vunpack.c.l.b16 %v351
        %v735 = vunpack.c.l.b16 %v352
        %v736 = vpack.c.b16 %v609, %v608
        %v737 = vpack.c.b16 %v611, %v610
        %v738 = vpack.c.b16 %v613, %v612
        %v739 = vpack.c.b16 %v615, %v614
        %v740 = vpack.c.b16 %v617, %v616
        %v741 = vpack.c.b16 %v619, %v618
        %v742 = vpack.c.b16 %v621, %v620
        %v743 = vpack.c.b16 %v623, %v622
        %v744 = vpack.c.b16 %v625, %v624
        %v745 = vpack.c.b16 %v627, %v626
        %v746 = vpack.c.b16 %v629, %v628
        %v747 = vpack.c.b16 %v631, %v630
        %v748 = vpack.c.b16 %v633, %v632
        %v749 = vpack.c.b16 %v635, %v634
        %v750 = vpack.c.b16 %v637, %v636
        %v751 = vpack.c.b16 %v639, %v638
        %v752 = vpack.c.b16 %v641, %v640
        %v753 = vpack.c.b16 %v643, %v642
        %v754 = vpack.c.b16 %v645, %v644
        %v755 = vpack.c.b16 %v647, %v646
        %v756 = vpack.c.b16 %v649, %v648
        %v757 = vpack.c.b16 %v651, %v650
        %v758 = vpack.c.b16 %v653, %v652
        %v759 = vpack.c.b16 %v655, %v654
        %v760 = vpack.c.b16 %v657, %v656
        %v761 = vpack.c.b16 %v659, %v658
        %v762 = vpack.c.b16 %v661, %v660
        %v763 = vpack.c.b16 %v663, %v662
        %v764 = vpack.c.b16 %v665, %v664
        %v765 = vpack.c.b16 %v667, %v666
        %v766 = vpack.c.b16 %v669, %v668
        %v767 = vpack.c.b16 %v671, %v670
        %v768 = vpack.c.b16 %v673, %v672
        %v769 = vpack.c.b16 %v675, %v674
        %v770 = vpack.c.b16 %v677, %v676
        %v771 = vpack.c.b16 %v679, %v678
        %v772 = vpack.c.b16 %v681, %v680
        %v773 = vpack.c.b16 %v683, %v682
        %v774 = vpack.c.b16 %v685, %v684
        %v775 = vpack.c.b16 %v687, %v686
        %v776 = vpack.c.b16 %v689, %v688
        %v777 = vpack.c.b16 %v691, %v690
        %v778 = vpack.c.b16 %v693, %v692
        %v779 = vpack.c.b16 %v695, %v694
        %v780 = vpack.c.b16 %v697, %v696
        %v781 = vpack.c.b16 %v699, %v698
        %v782 = vpack.c.b16 %v701, %v700
        %v783 = vpack.c.b16 %v703, %v702
        %v784 = vpack.c.b16 %v705, %v704
        %v785 = vpack.c.b16 %v707, %v706
        %v786 = vpack.c.b16 %v709, %v708
        %v787 = vpack.c.b16 %v711, %v710
        %v788 = vpack.c.b16 %v713, %v712
        %v789 = vpack.c.b16 %v715, %v714
        %v790 = vpack.c.b16 %v717, %v716
        %v791 = vpack.c.b16 %v719, %v718
        %v792 = vpack.c.b16 %v721, %v720
        %v793 = vpack.c.b16 %v723, %v722
        %v794 = vpack.c.b16 %v725, %v724
        %v795 = vpack.c.b16 %v727, %v726
        %v796 = vpack.c.b16 %v729, %v728
        %v797 = vpack.c.b16 %v731, %v730
        %v798 = vpack.c.b16 %v733, %v732
        %v799 = vpack.c.b16 %v735, %v734
        %864 = vmatprep.subr.bf16.mxu0 0
        %865 = vmatpush1.bf16.msra.mxu0 %v736
        %866 = vmatprep.subr.bf16.mxu0 0
        %867 = vmatpush1.bf16.msra.mxu0 %v737
        %868 = vmatprep.subr.bf16.mxu0 0
        %869 = vmatpush1.bf16.msra.mxu0 %v738
        %870 = vmatprep.subr.bf16.mxu0 0
        %871 = vmatpush1.bf16.msra.mxu0 %v739
        %872 = vmatprep.subr.bf16.mxu0 0
        %873 = vmatpush1.bf16.msra.mxu0 %v740
        %874 = vmatprep.subr.bf16.mxu0 0
        %875 = vmatpush1.bf16.msra.mxu0 %v741
        %876 = vmatprep.subr.bf16.mxu0 0
        %877 = vmatpush1.bf16.msra.mxu0 %v742
        %878 = vmatprep.subr.bf16.mxu0 0
        %879 = vmatpush1.bf16.msra.mxu0 %v743
        %880 = vmatprep.subr.bf16.mxu0 0
        %881 = vmatpush1.bf16.msra.mxu0 %v744
        %882 = vmatprep.subr.bf16.mxu0 0
        %883 = vmatpush1.bf16.msra.mxu0 %v745
        %884 = vmatprep.subr.bf16.mxu0 0
        %885 = vmatpush1.bf16.msra.mxu0 %v746
        %886 = vmatprep.subr.bf16.mxu0 0
        %887 = vmatpush1.bf16.msra.mxu0 %v747
        %888 = vmatprep.subr.bf16.mxu0 0
        %889 = vmatpush1.bf16.msra.mxu0 %v748
        %890 = vmatprep.subr.bf16.mxu0 0
        %891 = vmatpush1.bf16.msra.mxu0 %v749
        %892 = vmatprep.subr.bf16.mxu0 0
        %893 = vmatpush1.bf16.msra.mxu0 %v750
        %894 = vmatprep.subr.bf16.mxu0 0
        %895 = vmatpush1.bf16.msra.mxu0 %v751
        %896 = vmatprep.mubr.bf16.mxu0 %v433
        %897 = vmatmul.mubr.bf16.gmra.mrb[0].mxu0 %v432
        %v898 = vpop.f32.mrb[0].mxu0
        %v899 = vadd.f32 %v358, %v898
        %v900 = vpop.f32.mrb[0].mxu0
        %v901 = vpop.f32.mrb[0].mxu0
        %v902 = vadd.f32 %v358, %v901
        %v903 = vpop.f32.mrb[0].mxu0
        %904 = vmatprep.mubr.bf16.mxu0 %v441
        %905 = vmatmul.mubr.bf16.gmra.mrb[0].mxu0 %v440
        %v906 = vpop.f32.mrb[0].mxu0
        %v907 = vadd.f32 %v358, %v906
        %v908 = vpop.f32.mrb[0].mxu0
        %v909 = vpop.f32.mrb[0].mxu0
        %v910 = vadd.f32 %v358, %v909
        %v911 = vpop.f32.mrb[0].mxu0
        %912 = vmatprep.mubr.bf16.mxu0 %v449
        %913 = vmatmul.mubr.bf16.gmra.mrb[0].mxu0 %v448
        %v914 = vpop.f32.mrb[0].mxu0
        %v915 = vadd.f32 %v358, %v914
        %v916 = vpop.f32.mrb[0].mxu0
        %v917 = vpop.f32.mrb[0].mxu0
        %v918 = vadd.f32 %v358, %v917
        %v919 = vpop.f32.mrb[0].mxu0
        %920 = vdwg.mxu0
        %921 = vmatprep.subr.bf16.mxu0 0
        %922 = vmatpush1.bf16.msra.mxu0 %v752
        %923 = vmatprep.subr.bf16.mxu0 0
        %924 = vmatpush1.bf16.msra.mxu0 %v753
        %925 = vmatprep.subr.bf16.mxu0 0
        %926 = vmatpush1.bf16.msra.mxu0 %v754
        %927 = vmatprep.subr.bf16.mxu0 0
        %928 = vmatpush1.bf16.msra.mxu0 %v755
        %929 = vmatprep.subr.bf16.mxu0 0
        %930 = vmatpush1.bf16.msra.mxu0 %v756
        %931 = vmatprep.subr.bf16.mxu0 0
        %932 = vmatpush1.bf16.msra.mxu0 %v757
        %933 = vmatprep.subr.bf16.mxu0 0
        %934 = vmatpush1.bf16.msra.mxu0 %v758
        %935 = vmatprep.subr.bf16.mxu0 0
        %936 = vmatpush1.bf16.msra.mxu0 %v759
        %937 = vmatprep.subr.bf16.mxu0 0
        %938 = vmatpush1.bf16.msra.mxu0 %v760
        %939 = vmatprep.subr.bf16.mxu0 0
        %940 = vmatpush1.bf16.msra.mxu0 %v761
        %941 = vmatprep.subr.bf16.mxu0 0
        %942 = vmatpush1.bf16.msra.mxu0 %v762
        %943 = vmatprep.subr.bf16.mxu0 0
        %944 = vmatpush1.bf16.msra.mxu0 %v763
        %945 = vmatprep.subr.bf16.mxu0 0
        %946 = vmatpush1.bf16.msra.mxu0 %v764
        %947 = vmatprep.subr.bf16.mxu0 0
        %948 = vmatpush1.bf16.msra.mxu0 %v765
        %949 = vmatprep.subr.bf16.mxu0 0
        %950 = vmatpush1.bf16.msra.mxu0 %v766
        %951 = vmatprep.subr.bf16.mxu0 0
        %952 = vmatpush1.bf16.msra.mxu0 %v767
        %953 = vmatprep.mubr.bf16.mxu0 %v435
        %954 = vmatmul.mubr.bf16.gmra.mrb[0].mxu0 %v434
        %v955 = vpop.f32.mrb[0].mxu0
        %v956 = vadd.f32 %v899, %v955
        %v957 = vpop.f32.mrb[0].mxu0
        %v958 = vpop.f32.mrb[0].mxu0
        %v959 = vadd.f32 %v902, %v958
        %v960 = vpop.f32.mrb[0].mxu0
        %961 = vmatprep.mubr.bf16.mxu0 %v443
        %962 = vmatmul.mubr.bf16.gmra.mrb[0].mxu0 %v442
        %v963 = vpop.f32.mrb[0].mxu0
        %v964 = vadd.f32 %v907, %v963
        %v965 = vpop.f32.mrb[0].mxu0
        %v966 = vpop.f32.mrb[0].mxu0
        %v967 = vadd.f32 %v910, %v966
        %v968 = vpop.f32.mrb[0].mxu0
        %969 = vmatprep.mubr.bf16.mxu0 %v451
        %970 = vmatmul.mubr.bf16.gmra.mrb[0].mxu0 %v450
        %v971 = vpop.f32.mrb[0].mxu0
        %v972 = vadd.f32 %v915, %v971
        %v973 = vpop.f32.mrb[0].mxu0
        %v974 = vpop.f32.mrb[0].mxu0
        %v975 = vadd.f32 %v918, %v974
        %v976 = vpop.f32.mrb[0].mxu0
        %977 = vdwg.mxu0
        %978 = vmatprep.subr.bf16.mxu0 0
        %979 = vmatpush1.bf16.msra.mxu0 %v768
        %980 = vmatprep.subr.bf16.mxu0 0
        %981 = vmatpush1.bf16.msra.mxu0 %v769
        %982 = vmatprep.subr.bf16.mxu0 0
        %983 = vmatpush1.bf16.msra.mxu0 %v770
        %984 = vmatprep.subr.bf16.mxu0 0
        %985 = vmatpush1.bf16.msra.mxu0 %v771
        %986 = vmatprep.subr.bf16.mxu0 0
        %987 = vmatpush1.bf16.msra.mxu0 %v772
        %988 = vmatprep.subr.bf16.mxu0 0
        %989 = vmatpush1.bf16.msra.mxu0 %v773
        %990 = vmatprep.subr.bf16.mxu0 0
        %991 = vmatpush1.bf16.msra.mxu0 %v774
        %992 = vmatprep.subr.bf16.mxu0 0
        %993 = vmatpush1.bf16.msra.mxu0 %v775
        %994 = vmatprep.subr.bf16.mxu0 0
        %995 = vmatpush1.bf16.msra.mxu0 %v776
        %996 = vmatprep.subr.bf16.mxu0 0
        %997 = vmatpush1.bf16.msra.mxu0 %v777
        %998 = vmatprep.subr.bf16.mxu0 0
        %999 = vmatpush1.bf16.msra.mxu0 %v778
        %1000 = vmatprep.subr.bf16.mxu0 0
        %1001 = vmatpush1.bf16.msra.mxu0 %v779
        %1002 = vmatprep.subr.bf16.mxu0 0
        %1003 = vmatpush1.bf16.msra.mxu0 %v780
        %1004 = vmatprep.subr.bf16.mxu0 0
        %1005 = vmatpush1.bf16.msra.mxu0 %v781
        %1006 = vmatprep.subr.bf16.mxu0 0
        %1007 = vmatpush1.bf16.msra.mxu0 %v782
        %1008 = vmatprep.subr.bf16.mxu0 0
        %1009 = vmatpush1.bf16.msra.mxu0 %v783
        %1010 = vmatprep.mubr.bf16.mxu0 %v437
        %1011 = vmatmul.mubr.bf16.gmra.mrb[0].mxu0 %v436
        %v1012 = vpop.f32.mrb[0].mxu0
        %v1013 = vadd.f32 %v956, %v1012
        %v1014 = vpop.f32.mrb[0].mxu0
        %v1015 = vpop.f32.mrb[0].mxu0
        %v1016 = vadd.f32 %v959, %v1015
        %v1017 = vpop.f32.mrb[0].mxu0
        %1018 = vmatprep.mubr.bf16.mxu0 %v445
        %1019 = vmatmul.mubr.bf16.gmra.mrb[0].mxu0 %v444
        %v1020 = vpop.f32.mrb[0].mxu0
        %v1021 = vadd.f32 %v964, %v1020
        %v1022 = vpop.f32.mrb[0].mxu0
        %v1023 = vpop.f32.mrb[0].mxu0
        %v1024 = vadd.f32 %v967, %v1023
        %v1025 = vpop.f32.mrb[0].mxu0
        %1026 = vmatprep.mubr.bf16.mxu0 %v453
        %1027 = vmatmul.mubr.bf16.gmra.mrb[0].mxu0 %v452
        %v1028 = vpop.f32.mrb[0].mxu0
        %v1029 = vadd.f32 %v972, %v1028
        %v1030 = vpop.f32.mrb[0].mxu0
        %v1031 = vpop.f32.mrb[0].mxu0
        %v1032 = vadd.f32 %v975, %v1031
        %v1033 = vpop.f32.mrb[0].mxu0
        %1034 = vdwg.mxu0
        %1035 = vmatprep.subr.bf16.mxu0 0
        %1036 = vmatpush1.bf16.msra.mxu0 %v784
        %1037 = vmatprep.subr.bf16.mxu0 0
        %1038 = vmatpush1.bf16.msra.mxu0 %v785
        %1039 = vmatprep.subr.bf16.mxu0 0
        %1040 = vmatpush1.bf16.msra.mxu0 %v786
        %1041 = vmatprep.subr.bf16.mxu0 0
        %1042 = vmatpush1.bf16.msra.mxu0 %v787
        %1043 = vmatprep.subr.bf16.mxu0 0
        %1044 = vmatpush1.bf16.msra.mxu0 %v788
        %1045 = vmatprep.subr.bf16.mxu0 0
        %1046 = vmatpush1.bf16.msra.mxu0 %v789
        %1047 = vmatprep.subr.bf16.mxu0 0
        %1048 = vmatpush1.bf16.msra.mxu0 %v790
        %1049 = vmatprep.subr.bf16.mxu0 0
        %1050 = vmatpush1.bf16.msra.mxu0 %v791
        %1051 = vmatprep.subr.bf16.mxu0 0
        %1052 = vmatpush1.bf16.msra.mxu0 %v792
        %1053 = vmatprep.subr.bf16.mxu0 0
        %1054 = vmatpush1.bf16.msra.mxu0 %v793
        %1055 = vmatprep.subr.bf16.mxu0 0
        %1056 = vmatpush1.bf16.msra.mxu0 %v794
        %1057 = vmatprep.subr.bf16.mxu0 0
        %1058 = vmatpush1.bf16.msra.mxu0 %v795
        %1059 = vmatprep.subr.bf16.mxu0 0
        %1060 = vmatpush1.bf16.msra.mxu0 %v796
        %1061 = vmatprep.subr.bf16.mxu0 0
        %1062 = vmatpush1.bf16.msra.mxu0 %v797
        %1063 = vmatprep.subr.bf16.mxu0 0
        %1064 = vmatpush1.bf16.msra.mxu0 %v798
        %1065 = vmatprep.subr.bf16.mxu0 0
        %1066 = vmatpush1.bf16.msra.mxu0 %v799
        %1067 = vmatprep.mubr.bf16.mxu0 %v439
        %1068 = vmatmul.mubr.bf16.gmra.mrb[0].mxu0 %v438
        %v1069 = vpop.f32.mrb[0].mxu0
        %v1070 = vadd.f32 %v1013, %v1069
        %v1071 = vpop.f32.mrb[0].mxu0
        %v1072 = vpop.f32.mrb[0].mxu0
        %v1073 = vadd.f32 %v1016, %v1072
        %v1074 = vpop.f32.mrb[0].mxu0
        %1075 = vmatprep.mubr.bf16.mxu0 %v447
        %1076 = vmatmul.mubr.bf16.gmra.mrb[0].mxu0 %v446
        %v1077 = vpop.f32.mrb[0].mxu0
        %v1078 = vadd.f32 %v1021, %v1077
        %v1079 = vpop.f32.mrb[0].mxu0
        %v1080 = vpop.f32.mrb[0].mxu0
        %v1081 = vadd.f32 %v1024, %v1080
        %v1082 = vpop.f32.mrb[0].mxu0
        %1083 = vmatprep.mubr.bf16.mxu0 %v455
        %1084 = vmatmul.mubr.bf16.gmra.mrb[0].mxu0 %v454
        %v1085 = vpop.f32.mrb[0].mxu0
        %v1086 = vadd.f32 %v1029, %v1085
        %v1087 = vpop.f32.mrb[0].mxu0
        %v1088 = vpop.f32.mrb[0].mxu0
        %v1089 = vadd.f32 %v1032, %v1088
        %v1090 = vpop.f32.mrb[0].mxu0
        %1091 = vdwg.mxu0
        %v1092 = vsub.f32 0.0, %v1070
        %v1093 = vsub.f32 0.0, %v1073
        %v1094 = vsub.f32 0.0, %v1078
        %v1095 = vsub.f32 0.0, %v1081
        %v1096 = vsub.f32 0.0, %v1086
        %v1097 = vsub.f32 0.0, %v1089
        %v1098 = vmul.f32 %v1092, 1.442695
        %v1099 = vpow.pop %v1098
        %v1100 = vmul.f32 %v1093, 1.442695
        %v1101 = vpow.pop %v1100
        %v1102 = vmul.f32 %v1094, 1.442695
        %v1103 = vpow.pop %v1102
        %v1104 = vmul.f32 %v1095, 1.442695
        %v1105 = vpow.pop %v1104
        %v1106 = vmul.f32 %v1096, 1.442695
        %v1107 = vpow.pop %v1106
        %v1108 = vmul.f32 %v1097, 1.442695
        %v1109 = vpow.pop %v1108
        %v1110 = vadd.f32 %v1099, 1.0
        %v1111 = vadd.f32 %v1101, 1.0
        %v1112 = vadd.f32 %v1103, 1.0
        %v1113 = vadd.f32 %v1105, 1.0
        %v1114 = vadd.f32 %v1107, 1.0
        %v1115 = vadd.f32 %v1109, 1.0
        %v1116 = vrcp.pop %v1110
        %v1117 = vmul.f32 1.0, %v1116
        %v1118 = vrcp.pop %v1111
        %v1119 = vmul.f32 1.0, %v1118
        %v1120 = vrcp.pop %v1112
        %v1121 = vmul.f32 1.0, %v1120
        %v1122 = vrcp.pop %v1113
        %v1123 = vmul.f32 1.0, %v1122
        %v1124 = vrcp.pop %v1114
        %v1125 = vmul.f32 1.0, %v1124
        %v1126 = vrcp.pop %v1115
        %v1127 = vmul.f32 1.0, %v1126
        %1128 = vst [vmem:[%s177] sm:$0xff] %v1117
        %1129 = vst [vmem:[%s177 + $0x8] sm:$0xff] %v1119
        %1130 = vst [vmem:[%s177 + $0x10] sm:$0xff] %v1121
        %1131 = vst [vmem:[%s177 + $0x18] sm:$0xff] %v1123
        %1132 = vst [vmem:[%s177 + $0x20] sm:$0xff] %v1125
        %1133 = vst [vmem:[%s177 + $0x28] sm:$0xff] %v1127
        %s1134 = sand.u32 %s90, 1
        %s1135 = sand.u32 %s90, 1
        %s1136 = smul.addr %s1135, 48
        %s1137 = scalar_lea.vmem [#allocation2], %s1136
        // Predicated region
        $region33: #{patch_discriminator.9} parent=31 // pred_check
          %p1138 = pneg %p100
        $region34: #{patch_discriminator.9} parent=31 // pred_check_branch
          %1140 = sbr.rel (%p1138) target = $region36
        $region35: #{patch_discriminator.9} parent=31 // pred_region
          %s1141 = smul.u32 6, %s14
          %s1142 = ssub.s32 9, %s1141
          %p1143 = scmp.lt.s32.totalorder %s1142, 6
          %s1144 = scalar_select %p1143, %s1142, 6
          %s1145 = smul.u32 128, %s1144
          %p1146 = scmp.ne.s32.totalorder 0, %s1145
          %s1147 = smul.addr %s1141, 8
          %s1148 = scalar_lea.vmem %s3, %s1147
          // Predicated region
          $region37: #{patch_discriminator.9} parent=35 // pred_check
            %p1149 = pneg %p1146
          $region38: #{patch_discriminator.9} parent=35 // pred_check_branch
            %1151 = sbr.rel (%p1149) target = $region40
          $region39: #{patch_discriminator.9} parent=35 // pred_region
            // Predicated region
            $region41: #{patch_discriminator.9} parent=39 // pred_check
              _
            $region42: #{patch_discriminator.9} parent=39 // pred_check_branch
              %1153 = sbr.rel (0) target = $region44
            $region43: #{patch_discriminator.9} parent=39 // pred_region
              // Predicated region
              $region63: #{patch_discriminator.9} parent=43 // pred_check
                _
              $region64: #{patch_discriminator.9} parent=43 // pred_check_branch
                %1213 = sbr.rel (0) target = $region66
              $region65: #{patch_discriminator.9} parent=43 // pred_region
                %s1214 = sdiv.u32.pop %s1144, 6
                %s1215 = srem.u32.pop %s1144, 6
                // While loop
                $region67: #{patch_discriminator.9} parent=65 // loop_pre_header
                  _
                $region68: #{patch_discriminator.9} parent=65 // loop_header
                  %s1217 = sphi 0, %s1219
                  %p1218 = scmp.ge.s32.totalorder %s1217, %s1214
                  %s1222 = sphi 0, %s1239
                  %s1223 = sphi %s1137, %s1242
                  %s1224 = sphi %s1148, %s1243
                $region69: #{patch_discriminator.9} parent=65 // loop_header_branch
                  %1221 = sbr.rel (%p1218) target = $region73
                $region70: #{patch_discriminator.9} parent=65 // loop_body
                  %v1225 = vld [vmem:[%s1223] sm:$0xff]
                  %1226 = vst [vmem:[%s1224] sm:$0xff] %v1225
                  %v1227 = vld [vmem:[%s1223 + $0x8] sm:$0xff]
                  %1228 = vst [vmem:[%s1224 + $0x8] sm:$0xff] %v1227
                  %v1229 = vld [vmem:[%s1223 + $0x10] sm:$0xff]
                  %1230 = vst [vmem:[%s1224 + $0x10] sm:$0xff] %v1229
                  %v1231 = vld [vmem:[%s1223 + $0x18] sm:$0xff]
                  %1232 = vst [vmem:[%s1224 + $0x18] sm:$0xff] %v1231
                  %v1233 = vld [vmem:[%s1223 + $0x20] sm:$0xff]
                  %1234 = vst [vmem:[%s1224 + $0x20] sm:$0xff] %v1233
                  %v1235 = vld [vmem:[%s1223 + $0x28] sm:$0xff]
                  %1236 = vst [vmem:[%s1224 + $0x28] sm:$0xff] %v1235
                  %s1237 = sadd.s32 1, %s1222
                  %p1238 = scmp.ge.s32.totalorder %s1237, %s1214
                  %s1239 = scalar_select %p1238, 0, %s1237
                  %s1240 = smul.u32 %s1239, 48
                  %s1241 = smul.u32 %s1239, 48
                  %s1242 = scalar_lea.vmem %s1137, %s1240 [#allocation2]
                  %s1243 = scalar_lea.vmem %s1148, %s1241
                $region71: #{patch_discriminator.9} parent=65 // loop_footer
                  %s1219 = sadd.s32 %s1217, 1
                $region72: #{patch_discriminator.9} parent=65 // loop_footer_branch
                  %1216 = sbr.rel target = $region68
                $region73: #{patch_discriminator.9} parent=65 // loop_exit
                  _
                %s1244 = sdiv.u32.pop %s1144, 6
                %s1245 = srem.u32.pop %s1144, 6
                %s1246 = smul.u32 %s1244, 6
                %s1247 = smul.u32 8, %s1246
                %s1248 = scalar_lea.vmem %s1137, %s1247 [#allocation2]
                %s1249 = smul.u32 8, %s1246
                %s1250 = scalar_lea.vmem %s1148, %s1249
                // While loop
                $region74: #{patch_discriminator.9} parent=65 // loop_pre_header
                  _
                $region75: #{patch_discriminator.9} parent=65 // loop_header
                  %s1252 = sphi 0, %s1254
                  %p1253 = scmp.ge.s32.totalorder %s1252, %s1245
                  %s1257 = sphi 0, %s1264
                  %s1258 = sphi %s1248, %s1267
                  %s1259 = sphi %s1250, %s1268
                $region76: #{patch_discriminator.9} parent=65 // loop_header_branch
                  %1256 = sbr.rel (%p1253) target = $region80
                $region77: #{patch_discriminator.9} parent=65 // loop_body
                  %v1260 = vld [vmem:[%s1258] sm:$0xff]
                  %1261 = vst [vmem:[%s1259] sm:$0xff] %v1260
                  %s1262 = sadd.s32 1, %s1257
                  %p1263 = scmp.ge.s32.totalorder %s1262, %s1245
                  %s1264 = scalar_select %p1263, 0, %s1262
                  %s1265 = smul.u32 %s1264, 8
                  %s1266 = smul.u32 %s1264, 8
                  %s1267 = scalar_lea.vmem %s1248, %s1265 [#allocation2]
                  %s1268 = scalar_lea.vmem %s1250, %s1266
                $region78: #{patch_discriminator.9} parent=65 // loop_footer
                  %s1254 = sadd.s32 %s1252, 1
                $region79: #{patch_discriminator.9} parent=65 // loop_footer_branch
                  %1251 = sbr.rel target = $region75
                $region80: #{patch_discriminator.9} parent=65 // loop_exit
                  _
              $region66: #{patch_discriminator.9} parent=43 // pred_fallthru
                _
              // Predicated region
              $region81: #{patch_discriminator.9} parent=43 // pred_check
                _
              $region82: #{patch_discriminator.9} parent=43 // pred_check_branch
                %1270 = sbr.rel target = $region84
              $region83: #{patch_discriminator.9} parent=43 // pred_region
                _
              $region84: #{patch_discriminator.9} parent=43 // pred_fallthru
                _
            $region44: #{patch_discriminator.9} parent=39 // pred_fallthru
              _
            // Predicated region
            $region45: #{patch_discriminator.9} parent=39 // pred_check
              _
            $region46: #{patch_discriminator.9} parent=39 // pred_check_branch
              %1155 = sbr.rel target = $region48
            $region47: #{patch_discriminator.9} parent=39 // pred_region
              %s1157 = sdiv.u32.pop %s1144, 6
              %s1158 = srem.u32.pop %s1144, 6
              // While loop
              $region49: #{patch_discriminator.9} parent=47 // loop_pre_header
                _
              $region50: #{patch_discriminator.9} parent=47 // loop_header
                %s1160 = sphi 0, %s1162
                %p1161 = scmp.ge.s32.totalorder %s1160, %s1157
                %s1165 = sphi 0, %s1182
                %s1166 = sphi %s1137, %s1185
                %s1167 = sphi %s1148, %s1186
              $region51: #{patch_discriminator.9} parent=47 // loop_header_branch
                %1164 = sbr.rel (%p1161) target = $region55
              $region52: #{patch_discriminator.9} parent=47 // loop_body
                %v1168 = vld [vmem:[%s1166] sm:$0xff]
                %1169 = vst [vmem:[%s1167] sm:$0xff] %v1168
                %v1170 = vld [vmem:[%s1166 + $0x8] sm:$0xff]
                %1171 = vst [vmem:[%s1167 + $0x8] sm:$0xff] %v1170
                %v1172 = vld [vmem:[%s1166 + $0x10] sm:$0xff]
                %1173 = vst [vmem:[%s1167 + $0x10] sm:$0xff] %v1172
                %v1174 = vld [vmem:[%s1166 + $0x18] sm:$0xff]
                %1175 = vst [vmem:[%s1167 + $0x18] sm:$0xff] %v1174
                %v1176 = vld [vmem:[%s1166 + $0x20] sm:$0xff]
                %1177 = vst [vmem:[%s1167 + $0x20] sm:$0xff] %v1176
                %v1178 = vld [vmem:[%s1166 + $0x28] sm:$0xff]
                %1179 = vst [vmem:[%s1167 + $0x28] sm:$0xff] %v1178
                %s1180 = sadd.s32 1, %s1165
                %p1181 = scmp.ge.s32.totalorder %s1180, %s1157
                %s1182 = scalar_select %p1181, 0, %s1180
                %s1183 = smul.u32 %s1182, 48
                %s1184 = smul.u32 %s1182, 48
                %s1185 = scalar_lea.vmem %s1137, %s1183 [#allocation2]
                %s1186 = scalar_lea.vmem %s1148, %s1184
              $region53: #{patch_discriminator.9} parent=47 // loop_footer
                %s1162 = sadd.s32 %s1160, 1
              $region54: #{patch_discriminator.9} parent=47 // loop_footer_branch
                %1159 = sbr.rel target = $region50
              $region55: #{patch_discriminator.9} parent=47 // loop_exit
                _
              %s1187 = sdiv.u32.pop %s1144, 6
              %s1188 = srem.u32.pop %s1144, 6
              %s1189 = smul.u32 %s1187, 6
              %s1190 = smul.u32 8, %s1189
              %s1191 = scalar_lea.vmem %s1137, %s1190 [#allocation2]
              %s1192 = smul.u32 8, %s1189
              %s1193 = scalar_lea.vmem %s1148, %s1192
              // While loop
              $region56: #{patch_discriminator.9} parent=47 // loop_pre_header
                _
              $region57: #{patch_discriminator.9} parent=47 // loop_header
                %s1195 = sphi 0, %s1197
                %p1196 = scmp.ge.s32.totalorder %s1195, %s1188
                %s1200 = sphi 0, %s1207
                %s1201 = sphi %s1191, %s1210
                %s1202 = sphi %s1193, %s1211
              $region58: #{patch_discriminator.9} parent=47 // loop_header_branch
                %1199 = sbr.rel (%p1196) target = $region62
              $region59: #{patch_discriminator.9} parent=47 // loop_body
                %v1203 = vld [vmem:[%s1201] sm:$0xff]
                %1204 = vst [vmem:[%s1202] sm:$0xff] %v1203
                %s1205 = sadd.s32 1, %s1200
                %p1206 = scmp.ge.s32.totalorder %s1205, %s1188
                %s1207 = scalar_select %p1206, 0, %s1205
                %s1208 = smul.u32 %s1207, 8
                %s1209 = smul.u32 %s1207, 8
                %s1210 = scalar_lea.vmem %s1191, %s1208 [#allocation2]
                %s1211 = scalar_lea.vmem %s1193, %s1209
              $region60: #{patch_discriminator.9} parent=47 // loop_footer
                %s1197 = sadd.s32 %s1195, 1
              $region61: #{patch_discriminator.9} parent=47 // loop_footer_branch
                %1194 = sbr.rel target = $region57
              $region62: #{patch_discriminator.9} parent=47 // loop_exit
                _
            $region48: #{patch_discriminator.9} parent=39 // pred_fallthru
              _
          $region40: #{patch_discriminator.9} parent=35 // pred_fallthru
            _
          %1271 = vnop
        $region36: #{patch_discriminator.9} parent=31 // pred_fallthru
          _
      $region32: #{patch_discriminator.9} parent=5 // pred_fallthru
        _
      %p1272 = scmp.le.s32.totalorder 2, %s9
      // Predicated region
      $region85: #{patch_discriminator.9} parent=5 // pred_check
        %p1273 = pneg %p1272
      $region86: #{patch_discriminator.9} parent=5 // pred_check_branch
        %1275 = sbr.rel (%p1273) target = $region88
      $region87: #{patch_discriminator.9} parent=5 // pred_region
        %s1276 = ssub.s32 %s9, 2
        // Predicated region
        $region89: #{patch_discriminator.9} parent=87 // pred_check
          %p1277 = pneg %p106
        $region90: #{patch_discriminator.9} parent=87 // pred_check_branch
          %1279 = sbr.rel (%p1277) target = $region92
        $region91: #{patch_discriminator.9} parent=87 // pred_region
          %s1280 = sand.u32 %s91, 1
          %s1281 = sand.u32 %s91, 1
          %s1282 = smul.addr %s1281, 48
          %s1283 = scalar_lea.vmem [#allocation2], %s1282
        $region92: #{patch_discriminator.9} parent=87 // pred_fallthru
          _
      $region88: #{patch_discriminator.9} parent=5 // pred_fallthru
        _
    $region6: #{patch_discriminator.9} parent=1 // loop_footer
      %s13 = sadd.s32 1, %s9
    $region7: #{patch_discriminator.9} parent=1 // loop_footer_branch
      %8 = sbr.rel target = $region3
    $region8: #{patch_discriminator.9} parent=1 // loop_exit
      _

</llo_original>
